<compile_context>
chip_gen: v5e
topology: v5e:2x2
jax: 0.10.0
libtpu: 0.0.40
codegen_flags: <defaults>
</compile_context>

<pallas_src>
import functools

import jax
import jax.numpy as jnp
from jax import lax
from jax.experimental import pallas as pl
from jax.experimental.pallas import tpu as pltpu

LANE = 128                     # TPU lane width; padded channel width.
C2, C3, CC = 32, 64, 32        # logical channels: layer2, layer3, clf features.

CLASSIFICATION_LAYER = 'layer3'
BB_REGRESSOR_LAYER = ['layer2', 'layer3']


def _pad_last(x, n):
    pad = n - x.shape[-1]
    if pad <= 0:
        return x
    cfg = [(0, 0)] * (x.ndim - 1) + [(0, pad)]
    return jnp.pad(x, cfg)


# ----------------------------------------------------------------------------
# Conv 3x3 / stride 2 / pad 1 : one (M, 9*Cin) @ (9*Cin, 128) matmul per step.
# ----------------------------------------------------------------------------
def _conv_mm_kernel(x_ref, w_ref, b_ref, o_ref, *, relu):
    y = jnp.dot(x_ref[...], w_ref[...],
                preferred_element_type=jnp.float32) + b_ref[...]
    if relu:
        y = jnp.maximum(y, 0.0)
    o_ref[...] = y.astype(o_ref.dtype)                # single unmasked slab store


def _extract_patches_s2(x):
    """x: (B, H, W, C) bf16 -> (B*ho*wo, 9*C) bf16, taps major, channels minor.
    Pure XLA relayout (pad + 9 strided slices + concat), done once per layer."""
    B, H, W, C = x.shape
    ho, wo = H // 2, W // 2
    xp = jnp.pad(x, ((0, 0), (1, 1), (1, 1), (0, 0)))
    cols = []
    for dy in range(3):
        for dx in range(3):
            t = lax.slice(xp, (0, dy, dx, 0), (B, dy + H, dx + W, C),
                          (1, 2, 2, 1))               # (B, ho, wo, C)
            cols.append(t)
    pat = jnp.concatenate(cols, axis=-1)              # (B, ho, wo, 9*C)
    return pat.reshape(B * ho * wo, 9 * C)


def _pick_blocks(m, target=4):
    nb = target
    while nb > 1 and (m % nb != 0 or (m // nb) % 16 != 0):
        nb -= 1
    return nb


def conv3x3_s2(x, w, b, *, relu=True):
    """x: (B, H, W, Cin) bf16 NHWC.  w: (9*Cin, 128) bf16.  b: (1, 128) f32."""
    B, H, W, Cin = x.shape
    assert H % 2 == 0 and W % 2 == 0
    ho, wo = H // 2, W // 2
    k = 9 * Cin
    patches = _extract_patches_s2(x)                  # (B*ho*wo, 9*Cin)
    m = B * ho * wo
    nblk = _pick_blocks(m)
    tm = m // nblk

    out = pl.pallas_call(
        functools.partial(_conv_mm_kernel, relu=relu),
        out_shape=jax.ShapeDtypeStruct((m, LANE), jnp.bfloat16),
        grid=(nblk,),
        in_specs=[pl.BlockSpec((tm, k), lambda i: (i, 0)),
                  pl.BlockSpec((k, LANE), lambda i: (0, 0)),
                  pl.BlockSpec((1, LANE), lambda i: (0, 0))],
        out_specs=pl.BlockSpec((tm, LANE), lambda i: (i, 0)),
        compiler_params=pltpu.CompilerParams(
            dimension_semantics=("parallel",)),
    )(patches, w, b)
    return out.reshape(B, ho, wo, LANE)


def backbone(imgs_nchw, pk):
    """Synthetic 3-conv feature extractor; returns channel-padded NHWC maps."""
    x = jnp.transpose(imgs_nchw, (0, 2, 3, 1)).astype(jnp.bfloat16)
    x = _pad_last(x, 8)                                              # RGB 3 -> 8
    x = conv3x3_s2(x, pk['conv1_w'], pk['conv1_b'], relu=True)       # (B,16,16,128)
    l2 = conv3x3_s2(x, pk['layer2_w'], pk['layer2_b'], relu=True)    # (B, 8, 8,128)
    l3 = conv3x3_s2(l2, pk['layer3_w'], pk['layer3_b'], relu=True)   # (B, 4, 4,128)
    return l2, l3


# ----------------------------------------------------------------------------
# Fused head: 1x1 clf conv + filter init + correlation + bb_regressor,
# one pallas_call with grid = (n_seq,).
# ----------------------------------------------------------------------------
def _head_kernel(l3_ref, l2_ref, lab_ref, modb_ref, pp_ref,
                 clfw_ref, clfb_ref, wm2_ref, wm3_ref, wi2_ref, wi3_ref,
                 sc_ref, iou_ref, *, n_train, n_test, hw2, hw3):
    f32 = jnp.float32
    bf16 = jnp.bfloat16
    ntr = n_train * hw3

    # ---- classifier -----------------------------------------------------
    l3 = l3_ref[0]                                     # (n_img*hw3, 128) bf16
    clfw = clfw_ref[...]                               # (128, 128) bf16
    clfb = clfb_ref[...]                               # (1, 128) f32
    tr3 = l3[0:ntr]                                    # train frames first
    te3 = l3[ntr:]
    tr_clf = jnp.dot(tr3, clfw, preferred_element_type=f32) + clfb
    te_clf = jnp.dot(te3, clfw, preferred_element_type=f32) + clfb
    lab = lab_ref[0]                                   # (1, ntr) f32
    # Filter initializer (label-weighted average pooling).
    num = jnp.dot(lab, tr_clf, preferred_element_type=f32)        # (1, 128)
    den = jnp.sum(lab, axis=-1, keepdims=True) + 1e-6             # (1, 1)
    filt = num / den
    # Per-pixel correlation = channel contraction (q @ k^T pattern).
    sc = lax.dot_general(filt.astype(bf16), te_clf.astype(bf16),
                         dimension_numbers=(((1,), (1,)), ((), ())),
                         preferred_element_type=f32)              # (1, nte)
    sc_ref[0] = sc

    # ---- bb_regressor ----------------------------------------------------
    # TODO(synk): PrRoIPool2D approximated with global average pooling.
    l2 = l2_ref[0]                                     # (n_img*hw2, 128) bf16
    pool2 = jnp.mean(l2[0:hw2].astype(f32), axis=0, keepdims=True)    # train frame 0
    pool3 = jnp.mean(tr3[0:hw3].astype(f32), axis=0, keepdims=True)
    # fc_mod2/fc_mod3 fused along N; bb contribution precomputed in wrapper.
    mod = (jnp.dot(pool2.astype(bf16), wm2_ref[...], preferred_element_type=f32)
           + jnp.dot(pool3.astype(bf16), wm3_ref[...], preferred_element_type=f32)
           + modb_ref[0])
    mod = jnp.maximum(mod, 0.0)                        # (1, 256)
    mod2 = mod[:, :LANE]
    mod3 = mod[:, LANE:]
    # Test-frame pooled features.
    p2_list, p3_list = [], []
    for t in range(n_test):
        o2 = (n_train + t) * hw2
        o3 = (n_train + t) * hw3
        p2_list.append(jnp.mean(l2[o2:o2 + hw2].astype(f32), axis=0,
                                keepdims=True))
        p3_list.append(jnp.mean(l3[o3:o3 + hw3].astype(f32), axis=0,
                                keepdims=True))
    p2te = jnp.concatenate(p2_list, axis=0)            # (n_test, 128)
    p3te = jnp.concatenate(p3_list, axis=0)
    m2 = p2te * mod2
    m3 = p3te * mod3
    # Feature part of fc_iou as a lane reduction (XLU); proposal part (pp) was
    # precomputed in the wrapper and just broadcast-added here.
    a = (jnp.sum(m2 * wi2_ref[...], axis=-1, keepdims=True)
         + jnp.sum(m3 * wi3_ref[...], axis=-1, keepdims=True))    # (n_test, 1)
    iou_ref[0] = a + pp_ref[0]                         # (n_test, P)


# ----------------------------------------------------------------------------
# DiMPnet forward (training-style call).
# ----------------------------------------------------------------------------
def dimpnet_forward(pk, train_imgs, test_imgs, train_bb, train_label,
                    test_proposals):
    assert train_imgs.ndim == 5 and test_imgs.ndim == 5, 'Expect 5-D inputs'
    n_train, n_seq = train_imgs.shape[:2]
    n_test = test_imgs.shape[0]
    n_img = n_train + n_test
    H, W = train_imgs.shape[-2:]
    P = test_proposals.shape[2]

    # One backbone pass over train+test; batch ordered (seq, img) so the head
    # reads contiguous per-sequence feature blocks (no feature transposes).
    imgs = jnp.concatenate([train_imgs, test_imgs], axis=0)   # (n_img, n_seq, 3,H,W)
    imgs = jnp.transpose(imgs, (1, 0, 2, 3, 4)).reshape(n_seq * n_img, 3, H, W)
    l2, l3 = backbone(imgs, pk)
    hw2 = l2.shape[1] * l2.shape[2]
    hw3 = l3.shape[1] * l3.shape[2]
    hc, wc = l3.shape[1], l3.shape[2]
    l2f = l2.reshape(n_seq, n_img * hw2, LANE)
    l3f = l3.reshape(n_seq, n_img * hw3, LANE)

    ntr = n_train * hw3
    nte = n_test * hw3
    lab = (jnp.transpose(train_label.reshape(n_train, n_seq, hw3), (1, 0, 2))
           .reshape(n_seq, 1, ntr).astype(jnp.float32))
    # Wrapper-side precompute of all 4-lane operands (review: keep them out of
    # the kernel hot path).
    bb0 = train_bb[0].astype(jnp.float32)                           # (n_seq, 4)
    modbias = (bb0 @ pk['wmbb'] + pk['bmod']).reshape(n_seq, 1, 2 * LANE)
    props = test_proposals.astype(jnp.float32)                      # (nt, S, P, 4)
    pp = jnp.einsum('tspk,k->tsp', props, pk['wip']) + pk['biou']   # (nt, S, P)
    pp = jnp.transpose(pp, (1, 0, 2))                               # (S, nt, P)

    scores, iou = pl.pallas_call(
        functools.partial(_head_kernel, n_train=n_train, n_test=n_test,
                          hw2=hw2, hw3=hw3),
        out_shape=(jax.ShapeDtypeStruct((n_seq, 1, nte), jnp.float32),
                   jax.ShapeDtypeStruct((n_seq, n_test, P), jnp.float32)),
        grid=(n_seq,),
        in_specs=[pl.BlockSpec((1, n_img * hw3, LANE), lambda s: (s, 0, 0)),
                  pl.BlockSpec((1, n_img * hw2, LANE), lambda s: (s, 0, 0)),
                  pl.BlockSpec((1, 1, ntr), lambda s: (s, 0, 0)),
                  pl.BlockSpec((1, 1, 2 * LANE), lambda s: (s, 0, 0)),
                  pl.BlockSpec((1, n_test, P), lambda s: (s, 0, 0)),
                  pl.BlockSpec((LANE, LANE), lambda s: (0, 0)),
                  pl.BlockSpec((1, LANE), lambda s: (0, 0)),
                  pl.BlockSpec((LANE, 2 * LANE), lambda s: (0, 0)),
                  pl.BlockSpec((LANE, 2 * LANE), lambda s: (0, 0)),
                  pl.BlockSpec((1, LANE), lambda s: (0, 0)),
                  pl.BlockSpec((1, LANE), lambda s: (0, 0))],
        out_specs=[pl.BlockSpec((1, 1, nte), lambda s: (s, 0, 0)),
                   pl.BlockSpec((1, n_test, P), lambda s: (s, 0, 0))],
        compiler_params=pltpu.CompilerParams(
            dimension_semantics=("parallel",)),
    )(l3f, l2f, lab, modbias, pp,
      pk['clf_w'], pk['clf_b'], pk['wm2'], pk['wm3'], pk['wi2'], pk['wi3'])

    target_scores = scores.reshape(n_seq, n_test, hc, wc).transpose(1, 0, 2, 3)
    iou_pred = iou.transpose(1, 0, 2)
    return target_scores, iou_pred


# ----------------------------------------------------------------------------
# Parameters: logical (PyTorch-layout) init + one-time lane-dense bf16 packing.
# ----------------------------------------------------------------------------
def init_params(key):
    ks = jax.random.split(key, 10)

    def w(k, shape):
        fan_in = 1
        for d in shape[1:]:
            fan_in *= d
        return (jax.random.normal(k, shape, jnp.float32) /
                jnp.sqrt(jnp.float32(max(fan_in, 1))))

    return {
        'conv1_w': w(ks[0], (16, 3, 3, 3)), 'conv1_b': jnp.zeros((16,)),
        'layer2_w': w(ks[1], (C2, 16, 3, 3)), 'layer2_b': jnp.zeros((C2,)),
        'layer3_w': w(ks[2], (C3, C2, 3, 3)), 'layer3_b': jnp.zeros((C3,)),
        'clf_w': w(ks[3], (C3, CC)), 'clf_b': jnp.zeros((CC,)),
        'fc_mod2_w': w(ks[4], (C2 + C3 + 4, C2)), 'fc_mod2_b': jnp.zeros((C2,)),
        'fc_mod3_w': w(ks[5], (C2 + C3 + 4, C3)), 'fc_mod3_b': jnp.zeros((C3,)),
        'fc_iou_w': w(ks[6], (C2 + C3 + 4, 1)), 'fc_iou_b': jnp.zeros((1,)),
    }


def pack_params(p):
    """Repack logical weights into lane-dense (128-padded) bf16 kernel layouts.
    Weights AND biases are zero-padded, so padded output lanes stay exactly 0
    through ReLU and never perturb downstream reductions."""

    def conv_pack(w, b, cin_p):
        cout, cin = w.shape[0], w.shape[1]
        taps = jnp.transpose(w, (2, 3, 1, 0))                  # (3,3,cin,cout)
        taps = jnp.pad(taps, ((0, 0), (0, 0),
                              (0, cin_p - cin), (0, LANE - cout)))
        wk = taps.reshape(9 * cin_p, LANE).astype(jnp.bfloat16)
        bk = jnp.pad(b, (0, LANE - cout)).reshape(1, LANE).astype(jnp.float32)
        return wk, bk

    pk = {}
    pk['conv1_w'], pk['conv1_b'] = conv_pack(p['conv1_w'], p['conv1_b'], 8)
    pk['layer2_w'], pk['layer2_b'] = conv_pack(p['layer2_w'], p['layer2_b'], LANE)
    pk['layer3_w'], pk['layer3_b'] = conv_pack(p['layer3_w'], p['layer3_b'], LANE)

    clf_w = jnp.zeros((LANE, LANE), jnp.float32).at[:C3, :CC].set(p['clf_w'])
    pk['clf_w'] = clf_w.astype(jnp.bfloat16)
    pk['clf_b'] = (jnp.pad(p['clf_b'], (0, LANE - CC))
                   .reshape(1, LANE).astype(jnp.float32))

    # Modulation FCs fused along N ([mod2 | mod3]) and split along K
    # (pool2 / pool3 / bb blocks), in the padded-lane layout.
    w2, w3 = p['fc_mod2_w'], p['fc_mod3_w']            # (100, 32), (100, 64)
    wm2 = jnp.zeros((LANE, 2 * LANE), jnp.float32)
    wm2 = wm2.at[:C2, :C2].set(w2[:C2]).at[:C2, LANE:LANE + C3].set(w3[:C2])
    wm3 = jnp.zeros((LANE, 2 * LANE), jnp.float32)
    wm3 = (wm3.at[:C3, :C2].set(w2[C2:C2 + C3])
              .at[:C3, LANE:LANE + C3].set(w3[C2:C2 + C3]))
    wmbb = jnp.zeros((4, 2 * LANE), jnp.float32)
    wmbb = (wmbb.at[:, :C2].set(w2[C2 + C3:])
                .at[:, LANE:LANE + C3].set(w3[C2 + C3:]))
    bmod = jnp.zeros((1, 2 * LANE), jnp.float32)
    bmod = (bmod.at[0, :C2].set(p['fc_mod2_b'])
                .at[0, LANE:LANE + C3].set(p['fc_mod3_b']))
    pk['wm2'] = wm2.astype(jnp.bfloat16)
    pk['wm3'] = wm3.astype(jnp.bfloat16)
    pk['wmbb'] = wmbb                                   # f32, wrapper-side only
    pk['bmod'] = bmod                                   # f32, wrapper-side only

    # IoU head split along K: modulated layer2 / layer3 rows (kernel, as lane
    # reduction weights) and the proposal block (wrapper-side precompute).
    wi = p['fc_iou_w'][:, 0]                            # (100,)
    pk['wi2'] = jnp.zeros((1, LANE), jnp.float32).at[0, :C2].set(wi[:C2])
    pk['wi3'] = jnp.zeros((1, LANE), jnp.float32).at[0, :C3].set(wi[C2:C2 + C3])
    pk['wip'] = wi[C2 + C3:].astype(jnp.float32)        # (4,)
    pk['biou'] = p['fc_iou_b'].astype(jnp.float32)      # (1,)
    return pk


# ----------------------------------------------------------------------------
if __name__ == "__main__":
    key = jax.random.PRNGKey(0)
    kp, k1, k2, k3, k4, k5 = jax.random.split(key, 6)
    params = init_params(kp)
    packed = pack_params(params)

    n_train, n_test, n_seq = 2, 2, 2
    H = W = 32
    Hc = Wc = 4          # layer3 / classification resolution (32 -> 16 -> 8 -> 4)
    P = 8                # proposals per test frame

    train_imgs = jax.random.normal(k1, (n_train, n_seq, 3, H, W), jnp.float32)
    test_imgs = jax.random.normal(k2, (n_test, n_seq, 3, H, W), jnp.float32)
    train_bb = jax.random.uniform(k3, (n_train, n_seq, 4), jnp.float32) * 10.0
    train_label = jax.random.uniform(k4, (n_train, n_seq, Hc, Wc), jnp.float32)
    test_proposals = (jax.random.uniform(k5, (n_test, n_seq, P, 4), jnp.float32)
                      * 10.0)

    fwd = jax.jit(functools.partial(dimpnet_forward, packed))
    target_scores, iou_pred = fwd(train_imgs, test_imgs, train_bb,
                                  train_label, test_proposals)
    jax.block_until_ready((target_scores, iou_pred))

    assert target_scores.shape == (n_test, n_seq, Hc, Wc), target_scores.shape
    assert iou_pred.shape == (n_test, n_seq, P), iou_pred.shape
    assert bool(jnp.all(jnp.isfinite(target_scores)))
    assert bool(jnp.all(jnp.isfinite(iou_pred)))
    print("KERNEL_OK")
</pallas_src>

<mosaic_0001>
module attributes {stable_mosaic.version = 11 : i64} {
  func.func @_conv_mm_kernel(%arg0: i32, %arg1: memref<512x72xbf16, #tpu.memory_space<vmem>>, %arg2: memref<72x128xbf16, #tpu.memory_space<vmem>>, %arg3: memref<1x128xf32, #tpu.memory_space<vmem>>, %arg4: memref<512x128xbf16, #tpu.memory_space<vmem>>) attributes {dimension_semantics = [#tpu.dimension_semantics<parallel>], iteration_bounds = array<i64: 4>, scalar_prefetch = 0 : i64, scratch_operands = 0 : i64, tpu.core_type = #tpu.core_type<tc>, window_params = [{transform_indices = @transform_0, window_bounds = array<i64: 512, 72>}, {pipeline_mode = #tpu.pipeline_mode<synchronous>, transform_indices = @transform_1, window_bounds = array<i64: 72, 128>}, {pipeline_mode = #tpu.pipeline_mode<synchronous>, transform_indices = @transform_2, window_bounds = array<i64: 1, 128>}, {transform_indices = @transform_3, window_bounds = array<i64: 512, 128>}]} {
    %c0 = arith.constant 0 : index
    %c0_0 = arith.constant 0 : index
    %0 = vector.load %arg1[%c0, %c0_0] : memref<512x72xbf16, #tpu.memory_space<vmem>>, vector<512x72xbf16>
    %c0_1 = arith.constant 0 : index
    %c0_2 = arith.constant 0 : index
    %1 = vector.load %arg2[%c0_1, %c0_2] : memref<72x128xbf16, #tpu.memory_space<vmem>>, vector<72x128xbf16>
    %cst = arith.constant dense<0.000000e+00> : vector<512x128xf32>
    %2 = tpu.matmul %0, %1, %cst {dimension_numbers = #tpu.dot_dimension_numbers<[1], [0], [0], [1], [0, 0, 1, 1], [], []>} : vector<512x72xbf16>, vector<72x128xbf16>, vector<512x128xf32> -> vector<512x128xf32>
    %c0_3 = arith.constant 0 : index
    %c0_4 = arith.constant 0 : index
    %3 = vector.load %arg3[%c0_3, %c0_4] : memref<1x128xf32, #tpu.memory_space<vmem>>, vector<1x128xf32>
    %4 = vector.broadcast %3 : vector<1x128xf32> to vector<512x128xf32>
    %5 = arith.addf %2, %4 : vector<512x128xf32>
    %cst_5 = arith.constant 0.000000e+00 : f32
    %6 = vector.broadcast %cst_5 : f32 to vector<512x128xf32>
    %7 = arith.maximumf %5, %6 : vector<512x128xf32>
    %8 = arith.truncf %7 : vector<512x128xf32> to vector<512x128xbf16>
    %c0_6 = arith.constant 0 : index
    %c0_7 = arith.constant 0 : index
    %9 = vector.load %arg4[%c0_6, %c0_7] : memref<512x128xbf16, #tpu.memory_space<vmem>>, vector<512x128xbf16>
    tpu.vector_store %arg4[%c0_6, %c0_7], %8 {strides = array<i32>} : memref<512x128xbf16, #tpu.memory_space<vmem>>, vector<512x128xbf16>,
    return
  }
  func.func @transform_0(%arg0: i32) -> (i32, i32) {
    %c0_i32 = arith.constant 0 : i32
    %c0_i32_0 = arith.constant 0 : i32
    return %arg0, %c0_i32 : i32, i32
  }
  func.func @transform_1(%arg0: i32) -> (i32, i32) {
    %c0_i32 = arith.constant 0 : i32
    %c0_i32_0 = arith.constant 0 : i32
    %c0_i32_1 = arith.constant 0 : i32
    return %c0_i32, %c0_i32_0 : i32, i32
  }
  func.func @transform_2(%arg0: i32) -> (i32, i32) {
    %c0_i32 = arith.constant 0 : i32
    %c0_i32_0 = arith.constant 0 : i32
    %c0_i32_1 = arith.constant 0 : i32
    return %c0_i32, %c0_i32_0 : i32, i32
  }
  func.func @transform_3(%arg0: i32) -> (i32, i32) {
    %c0_i32 = arith.constant 0 : i32
    %c0_i32_0 = arith.constant 0 : i32
    return %arg0, %c0_i32 : i32, i32
  }
}

module attributes {stable_mosaic.version = 11 : i64} {
  func.func @_conv_mm_kernel(%arg0: i32, %arg1: memref<128x1152xbf16, #tpu.memory_space<vmem>>, %arg2: memref<1152x128xbf16, #tpu.memory_space<vmem>>, %arg3: memref<1x128xf32, #tpu.memory_space<vmem>>, %arg4: memref<128x128xbf16, #tpu.memory_space<vmem>>) attributes {dimension_semantics = [#tpu.dimension_semantics<parallel>], iteration_bounds = array<i64: 4>, scalar_prefetch = 0 : i64, scratch_operands = 0 : i64, tpu.core_type = #tpu.core_type<tc>, window_params = [{transform_indices = @transform_0, window_bounds = array<i64: 128, 1152>}, {pipeline_mode = #tpu.pipeline_mode<synchronous>, transform_indices = @transform_1, window_bounds = array<i64: 1152, 128>}, {pipeline_mode = #tpu.pipeline_mode<synchronous>, transform_indices = @transform_2, window_bounds = array<i64: 1, 128>}, {transform_indices = @transform_3, window_bounds = array<i64: 128, 128>}]} {
    %c0 = arith.constant 0 : index
    %c0_0 = arith.constant 0 : index
    %0 = vector.load %arg1[%c0, %c0_0] : memref<128x1152xbf16, #tpu.memory_space<vmem>>, vector<128x1152xbf16>
    %c0_1 = arith.constant 0 : index
    %c0_2 = arith.constant 0 : index
    %1 = vector.load %arg2[%c0_1, %c0_2] : memref<1152x128xbf16, #tpu.memory_space<vmem>>, vector<1152x128xbf16>
    %cst = arith.constant dense<0.000000e+00> : vector<128x128xf32>
    %2 = tpu.matmul %0, %1, %cst {dimension_numbers = #tpu.dot_dimension_numbers<[1], [0], [0], [1], [0, 0, 1, 1], [], []>} : vector<128x1152xbf16>, vector<1152x128xbf16>, vector<128x128xf32> -> vector<128x128xf32>
    %c0_3 = arith.constant 0 : index
    %c0_4 = arith.constant 0 : index
    %3 = vector.load %arg3[%c0_3, %c0_4] : memref<1x128xf32, #tpu.memory_space<vmem>>, vector<1x128xf32>
    %4 = vector.broadcast %3 : vector<1x128xf32> to vector<128x128xf32>
    %5 = arith.addf %2, %4 : vector<128x128xf32>
    %cst_5 = arith.constant 0.000000e+00 : f32
    %6 = vector.broadcast %cst_5 : f32 to vector<128x128xf32>
    %7 = arith.maximumf %5, %6 : vector<128x128xf32>
    %8 = arith.truncf %7 : vector<128x128xf32> to vector<128x128xbf16>
    %c0_6 = arith.constant 0 : index
    %c0_7 = arith.constant 0 : index
    %9 = vector.load %arg4[%c0_6, %c0_7] : memref<128x128xbf16, #tpu.memory_space<vmem>>, vector<128x128xbf16>
    tpu.vector_store %arg4[%c0_6, %c0_7], %8 {strides = array<i32>} : memref<128x128xbf16, #tpu.memory_space<vmem>>, vector<128x128xbf16>,
    return
  }
  func.func @transform_0(%arg0: i32) -> (i32, i32) {
    %c0_i32 = arith.constant 0 : i32
    %c0_i32_0 = arith.constant 0 : i32
    return %arg0, %c0_i32 : i32, i32
  }
  func.func @transform_1(%arg0: i32) -> (i32, i32) {
    %c0_i32 = arith.constant 0 : i32
    %c0_i32_0 = arith.constant 0 : i32
    %c0_i32_1 = arith.constant 0 : i32
    return %c0_i32, %c0_i32_0 : i32, i32
  }
  func.func @transform_2(%arg0: i32) -> (i32, i32) {
    %c0_i32 = arith.constant 0 : i32
    %c0_i32_0 = arith.constant 0 : i32
    %c0_i32_1 = arith.constant 0 : i32
    return %c0_i32, %c0_i32_0 : i32, i32
  }
  func.func @transform_3(%arg0: i32) -> (i32, i32) {
    %c0_i32 = arith.constant 0 : i32
    %c0_i32_0 = arith.constant 0 : i32
    return %arg0, %c0_i32 : i32, i32
  }
}

module attributes {stable_mosaic.version = 11 : i64} {
  func.func @_conv_mm_kernel(%arg0: i32, %arg1: memref<32x1152xbf16, #tpu.memory_space<vmem>>, %arg2: memref<1152x128xbf16, #tpu.memory_space<vmem>>, %arg3: memref<1x128xf32, #tpu.memory_space<vmem>>, %arg4: memref<32x128xbf16, #tpu.memory_space<vmem>>) attributes {dimension_semantics = [#tpu.dimension_semantics<parallel>], iteration_bounds = array<i64: 4>, scalar_prefetch = 0 : i64, scratch_operands = 0 : i64, tpu.core_type = #tpu.core_type<tc>, window_params = [{transform_indices = @transform_0, window_bounds = array<i64: 32, 1152>}, {pipeline_mode = #tpu.pipeline_mode<synchronous>, transform_indices = @transform_1, window_bounds = array<i64: 1152, 128>}, {pipeline_mode = #tpu.pipeline_mode<synchronous>, transform_indices = @transform_2, window_bounds = array<i64: 1, 128>}, {transform_indices = @transform_3, window_bounds = array<i64: 32, 128>}]} {
    %c0 = arith.constant 0 : index
    %c0_0 = arith.constant 0 : index
    %0 = vector.load %arg1[%c0, %c0_0] : memref<32x1152xbf16, #tpu.memory_space<vmem>>, vector<32x1152xbf16>
    %c0_1 = arith.constant 0 : index
    %c0_2 = arith.constant 0 : index
    %1 = vector.load %arg2[%c0_1, %c0_2] : memref<1152x128xbf16, #tpu.memory_space<vmem>>, vector<1152x128xbf16>
    %cst = arith.constant dense<0.000000e+00> : vector<32x128xf32>
    %2 = tpu.matmul %0, %1, %cst {dimension_numbers = #tpu.dot_dimension_numbers<[1], [0], [0], [1], [0, 0, 1, 1], [], []>} : vector<32x1152xbf16>, vector<1152x128xbf16>, vector<32x128xf32> -> vector<32x128xf32>
    %c0_3 = arith.constant 0 : index
    %c0_4 = arith.constant 0 : index
    %3 = vector.load %arg3[%c0_3, %c0_4] : memref<1x128xf32, #tpu.memory_space<vmem>>, vector<1x128xf32>
    %4 = vector.broadcast %3 : vector<1x128xf32> to vector<32x128xf32>
    %5 = arith.addf %2, %4 : vector<32x128xf32>
    %cst_5 = arith.constant 0.000000e+00 : f32
    %6 = vector.broadcast %cst_5 : f32 to vector<32x128xf32>
    %7 = arith.maximumf %5, %6 : vector<32x128xf32>
    %8 = arith.truncf %7 : vector<32x128xf32> to vector<32x128xbf16>
    %c0_6 = arith.constant 0 : index
    %c0_7 = arith.constant 0 : index
    %9 = vector.load %arg4[%c0_6, %c0_7] : memref<32x128xbf16, #tpu.memory_space<vmem>>, vector<32x128xbf16>
    tpu.vector_store %arg4[%c0_6, %c0_7], %8 {strides = array<i32>} : memref<32x128xbf16, #tpu.memory_space<vmem>>, vector<32x128xbf16>,
    return
  }
  func.func @transform_0(%arg0: i32) -> (i32, i32) {
    %c0_i32 = arith.constant 0 : i32
    %c0_i32_0 = arith.constant 0 : i32
    return %arg0, %c0_i32 : i32, i32
  }
  func.func @transform_1(%arg0: i32) -> (i32, i32) {
    %c0_i32 = arith.constant 0 : i32
    %c0_i32_0 = arith.constant 0 : i32
    %c0_i32_1 = arith.constant 0 : i32
    return %c0_i32, %c0_i32_0 : i32, i32
  }
  func.func @transform_2(%arg0: i32) -> (i32, i32) {
    %c0_i32 = arith.constant 0 : i32
    %c0_i32_0 = arith.constant 0 : i32
    %c0_i32_1 = arith.constant 0 : i32
    return %c0_i32, %c0_i32_0 : i32, i32
  }
  func.func @transform_3(%arg0: i32) -> (i32, i32) {
    %c0_i32 = arith.constant 0 : i32
    %c0_i32_0 = arith.constant 0 : i32
    return %arg0, %c0_i32 : i32, i32
  }
}

module attributes {stable_mosaic.version = 11 : i64} {
  func.func @_head_kernel(%arg0: i32, %arg1: memref<1x64x128xbf16, #tpu.memory_space<vmem>>, %arg2: memref<1x256x128xbf16, #tpu.memory_space<vmem>>, %arg3: memref<1x1x32xf32, #tpu.memory_space<vmem>>, %arg4: memref<1x1x256xf32, #tpu.memory_space<vmem>>, %arg5: memref<1x2x8xf32, #tpu.memory_space<vmem>>, %arg6: memref<128x128xbf16, #tpu.memory_space<vmem>>, %arg7: memref<1x128xf32, #tpu.memory_space<vmem>>, %arg8: memref<128x256xbf16, #tpu.memory_space<vmem>>, %arg9: memref<128x256xbf16, #tpu.memory_space<vmem>>, %arg10: memref<1x128xf32, #tpu.memory_space<vmem>>, %arg11: memref<1x128xf32, #tpu.memory_space<vmem>>, %arg12: memref<1x1x32xf32, #tpu.memory_space<vmem>>, %arg13: memref<1x2x8xf32, #tpu.memory_space<vmem>>) attributes {dimension_semantics = [#tpu.dimension_semantics<parallel>], iteration_bounds = array<i64: 2>, scalar_prefetch = 0 : i64, scratch_operands = 0 : i64, tpu.core_type = #tpu.core_type<tc>, window_params = [{transform_indices = @transform_0, window_bounds = array<i64: 1, 64, 128>}, {transform_indices = @transform_1, window_bounds = array<i64: 1, 256, 128>}, {transform_indices = @transform_2, window_bounds = array<i64: 1, 1, 32>}, {transform_indices = @transform_3, window_bounds = array<i64: 1, 1, 256>}, {transform_indices = @transform_4, window_bounds = array<i64: 1, 2, 8>}, {pipeline_mode = #tpu.pipeline_mode<synchronous>, transform_indices = @transform_5, window_bounds = array<i64: 128, 128>}, {pipeline_mode = #tpu.pipeline_mode<synchronous>, transform_indices = @transform_6, window_bounds = array<i64: 1, 128>}, {pipeline_mode = #tpu.pipeline_mode<synchronous>, transform_indices = @transform_7, window_bounds = array<i64: 128, 256>}, {pipeline_mode = #tpu.pipeline_mode<synchronous>, transform_indices = @transform_8, window_bounds = array<i64: 128, 256>}, {pipeline_mode = #tpu.pipeline_mode<synchronous>, transform_indices = @transform_9, window_bounds = array<i64: 1, 128>}, {pipeline_mode = #tpu.pipeline_mode<synchronous>, transform_indices = @transform_10, window_bounds = array<i64: 1, 128>}, {transform_indices = @transform_11, window_bounds = array<i64: 1, 1, 32>}, {transform_indices = @transform_12, window_bounds = array<i64: 1, 2, 8>}]} {
    %c0 = arith.constant 0 : index
    %c0_0 = arith.constant 0 : index
    %c0_1 = arith.constant 0 : index
    %0 = vector.load %arg1[%c0, %c0_0, %c0_1] : memref<1x64x128xbf16, #tpu.memory_space<vmem>>, vector<1x64x128xbf16>
    %1 = vector.shape_cast %0 : vector<1x64x128xbf16> to vector<64x128xbf16>
    %c0_2 = arith.constant 0 : index
    %c0_3 = arith.constant 0 : index
    %2 = vector.load %arg6[%c0_2, %c0_3] : memref<128x128xbf16, #tpu.memory_space<vmem>>, vector<128x128xbf16>
    %c0_4 = arith.constant 0 : index
    %c0_5 = arith.constant 0 : index
    %3 = vector.load %arg7[%c0_4, %c0_5] : memref<1x128xf32, #tpu.memory_space<vmem>>, vector<1x128xf32>
    %4 = vector.extract_strided_slice %1 {offsets = [0, 0], sizes = [32, 128], strides = [1, 1]} : vector<64x128xbf16> to vector<32x128xbf16>
    %5 = vector.extract_strided_slice %1 {offsets = [32, 0], sizes = [32, 128], strides = [1, 1]} : vector<64x128xbf16> to vector<32x128xbf16>
    %cst = arith.constant dense<0.000000e+00> : vector<32x128xf32>
    %6 = tpu.matmul %4, %2, %cst {dimension_numbers = #tpu.dot_dimension_numbers<[1], [0], [0], [1], [0, 0, 1, 1], [], []>} : vector<32x128xbf16>, vector<128x128xbf16>, vector<32x128xf32> -> vector<32x128xf32>
    %7 = vector.broadcast %3 : vector<1x128xf32> to vector<32x128xf32>
    %8 = arith.addf %6, %7 : vector<32x128xf32>
    %cst_6 = arith.constant dense<0.000000e+00> : vector<32x128xf32>
    %9 = tpu.matmul %5, %2, %cst_6 {dimension_numbers = #tpu.dot_dimension_numbers<[1], [0], [0], [1], [0, 0, 1, 1], [], []>} : vector<32x128xbf16>, vector<128x128xbf16>, vector<32x128xf32> -> vector<32x128xf32>
    %10 = vector.broadcast %3 : vector<1x128xf32> to vector<32x128xf32>
    %11 = arith.addf %9, %10 : vector<32x128xf32>
    %c0_7 = arith.constant 0 : index
    %c0_8 = arith.constant 0 : index
    %c0_9 = arith.constant 0 : index
    %12 = vector.load %arg3[%c0_7, %c0_8, %c0_9] : memref<1x1x32xf32, #tpu.memory_space<vmem>>, vector<1x1x32xf32>
    %13 = vector.shape_cast %12 : vector<1x1x32xf32> to vector<1x32xf32>
    %cst_10 = arith.constant dense<0.000000e+00> : vector<1x128xf32>
    %14 = tpu.matmul %13, %8, %cst_10 {dimension_numbers = #tpu.dot_dimension_numbers<[1], [0], [0], [1], [0, 0, 1, 1], [], []>} : vector<1x32xf32>, vector<32x128xf32>, vector<1x128xf32> -> vector<1x128xf32>
    %cst_11 = arith.constant dense<0.000000e+00> : vector<1xf32>
    %15 = vector.multi_reduction <add>, %13, %cst_11 [1] : vector<1x32xf32> to vector<1xf32>
    %16 = vector.shape_cast %15 : vector<1xf32> to vector<1x1xf32>
    %cst_12 = arith.constant 9.99999997E-7 : f32
    %17 = vector.broadcast %cst_12 : f32 to vector<1x1xf32>
    %18 = arith.addf %16, %17 : vector<1x1xf32>
    %19 = vector.broadcast %18 : vector<1x1xf32> to vector<1x128xf32>
    %20 = arith.divf %14, %19 : vector<1x128xf32>
    %21 = arith.truncf %20 : vector<1x128xf32> to vector<1x128xbf16>
    %22 = arith.truncf %11 : vector<32x128xf32> to vector<32x128xbf16>
    %cst_13 = arith.constant dense<0.000000e+00> : vector<1x32xf32>
    %23 = tpu.matmul %21, %22, %cst_13 {dimension_numbers = #tpu.dot_dimension_numbers<[1], [1], [0], [0], [0, 0, 1, 0], [], []>} : vector<1x128xbf16>, vector<32x128xbf16>, vector<1x32xf32> -> vector<1x32xf32>
    %c0_14 = arith.constant 0 : index
    %c0_15 = arith.constant 0 : index
    %c0_16 = arith.constant 0 : index
    %24 = vector.load %arg12[%c0_14, %c0_15, %c0_16] : memref<1x1x32xf32, #tpu.memory_space<vmem>>, vector<1x1x32xf32>
    %25 = vector.shape_cast %24 : vector<1x1x32xf32> to vector<1x32xf32>
    %26 = vector.shape_cast %23 : vector<1x32xf32> to vector<1x1x32xf32>
    tpu.vector_store %arg12[%c0_14, %c0_15, %c0_16], %26 {strides = array<i32>} : memref<1x1x32xf32, #tpu.memory_space<vmem>>, vector<1x1x32xf32>,
    %c0_17 = arith.constant 0 : index
    %c0_18 = arith.constant 0 : index
    %c0_19 = arith.constant 0 : index
    %27 = vector.load %arg2[%c0_17, %c0_18, %c0_19] : memref<1x256x128xbf16, #tpu.memory_space<vmem>>, vector<1x256x128xbf16>
    %28 = vector.shape_cast %27 : vector<1x256x128xbf16> to vector<256x128xbf16>
    %29 = vector.extract_strided_slice %28 {offsets = [0, 0], sizes = [64, 128], strides = [1, 1]} : vector<256x128xbf16> to vector<64x128xbf16>
    %30 = arith.extf %29 : vector<64x128xbf16> to vector<64x128xf32>
    %cst_20 = arith.constant dense<0.000000e+00> : vector<128xf32>
    %31 = vector.multi_reduction <add>, %30, %cst_20 [0] : vector<64x128xf32> to vector<128xf32>
    %32 = vector.shape_cast %31 : vector<128xf32> to vector<1x128xf32>
    %cst_21 = arith.constant 6.400000e+01 : f32
    %33 = vector.broadcast %cst_21 : f32 to vector<1x128xf32>
    %34 = arith.divf %32, %33 : vector<1x128xf32>
    %35 = vector.extract_strided_slice %4 {offsets = [0, 0], sizes = [16, 128], strides = [1, 1]} : vector<32x128xbf16> to vector<16x128xbf16>
    %36 = arith.extf %35 : vector<16x128xbf16> to vector<16x128xf32>
    %cst_22 = arith.constant dense<0.000000e+00> : vector<128xf32>
    %37 = vector.multi_reduction <add>, %36, %cst_22 [0] : vector<16x128xf32> to vector<128xf32>
    %38 = vector.shape_cast %37 : vector<128xf32> to vector<1x128xf32>
    %cst_23 = arith.constant 1.600000e+01 : f32
    %39 = vector.broadcast %cst_23 : f32 to vector<1x128xf32>
    %40 = arith.divf %38, %39 : vector<1x128xf32>
    %41 = arith.truncf %34 : vector<1x128xf32> to vector<1x128xbf16>
    %c0_24 = arith.constant 0 : index
    %c0_25 = arith.constant 0 : index
    %42 = vector.load %arg8[%c0_24, %c0_25] : memref<128x256xbf16, #tpu.memory_space<vmem>>, vector<128x256xbf16>
    %cst_26 = arith.constant dense<0.000000e+00> : vector<1x256xf32>
    %43 = tpu.matmul %41, %42, %cst_26 {dimension_numbers = #tpu.dot_dimension_numbers<[1], [0], [0], [1], [0, 0, 1, 1], [], []>} : vector<1x128xbf16>, vector<128x256xbf16>, vector<1x256xf32> -> vector<1x256xf32>
    %44 = arith.truncf %40 : vector<1x128xf32> to vector<1x128xbf16>
    %c0_27 = arith.constant 0 : index
    %c0_28 = arith.constant 0 : index
    %45 = vector.load %arg9[%c0_27, %c0_28] : memref<128x256xbf16, #tpu.memory_space<vmem>>, vector<128x256xbf16>
    %cst_29 = arith.constant dense<0.000000e+00> : vector<1x256xf32>
    %46 = tpu.matmul %44, %45, %cst_29 {dimension_numbers = #tpu.dot_dimension_numbers<[1], [0], [0], [1], [0, 0, 1, 1], [], []>} : vector<1x128xbf16>, vector<128x256xbf16>, vector<1x256xf32> -> vector<1x256xf32>
    %47 = arith.addf %43, %46 : vector<1x256xf32>
    %c0_30 = arith.constant 0 : index
    %c0_31 = arith.constant 0 : index
    %c0_32 = arith.constant 0 : index
    %48 = vector.load %arg4[%c0_30, %c0_31, %c0_32] : memref<1x1x256xf32, #tpu.memory_space<vmem>>, vector<1x1x256xf32>
    %49 = vector.shape_cast %48 : vector<1x1x256xf32> to vector<1x256xf32>
    %50 = arith.addf %47, %49 : vector<1x256xf32>
    %cst_33 = arith.constant 0.000000e+00 : f32
    %51 = vector.broadcast %cst_33 : f32 to vector<1x256xf32>
    %52 = arith.maximumf %50, %51 : vector<1x256xf32>
    %53 = vector.extract_strided_slice %52 {offsets = [0, 0], sizes = [1, 128], strides = [1, 1]} : vector<1x256xf32> to vector<1x128xf32>
    %54 = vector.extract_strided_slice %52 {offsets = [0, 128], sizes = [1, 128], strides = [1, 1]} : vector<1x256xf32> to vector<1x128xf32>
    %55 = vector.extract_strided_slice %28 {offsets = [128, 0], sizes = [64, 128], strides = [1, 1]} : vector<256x128xbf16> to vector<64x128xbf16>
    %56 = arith.extf %55 : vector<64x128xbf16> to vector<64x128xf32>
    %cst_34 = arith.constant dense<0.000000e+00> : vector<128xf32>
    %57 = vector.multi_reduction <add>, %56, %cst_34 [0] : vector<64x128xf32> to vector<128xf32>
    %58 = vector.shape_cast %57 : vector<128xf32> to vector<1x128xf32>
    %cst_35 = arith.constant 6.400000e+01 : f32
    %59 = vector.broadcast %cst_35 : f32 to vector<1x128xf32>
    %60 = arith.divf %58, %59 : vector<1x128xf32>
    %61 = vector.extract_strided_slice %1 {offsets = [32, 0], sizes = [16, 128], strides = [1, 1]} : vector<64x128xbf16> to vector<16x128xbf16>
    %62 = arith.extf %61 : vector<16x128xbf16> to vector<16x128xf32>
    %cst_36 = arith.constant dense<0.000000e+00> : vector<128xf32>
    %63 = vector.multi_reduction <add>, %62, %cst_36 [0] : vector<16x128xf32> to vector<128xf32>
    %64 = vector.shape_cast %63 : vector<128xf32> to vector<1x128xf32>
    %cst_37 = arith.constant 1.600000e+01 : f32
    %65 = vector.broadcast %cst_37 : f32 to vector<1x128xf32>
    %66 = arith.divf %64, %65 : vector<1x128xf32>
    %67 = vector.extract_strided_slice %28 {offsets = [192, 0], sizes = [64, 128], strides = [1, 1]} : vector<256x128xbf16> to vector<64x128xbf16>
    %68 = arith.extf %67 : vector<64x128xbf16> to vector<64x128xf32>
    %cst_38 = arith.constant dense<0.000000e+00> : vector<128xf32>
    %69 = vector.multi_reduction <add>, %68, %cst_38 [0] : vector<64x128xf32> to vector<128xf32>
    %70 = vector.shape_cast %69 : vector<128xf32> to vector<1x128xf32>
    %cst_39 = arith.constant 6.400000e+01 : f32
    %71 = vector.broadcast %cst_39 : f32 to vector<1x128xf32>
    %72 = arith.divf %70, %71 : vector<1x128xf32>
    %73 = vector.extract_strided_slice %1 {offsets = [48, 0], sizes = [16, 128], strides = [1, 1]} : vector<64x128xbf16> to vector<16x128xbf16>
    %74 = arith.extf %73 : vector<16x128xbf16> to vector<16x128xf32>
    %cst_40 = arith.constant dense<0.000000e+00> : vector<128xf32>
    %75 = vector.multi_reduction <add>, %74, %cst_40 [0] : vector<16x128xf32> to vector<128xf32>
    %76 = vector.shape_cast %75 : vector<128xf32> to vector<1x128xf32>
    %cst_41 = arith.constant 1.600000e+01 : f32
    %77 = vector.broadcast %cst_41 : f32 to vector<1x128xf32>
    %78 = arith.divf %76, %77 : vector<1x128xf32>
    %79 = tpu.concatenate %60, %72 in 0 : vector<1x128xf32>, vector<1x128xf32> -> vector<2x128xf32>
    %80 = tpu.concatenate %66, %78 in 0 : vector<1x128xf32>, vector<1x128xf32> -> vector<2x128xf32>
    %81 = vector.broadcast %53 : vector<1x128xf32> to vector<2x128xf32>
    %82 = arith.mulf %79, %81 : vector<2x128xf32>
    %83 = vector.broadcast %54 : vector<1x128xf32> to vector<2x128xf32>
    %84 = arith.mulf %80, %83 : vector<2x128xf32>
    %c0_42 = arith.constant 0 : index
    %c0_43 = arith.constant 0 : index
    %85 = vector.load %arg10[%c0_42, %c0_43] : memref<1x128xf32, #tpu.memory_space<vmem>>, vector<1x128xf32>
    %86 = vector.broadcast %85 : vector<1x128xf32> to vector<2x128xf32>
    %87 = arith.mulf %82, %86 : vector<2x128xf32>
    %cst_44 = arith.constant dense<0.000000e+00> : vector<2xf32>
    %88 = vector.multi_reduction <add>, %87, %cst_44 [1] : vector<2x128xf32> to vector<2xf32>
    %89 = vector.shape_cast %88 : vector<2xf32> to vector<2x1xf32>
    %c0_45 = arith.constant 0 : index
    %c0_46 = arith.constant 0 : index
    %90 = vector.load %arg11[%c0_45, %c0_46] : memref<1x128xf32, #tpu.memory_space<vmem>>, vector<1x128xf32>
    %91 = vector.broadcast %90 : vector<1x128xf32> to vector<2x128xf32>
    %92 = arith.mulf %84, %91 : vector<2x128xf32>
    %cst_47 = arith.constant dense<0.000000e+00> : vector<2xf32>
    %93 = vector.multi_reduction <add>, %92, %cst_47 [1] : vector<2x128xf32> to vector<2xf32>
    %94 = vector.shape_cast %93 : vector<2xf32> to vector<2x1xf32>
    %95 = arith.addf %89, %94 : vector<2x1xf32>
    %c0_48 = arith.constant 0 : index
    %c0_49 = arith.constant 0 : index
    %c0_50 = arith.constant 0 : index
    %96 = vector.load %arg5[%c0_48, %c0_49, %c0_50] : memref<1x2x8xf32, #tpu.memory_space<vmem>>, vector<1x2x8xf32>
    %97 = vector.shape_cast %96 : vector<1x2x8xf32> to vector<2x8xf32>
    %98 = vector.broadcast %95 : vector<2x1xf32> to vector<2x8xf32>
    %99 = arith.addf %98, %97 : vector<2x8xf32>
    %c0_51 = arith.constant 0 : index
    %c0_52 = arith.constant 0 : index
    %c0_53 = arith.constant 0 : index
    %100 = vector.load %arg13[%c0_51, %c0_52, %c0_53] : memref<1x2x8xf32, #tpu.memory_space<vmem>>, vector<1x2x8xf32>
    %101 = vector.shape_cast %100 : vector<1x2x8xf32> to vector<2x8xf32>
    %102 = vector.shape_cast %99 : vector<2x8xf32> to vector<1x2x8xf32>
    tpu.vector_store %arg13[%c0_51, %c0_52, %c0_53], %102 {strides = array<i32>} : memref<1x2x8xf32, #tpu.memory_space<vmem>>, vector<1x2x8xf32>,
    return
  }
  func.func @transform_0(%arg0: i32) -> (i32, i32, i32) {
    %c0_i32 = arith.constant 0 : i32
    %c0_i32_0 = arith.constant 0 : i32
    %c0_i32_1 = arith.constant 0 : i32
    return %arg0, %c0_i32, %c0_i32_0 : i32, i32, i32
  }
  func.func @transform_1(%arg0: i32) -> (i32, i32, i32) {
    %c0_i32 = arith.constant 0 : i32
    %c0_i32_0 = arith.constant 0 : i32
    %c0_i32_1 = arith.constant 0 : i32
    return %arg0, %c0_i32, %c0_i32_0 : i32, i32, i32
  }
  func.func @transform_2(%arg0: i32) -> (i32, i32, i32) {
    %c0_i32 = arith.constant 0 : i32
    %c0_i32_0 = arith.constant 0 : i32
    %c0_i32_1 = arith.constant 0 : i32
    return %arg0, %c0_i32, %c0_i32_0 : i32, i32, i32
  }
  func.func @transform_3(%arg0: i32) -> (i32, i32, i32) {
    %c0_i32 = arith.constant 0 : i32
    %c0_i32_0 = arith.constant 0 : i32
    %c0_i32_1 = arith.constant 0 : i32
    return %arg0, %c0_i32, %c0_i32_0 : i32, i32, i32
  }
  func.func @transform_4(%arg0: i32) -> (i32, i32, i32) {
    %c0_i32 = arith.constant 0 : i32
    %c0_i32_0 = arith.constant 0 : i32
    %c0_i32_1 = arith.constant 0 : i32
    return %arg0, %c0_i32, %c0_i32_0 : i32, i32, i32
  }
  func.func @transform_5(%arg0: i32) -> (i32, i32) {
    %c0_i32 = arith.constant 0 : i32
    %c0_i32_0 = arith.constant 0 : i32
    %c0_i32_1 = arith.constant 0 : i32
    return %c0_i32, %c0_i32_0 : i32, i32
  }
  func.func @transform_6(%arg0: i32) -> (i32, i32) {
    %c0_i32 = arith.constant 0 : i32
    %c0_i32_0 = arith.constant 0 : i32
    %c0_i32_1 = arith.constant 0 : i32
    return %c0_i32, %c0_i32_0 : i32, i32
  }
  func.func @transform_7(%arg0: i32) -> (i32, i32) {
    %c0_i32 = arith.constant 0 : i32
    %c0_i32_0 = arith.constant 0 : i32
    %c0_i32_1 = arith.constant 0 : i32
    return %c0_i32, %c0_i32_0 : i32, i32
  }
  func.func @transform_8(%arg0: i32) -> (i32, i32) {
    %c0_i32 = arith.constant 0 : i32
    %c0_i32_0 = arith.constant 0 : i32
    %c0_i32_1 = arith.constant 0 : i32
    return %c0_i32, %c0_i32_0 : i32, i32
  }
  func.func @transform_9(%arg0: i32) -> (i32, i32) {
    %c0_i32 = arith.constant 0 : i32
    %c0_i32_0 = arith.constant 0 : i32
    %c0_i32_1 = arith.constant 0 : i32
    return %c0_i32, %c0_i32_0 : i32, i32
  }
  func.func @transform_10(%arg0: i32) -> (i32, i32) {
    %c0_i32 = arith.constant 0 : i32
    %c0_i32_0 = arith.constant 0 : i32
    %c0_i32_1 = arith.constant 0 : i32
    return %c0_i32, %c0_i32_0 : i32, i32
  }
  func.func @transform_11(%arg0: i32) -> (i32, i32, i32) {
    %c0_i32 = arith.constant 0 : i32
    %c0_i32_0 = arith.constant 0 : i32
    %c0_i32_1 = arith.constant 0 : i32
    return %arg0, %c0_i32, %c0_i32_0 : i32, i32, i32
  }
  func.func @transform_12(%arg0: i32) -> (i32, i32, i32) {
    %c0_i32 = arith.constant 0 : i32
    %c0_i32_0 = arith.constant 0 : i32
    %c0_i32_1 = arith.constant 0 : i32
    return %arg0, %c0_i32, %c0_i32_0 : i32, i32, i32
  }
}

</mosaic_0001>

<llo_original>
// kernel: dimpnet_forward.4
$region0: #{dimpnet_forward.4}
  #allocation0 [shape = 'u32[]', space=smem, size = 0x4, offset = 0x4, fixed_abs, tag = 'smem constant byte address 0x4 - core index']
  #allocation1 [shape = 'u32[72,128]{1,0:T(1,128)}', space=vmem, size = 0x9000, scoped, tag = 'internal scratch']
  %s0 = inlined_call_operand.vmem [shape: bf16[2048,72], index: 0, kind: input, shape index: {}]
  %s1 = inlined_call_operand.vmem [shape: bf16[72,128], index: 1, kind: input, shape index: {}]
  %s2 = inlined_call_operand.vmem [shape: f32[1,128], index: 2, kind: input, shape index: {}]
  %s3 = inlined_call_operand.vmem [shape: bf16[2048,128], index: 3, kind: output, shape index: {}]
  %s4 = sld [smem:[#allocation0]]
  $region45: #{dimpnet_forward.4} parent=0
    _
  %s6 = ssub.s32 1, %s4
  %s7 = scalar_select 0, %s6, %s4
  loop: start=0, step=1, limit=6
  $region2: #{dimpnet_forward.4} parent=0 // loop_pre_header
    _
  $region3: #{dimpnet_forward.4} parent=0 // loop_header
    %s9 = sphi 0, %s13
    %p10 = scmp.ge.s32.totalorder %s9, 6
    %s19 = sphi 0, %s21
    %s22 = sphi 0, %s19
    %s23 = sphi 0, %s22
    %s39 = sphi 0, %s23
    %s43 = sphi 0, %s43
    %s45 = sphi 0, %s43
    %s46 = sphi 0, %s45
    %s60 = sphi 0, %s46
    %s64 = sphi 0, %s64
    %s66 = sphi 0, %s64
    %s67 = sphi 0, %s66
    %s81 = sphi 0, %s67
    %s87 = sphi 0, %s89
    %s90 = sphi 0, %s87
    %s91 = sphi 0, %s90
    %s107 = sphi 0, %s91
  $region4: #{dimpnet_forward.4} parent=0 // loop_header_branch
    %12 = sbr.rel (%p10) target = $region8
  $region5: #{dimpnet_forward.4} parent=0 // loop_body
    %s14 = ssub.s32 %s9, 1
    %s15 = ssub.s32 %s9, 2
    %s16 = sadd.s32 %s9, 1
    %s17 = ssub.s32 %s9, %s16
    %p18 = scmp.eq.s32.totalorder %s17, 0
    %s20 = sadd.s32 %s19, 1
    %s21 = scalar_select %p18, %s19, %s20
    %p24 = pneg %p18
    %p25 = scmp.eq.s32.totalorder %s9, 3
    %p26 = por %p24, %p25
    %p27 = scmp.ne.s32.totalorder %s19, %s22
    %p28 = scmp.eq.s32.totalorder %s9, 0
    %p29 = por %p27, %p28
    %p30 = scmp.ne.s32.totalorder %s19, %s22
    %p31 = scmp.eq.s32.totalorder %s14, 3
    %p32 = por %p30, %p31
    %p33 = scmp.ne.s32.totalorder %s22, %s23
    %p34 = scmp.eq.s32.totalorder %s14, 0
    %p35 = por %p33, %p34
    %p36 = scmp.ne.s32.totalorder %s22, %s23
    %p37 = scmp.eq.s32.totalorder %s15, 3
    %p38 = por %p36, %p37
    %p40 = scmp.ne.s32.totalorder %s23, %s39
    %p41 = scmp.eq.s32.totalorder %s15, 0
    %p42 = por %p40, %p41
    %s44 = sadd.s32 %s43, 1
    %p47 = scmp.eq.s32.totalorder %s9, 3
    %p48 = scmp.ne.s32.totalorder %s43, %s45
    %p49 = scmp.eq.s32.totalorder %s9, 0
    %p50 = por %p48, %p49
    %p51 = scmp.ne.s32.totalorder %s43, %s45
    %p52 = scmp.eq.s32.totalorder %s14, 3
    %p53 = por %p51, %p52
    %p54 = scmp.ne.s32.totalorder %s45, %s46
    %p55 = scmp.eq.s32.totalorder %s14, 0
    %p56 = por %p54, %p55
    %p57 = scmp.ne.s32.totalorder %s45, %s46
    %p58 = scmp.eq.s32.totalorder %s15, 3
    %p59 = por %p57, %p58
    %p61 = scmp.ne.s32.totalorder %s46, %s60
    %p62 = scmp.eq.s32.totalorder %s15, 0
    %p63 = por %p61, %p62
    %s65 = sadd.s32 %s64, 1
    %p68 = scmp.eq.s32.totalorder %s9, 3
    %p69 = scmp.ne.s32.totalorder %s64, %s66
    %p70 = scmp.eq.s32.totalorder %s9, 0
    %p71 = por %p69, %p70
    %p72 = scmp.ne.s32.totalorder %s64, %s66
    %p73 = scmp.eq.s32.totalorder %s14, 3
    %p74 = por %p72, %p73
    %p75 = scmp.ne.s32.totalorder %s66, %s67
    %p76 = scmp.eq.s32.totalorder %s14, 0
    %p77 = por %p75, %p76
    %p78 = scmp.ne.s32.totalorder %s66, %s67
    %p79 = scmp.eq.s32.totalorder %s15, 3
    %p80 = por %p78, %p79
    %p82 = scmp.ne.s32.totalorder %s67, %s81
    %p83 = scmp.eq.s32.totalorder %s15, 0
    %p84 = por %p82, %p83
    %s85 = ssub.s32 %s9, %s16
    %p86 = scmp.eq.s32.totalorder %s85, 0
    %s88 = sadd.s32 %s87, 1
    %s89 = scalar_select %p86, %s87, %s88
    %p92 = pneg %p86
    %p93 = scmp.eq.s32.totalorder %s9, 3
    %p94 = por %p92, %p93
    %p95 = scmp.ne.s32.totalorder %s87, %s90
    %p96 = scmp.eq.s32.totalorder %s9, 0
    %p97 = por %p95, %p96
    %p98 = scmp.ne.s32.totalorder %s87, %s90
    %p99 = scmp.eq.s32.totalorder %s14, 3
    %p100 = por %p98, %p99
    %p101 = scmp.ne.s32.totalorder %s90, %s91
    %p102 = scmp.eq.s32.totalorder %s14, 0
    %p103 = por %p101, %p102
    %p104 = scmp.ne.s32.totalorder %s90, %s91
    %p105 = scmp.eq.s32.totalorder %s15, 3
    %p106 = por %p104, %p105
    %p108 = scmp.ne.s32.totalorder %s91, %s107
    %p109 = scmp.eq.s32.totalorder %s15, 0
    %p110 = por %p108, %p109
    %p111 = scmp.le.s32.totalorder 1, %s9
    %p112 = scmp.lt.s32.totalorder %s9, 5
    %p113 = pnand %p111, %p112
    %p114 = pneg %p113
    // Predicated region
    $region9: #{dimpnet_forward.4} parent=5 // pred_check
      _
    $region10: #{dimpnet_forward.4} parent=5 // pred_check_branch
      %116 = sbr.rel (%p113) target = $region12
    $region11: #{dimpnet_forward.4} parent=5 // pred_region
      %s117 = ssub.s32 %s9, 1
      // Predicated region
      $region13: #{dimpnet_forward.4} parent=11 // pred_check
        %p118 = pneg %p56
      $region14: #{dimpnet_forward.4} parent=11 // pred_check_branch
        %120 = sbr.rel (%p118) target = $region16
      $region15: #{dimpnet_forward.4} parent=11 // pred_region
        _
      $region16: #{dimpnet_forward.4} parent=11 // pred_fallthru
        _
      // Predicated region
      $region17: #{dimpnet_forward.4} parent=11 // pred_check
        %p121 = pneg %p77
      $region18: #{dimpnet_forward.4} parent=11 // pred_check_branch
        %123 = sbr.rel (%p121) target = $region20
      $region19: #{dimpnet_forward.4} parent=11 // pred_region
        _
      $region20: #{dimpnet_forward.4} parent=11 // pred_fallthru
        _
    $region12: #{dimpnet_forward.4} parent=5 // pred_fallthru
      _
    %p124 = scmp.lt.s32.totalorder %s9, 4
    // Predicated region
    $region21: #{dimpnet_forward.4} parent=5 // pred_check
      %p125 = pneg %p124
    $region22: #{dimpnet_forward.4} parent=5 // pred_check_branch
      %127 = sbr.rel (%p125) target = $region24
    $region23: #{dimpnet_forward.4} parent=5 // pred_region
      // Predicated region
      $region25: #{dimpnet_forward.4} parent=23 // pred_check
        %p128 = pneg %p29
      $region26: #{dimpnet_forward.4} parent=23 // pred_check_branch
        %130 = sbr.rel (%p128) target = $region28
      $region27: #{dimpnet_forward.4} parent=23 // pred_region
        %s131 = smul.u32 64, %s9
        %p132 = scmp.lt.s32.totalorder %s131, 255
        %s133 = scalar_select %p132, %s131, 255
        %s134 = smul.addr %s133, 4
        %s135 = scalar_lea.vmem %s0, %s134
        %s136 = smul.u32 64, %s9
      $region28: #{dimpnet_forward.4} parent=23 // pred_fallthru
        _
    $region24: #{dimpnet_forward.4} parent=5 // pred_fallthru
      _
    %p137 = scmp.le.s32.totalorder 1, %s9
    %p138 = scmp.lt.s32.totalorder %s9, 5
    %p139 = pnand %p137, %p138
    %p140 = pneg %p139
    // Predicated region
    $region29: #{dimpnet_forward.4} parent=5 // pred_check
      _
    $region30: #{dimpnet_forward.4} parent=5 // pred_check_branch
      %142 = sbr.rel (%p139) target = $region32
    $region31: #{dimpnet_forward.4} parent=5 // pred_region
      %s143 = ssub.s32 %s9, 1
      %s144 = smul.u32 64, %s14
      %p145 = scmp.lt.s32.totalorder %s144, 255
      %s146 = scalar_select %p145, %s144, 255
      %s147 = smul.addr %s146, 4
      %s148 = scalar_lea.vmem %s0, %s147
      %p149 = pneg %p35
      %p150 = pneg %p32
      %p151 = pneg %p56
      %p152 = pneg %p53
      %p153 = pneg %p77
      %p154 = pneg %p74
      %p155 = pneg %p103
      %p156 = pneg %p100
      %s157 = smul.u32 64, %s14
      %p158 = scmp.lt.s32.totalorder %s157, 255
      %s159 = scalar_select %p158, %s157, 255
      %s160 = smul.addr %s159, 4
      %s161 = scalar_lea.vmem %s3, %s160
      %s162 = smul.u32 64, %s14
      %p163 = scmp.lt.s32.totalorder %s162, 255
      %s164 = scalar_select %p163, %s162, 255
      %s165 = smul.addr %s164, 4
      %s166 = scalar_lea.vmem %s0, %s165
      %s167 = smul.u32 64, %s14
      %s168 = smul.u32 64, %s14
      %p169 = scmp.lt.s32.totalorder %s168, 255
      %s170 = scalar_select %p169, %s168, 255
      %s171 = smul.addr %s170, 4
      %s172 = scalar_lea.vmem %s3, %s171
      %s173 = smul.u32 64, %s14
      %v175 = vld [vmem:[%s166] sm:$0xf]
      %v176 = vld [vmem:[%s166 + $0x4] sm:$0xf]
      %v177 = vld [vmem:[%s166 + $0x8] sm:$0xf]
      %v178 = vld [vmem:[%s166 + $0xc] sm:$0xf]
      %v179 = vld [vmem:[%s166 + $0x10] sm:$0xf]
      %v180 = vld [vmem:[%s166 + $0x14] sm:$0xf]
      %v181 = vld [vmem:[%s166 + $0x18] sm:$0xf]
      %v182 = vld [vmem:[%s166 + $0x1c] sm:$0xf]
      %v183 = vld [vmem:[%s166 + $0x20] sm:$0xf]
      %v184 = vld [vmem:[%s166 + $0x24] sm:$0xf]
      %v185 = vld [vmem:[%s166 + $0x28] sm:$0xf]
      %v186 = vld [vmem:[%s166 + $0x2c] sm:$0xf]
      %v187 = vld [vmem:[%s166 + $0x30] sm:$0xf]
      %v188 = vld [vmem:[%s166 + $0x34] sm:$0xf]
      %v189 = vld [vmem:[%s166 + $0x38] sm:$0xf]
      %v190 = vld [vmem:[%s166 + $0x3c] sm:$0xf]
      %v191 = vld [vmem:[%s166 + $0x40] sm:$0xf]
      %v192 = vld [vmem:[%s166 + $0x44] sm:$0xf]
      %v193 = vld [vmem:[%s166 + $0x48] sm:$0xf]
      %v194 = vld [vmem:[%s166 + $0x4c] sm:$0xf]
      %v195 = vld [vmem:[%s166 + $0x50] sm:$0xf]
      %v196 = vld [vmem:[%s166 + $0x54] sm:$0xf]
      %v197 = vld [vmem:[%s166 + $0x58] sm:$0xf]
      %v198 = vld [vmem:[%s166 + $0x5c] sm:$0xf]
      %v199 = vld [vmem:[%s166 + $0x60] sm:$0xf]
      %v200 = vld [vmem:[%s166 + $0x64] sm:$0xf]
      %v201 = vld [vmem:[%s166 + $0x68] sm:$0xf]
      %v202 = vld [vmem:[%s166 + $0x6c] sm:$0xf]
      %v203 = vld [vmem:[%s166 + $0x70] sm:$0xf]
      %v204 = vld [vmem:[%s166 + $0x74] sm:$0xf]
      %v205 = vld [vmem:[%s166 + $0x78] sm:$0xf]
      %v206 = vld [vmem:[%s166 + $0x7c] sm:$0xf]
      %v207 = vld [vmem:[%s166 + $0x80] sm:$0xf]
      %v208 = vld [vmem:[%s166 + $0x84] sm:$0xf]
      %v209 = vld [vmem:[%s166 + $0x88] sm:$0xf]
      %v210 = vld [vmem:[%s166 + $0x8c] sm:$0xf]
      %v211 = vld [vmem:[%s166 + $0x90] sm:$0xf]
      %v212 = vld [vmem:[%s166 + $0x94] sm:$0xf]
      %v213 = vld [vmem:[%s166 + $0x98] sm:$0xf]
      %v214 = vld [vmem:[%s166 + $0x9c] sm:$0xf]
      %v215 = vld [vmem:[%s166 + $0xa0] sm:$0xf]
      %v216 = vld [vmem:[%s166 + $0xa4] sm:$0xf]
      %v217 = vld [vmem:[%s166 + $0xa8] sm:$0xf]
      %v218 = vld [vmem:[%s166 + $0xac] sm:$0xf]
      %v219 = vld [vmem:[%s166 + $0xb0] sm:$0xf]
      %v220 = vld [vmem:[%s166 + $0xb4] sm:$0xf]
      %v221 = vld [vmem:[%s166 + $0xb8] sm:$0xf]
      %v222 = vld [vmem:[%s166 + $0xbc] sm:$0xf]
      %v223 = vld [vmem:[%s166 + $0xc0] sm:$0xf]
      %v224 = vld [vmem:[%s166 + $0xc4] sm:$0xf]
      %v225 = vld [vmem:[%s166 + $0xc8] sm:$0xf]
      %v226 = vld [vmem:[%s166 + $0xcc] sm:$0xf]
      %v227 = vld [vmem:[%s166 + $0xd0] sm:$0xf]
      %v228 = vld [vmem:[%s166 + $0xd4] sm:$0xf]
      %v229 = vld [vmem:[%s166 + $0xd8] sm:$0xf]
      %v230 = vld [vmem:[%s166 + $0xdc] sm:$0xf]
      %v231 = vld [vmem:[%s166 + $0xe0] sm:$0xf]
      %v232 = vld [vmem:[%s166 + $0xe4] sm:$0xf]
      %v233 = vld [vmem:[%s166 + $0xe8] sm:$0xf]
      %v234 = vld [vmem:[%s166 + $0xec] sm:$0xf]
      %v235 = vld [vmem:[%s166 + $0xf0] sm:$0xf]
      %v236 = vld [vmem:[%s166 + $0xf4] sm:$0xf]
      %v237 = vld [vmem:[%s166 + $0xf8] sm:$0xf]
      %v238 = vld [vmem:[%s166 + $0xfc] sm:$0xf]
      %v239 = vld [vmem:[%s1] sm:$0xf]
      %v240 = vld [vmem:[%s1 + $0x4] sm:$0xf]
      %v241 = vld [vmem:[%s1 + $0x8] sm:$0xf]
      %v242 = vld [vmem:[%s1 + $0xc] sm:$0xf]
      %v243 = vld [vmem:[%s1 + $0x10] sm:$0xf]
      %v244 = vld [vmem:[%s1 + $0x14] sm:$0xf]
      %v245 = vld [vmem:[%s1 + $0x18] sm:$0xf]
      %v246 = vld [vmem:[%s1 + $0x1c] sm:$0xf]
      %v247 = vld [vmem:[%s1 + $0x20] sm:$0xf]
      %v248 = vld [vmem:[%s2] sm:$0x1]
      %v250 = vperm.slane %v248, 0
      %v316 = vunpack.c.l.b16 %v175
      %v317 = vunpack.c.l.b16 %v176
      %v318 = vunpack.c.l.b16 %v177
      %v319 = vunpack.c.l.b16 %v178
      %v320 = vunpack.c.l.b16 %v179
      %v321 = vunpack.c.l.b16 %v180
      %v322 = vunpack.c.l.b16 %v181
      %v323 = vunpack.c.l.b16 %v182
      %v324 = vunpack.c.l.b16 %v183
      %v325 = vunpack.c.l.b16 %v184
      %v326 = vunpack.c.l.b16 %v185
      %v327 = vunpack.c.l.b16 %v186
      %v328 = vunpack.c.l.b16 %v187
      %v329 = vunpack.c.l.b16 %v188
      %v330 = vunpack.c.l.b16 %v189
      %v331 = vunpack.c.l.b16 %v190
      %v332 = vunpack.c.l.b16 %v191
      %v333 = vunpack.c.l.b16 %v192
      %v334 = vunpack.c.l.b16 %v193
      %v335 = vunpack.c.l.b16 %v194
      %v336 = vunpack.c.l.b16 %v195
      %v337 = vunpack.c.l.b16 %v196
      %v338 = vunpack.c.l.b16 %v197
      %v339 = vunpack.c.l.b16 %v198
      %v340 = vunpack.c.l.b16 %v199
      %v341 = vunpack.c.l.b16 %v200
      %v342 = vunpack.c.l.b16 %v201
      %v343 = vunpack.c.l.b16 %v202
      %v344 = vunpack.c.l.b16 %v203
      %v345 = vunpack.c.l.b16 %v204
      %v346 = vunpack.c.l.b16 %v205
      %v347 = vunpack.c.l.b16 %v206
      %v348 = vunpack.c.l.b16 %v207
      %v349 = vunpack.c.l.b16 %v208
      %v350 = vunpack.c.l.b16 %v209
      %v351 = vunpack.c.l.b16 %v210
      %v352 = vunpack.c.l.b16 %v211
      %v353 = vunpack.c.l.b16 %v212
      %v354 = vunpack.c.l.b16 %v213
      %v355 = vunpack.c.l.b16 %v214
      %v356 = vunpack.c.l.b16 %v215
      %v357 = vunpack.c.l.b16 %v216
      %v358 = vunpack.c.l.b16 %v217
      %v359 = vunpack.c.l.b16 %v218
      %v360 = vunpack.c.l.b16 %v219
      %v361 = vunpack.c.l.b16 %v220
      %v362 = vunpack.c.l.b16 %v221
      %v363 = vunpack.c.l.b16 %v222
      %v364 = vunpack.c.l.b16 %v223
      %v365 = vunpack.c.l.b16 %v224
      %v366 = vunpack.c.l.b16 %v225
      %v367 = vunpack.c.l.b16 %v226
      %v368 = vunpack.c.l.b16 %v227
      %v369 = vunpack.c.l.b16 %v228
      %v370 = vunpack.c.l.b16 %v229
      %v371 = vunpack.c.l.b16 %v230
      %v372 = vunpack.c.l.b16 %v231
      %v373 = vunpack.c.l.b16 %v232
      %v374 = vunpack.c.l.b16 %v233
      %v375 = vunpack.c.l.b16 %v234
      %v376 = vunpack.c.l.b16 %v235
      %v377 = vunpack.c.l.b16 %v236
      %v378 = vunpack.c.l.b16 %v237
      %v379 = vunpack.c.l.b16 %v238
      %v380 = vpack.c.b16 %v317, %v316
      %v381 = vpack.c.b16 %v319, %v318
      %v382 = vpack.c.b16 %v321, %v320
      %v383 = vpack.c.b16 %v323, %v322
      %v384 = vpack.c.b16 %v325, %v324
      %v385 = vpack.c.b16 %v327, %v326
      %v386 = vpack.c.b16 %v329, %v328
      %v387 = vpack.c.b16 %v331, %v330
      %v388 = vpack.c.b16 %v333, %v332
      %v389 = vpack.c.b16 %v335, %v334
      %v390 = vpack.c.b16 %v337, %v336
      %v391 = vpack.c.b16 %v339, %v338
      %v392 = vpack.c.b16 %v341, %v340
      %v393 = vpack.c.b16 %v343, %v342
      %v394 = vpack.c.b16 %v345, %v344
      %v395 = vpack.c.b16 %v347, %v346
      %v396 = vpack.c.b16 %v349, %v348
      %v397 = vpack.c.b16 %v351, %v350
      %v398 = vpack.c.b16 %v353, %v352
      %v399 = vpack.c.b16 %v355, %v354
      %v400 = vpack.c.b16 %v357, %v356
      %v401 = vpack.c.b16 %v359, %v358
      %v402 = vpack.c.b16 %v361, %v360
      %v403 = vpack.c.b16 %v363, %v362
      %v404 = vpack.c.b16 %v365, %v364
      %v405 = vpack.c.b16 %v367, %v366
      %v406 = vpack.c.b16 %v369, %v368
      %v407 = vpack.c.b16 %v371, %v370
      %v408 = vpack.c.b16 %v373, %v372
      %v409 = vpack.c.b16 %v375, %v374
      %v410 = vpack.c.b16 %v377, %v376
      %v411 = vpack.c.b16 %v379, %v378
      %v421 = vunpack.c.l.b16 %v239
      %v422 = vunpack.c.l.b16 %v240
      %v423 = vunpack.c.l.b16 %v241
      %v424 = vunpack.c.l.b16 %v242
      %v425 = vunpack.c.l.b16 %v243
      %v426 = vunpack.c.l.b16 %v244
      %v427 = vunpack.c.l.b16 %v245
      %v428 = vunpack.c.l.b16 %v246
      %v429 = vunpack.c.l.b16 %v247
      %v430 = vpack.c.b16 %v422, %v421
      %v431 = vpack.c.b16 %v424, %v423
      %v432 = vpack.c.b16 %v426, %v425
      %v433 = vpack.c.b16 %v428, %v427
      %v434 = vpack.c.b16 %v429, %v429
      %vm439 = vcmask 588800
      %v441 = vsel %vm439, %v380, 0
      %v444 = vsel %vm439, %v381, 0
      %v447 = vsel %vm439, %v382, 0
      %v450 = vsel %vm439, %v383, 0
      %v453 = vsel %vm439, %v384, 0
      %v456 = vsel %vm439, %v385, 0
      %v459 = vsel %vm439, %v386, 0
      %v462 = vsel %vm439, %v387, 0
      %v465 = vsel %vm439, %v388, 0
      %v468 = vsel %vm439, %v389, 0
      %v471 = vsel %vm439, %v390, 0
      %v474 = vsel %vm439, %v391, 0
      %v477 = vsel %vm439, %v392, 0
      %v480 = vsel %vm439, %v393, 0
      %v483 = vsel %vm439, %v394, 0
      %v486 = vsel %vm439, %v395, 0
      %v489 = vsel %vm439, %v396, 0
      %v492 = vsel %vm439, %v397, 0
      %v495 = vsel %vm439, %v398, 0
      %v498 = vsel %vm439, %v399, 0
      %v501 = vsel %vm439, %v400, 0
      %v504 = vsel %vm439, %v401, 0
      %v507 = vsel %vm439, %v402, 0
      %v510 = vsel %vm439, %v403, 0
      %v513 = vsel %vm439, %v404, 0
      %v516 = vsel %vm439, %v405, 0
      %v519 = vsel %vm439, %v406, 0
      %v522 = vsel %vm439, %v407, 0
      %v525 = vsel %vm439, %v408, 0
      %v528 = vsel %vm439, %v409, 0
      %v531 = vsel %vm439, %v410, 0
      %v534 = vsel %vm439, %v411, 0
      %vm536 = vcmask 1043456
      %v538 = vsel %vm536, %v434, 0
      %540 = vmatpush.bf16.msra.mxu0 0
      %541 = vmatpush.bf16.msra.mxu0 0
      %542 = vmatpush.bf16.msra.mxu0 0
      %543 = vmatpush.bf16.msra.mxu0 %v538
      %544 = vmatpush.bf16.msra.mxu0 %v433
      %545 = vmatpush.bf16.msra.mxu0 %v432
      %546 = vmatpush.bf16.msra.mxu0 %v431
      %547 = vmatpush.bf16.msra.mxu0 %v430
      %548 = vmatmul.bf16.gmra.mxu0 %v441
      %v549 = vpop.f32.mrf.mxu0
      %v550 = vadd.f32 %v250, %v549
      %v551 = vpop.f32.mrf.mxu0
      %v552 = vadd.f32 %v250, %v551
      %553 = vmatmul.bf16.gmra.mxu0 %v444
      %v554 = vpop.f32.mrf.mxu0
      %v555 = vadd.f32 %v250, %v554
      %v556 = vpop.f32.mrf.mxu0
      %v557 = vadd.f32 %v250, %v556
      %558 = vmatmul.bf16.gmra.mxu0 %v447
      %v559 = vpop.f32.mrf.mxu0
      %v560 = vadd.f32 %v250, %v559
      %v561 = vpop.f32.mrf.mxu0
      %v562 = vadd.f32 %v250, %v561
      %563 = vmatmul.bf16.gmra.mxu0 %v450
      %v564 = vpop.f32.mrf.mxu0
      %v565 = vadd.f32 %v250, %v564
      %v566 = vpop.f32.mrf.mxu0
      %v567 = vadd.f32 %v250, %v566
      %568 = vmatmul.bf16.gmra.mxu0 %v453
      %v569 = vpop.f32.mrf.mxu0
      %v570 = vadd.f32 %v250, %v569
      %v571 = vpop.f32.mrf.mxu0
      %v572 = vadd.f32 %v250, %v571
      %573 = vmatmul.bf16.gmra.mxu0 %v456
      %v574 = vpop.f32.mrf.mxu0
      %v575 = vadd.f32 %v250, %v574
      %v576 = vpop.f32.mrf.mxu0
      %v577 = vadd.f32 %v250, %v576
      %578 = vmatmul.bf16.gmra.mxu0 %v459
      %v579 = vpop.f32.mrf.mxu0
      %v580 = vadd.f32 %v250, %v579
      %v581 = vpop.f32.mrf.mxu0
      %v582 = vadd.f32 %v250, %v581
      %583 = vmatmul.bf16.gmra.mxu0 %v462
      %v584 = vpop.f32.mrf.mxu0
      %v585 = vadd.f32 %v250, %v584
      %v586 = vpop.f32.mrf.mxu0
      %v587 = vadd.f32 %v250, %v586
      %588 = vmatmul.bf16.gmra.mxu0 %v465
      %v589 = vpop.f32.mrf.mxu0
      %v590 = vadd.f32 %v250, %v589
      %v591 = vpop.f32.mrf.mxu0
      %v592 = vadd.f32 %v250, %v591
      %593 = vmatmul.bf16.gmra.mxu0 %v468
      %v594 = vpop.f32.mrf.mxu0
      %v595 = vadd.f32 %v250, %v594
      %v596 = vpop.f32.mrf.mxu0
      %v597 = vadd.f32 %v250, %v596
      %598 = vmatmul.bf16.gmra.mxu0 %v471
      %v599 = vpop.f32.mrf.mxu0
      %v600 = vadd.f32 %v250, %v599
      %v601 = vpop.f32.mrf.mxu0
      %v602 = vadd.f32 %v250, %v601
      %603 = vmatmul.bf16.gmra.mxu0 %v474
      %v604 = vpop.f32.mrf.mxu0
      %v605 = vadd.f32 %v250, %v604
      %v606 = vpop.f32.mrf.mxu0
      %v607 = vadd.f32 %v250, %v606
      %608 = vmatmul.bf16.gmra.mxu0 %v477
      %v609 = vpop.f32.mrf.mxu0
      %v610 = vadd.f32 %v250, %v609
      %v611 = vpop.f32.mrf.mxu0
      %v612 = vadd.f32 %v250, %v611
      %613 = vmatmul.bf16.gmra.mxu0 %v480
      %v614 = vpop.f32.mrf.mxu0
      %v615 = vadd.f32 %v250, %v614
      %v616 = vpop.f32.mrf.mxu0
      %v617 = vadd.f32 %v250, %v616
      %618 = vmatmul.bf16.gmra.mxu0 %v483
      %v619 = vpop.f32.mrf.mxu0
      %v620 = vadd.f32 %v250, %v619
      %v621 = vpop.f32.mrf.mxu0
      %v622 = vadd.f32 %v250, %v621
      %623 = vmatmul.bf16.gmra.mxu0 %v486
      %v624 = vpop.f32.mrf.mxu0
      %v625 = vadd.f32 %v250, %v624
      %v626 = vpop.f32.mrf.mxu0
      %v627 = vadd.f32 %v250, %v626
      %628 = vmatmul.bf16.gmra.mxu0 %v489
      %v629 = vpop.f32.mrf.mxu0
      %v630 = vadd.f32 %v250, %v629
      %v631 = vpop.f32.mrf.mxu0
      %v632 = vadd.f32 %v250, %v631
      %633 = vmatmul.bf16.gmra.mxu0 %v492
      %v634 = vpop.f32.mrf.mxu0
      %v635 = vadd.f32 %v250, %v634
      %v636 = vpop.f32.mrf.mxu0
      %v637 = vadd.f32 %v250, %v636
      %638 = vmatmul.bf16.gmra.mxu0 %v495
      %v639 = vpop.f32.mrf.mxu0
      %v640 = vadd.f32 %v250, %v639
      %v641 = vpop.f32.mrf.mxu0
      %v642 = vadd.f32 %v250, %v641
      %643 = vmatmul.bf16.gmra.mxu0 %v498
      %v644 = vpop.f32.mrf.mxu0
      %v645 = vadd.f32 %v250, %v644
      %v646 = vpop.f32.mrf.mxu0
      %v647 = vadd.f32 %v250, %v646
      %648 = vmatmul.bf16.gmra.mxu0 %v501
      %v649 = vpop.f32.mrf.mxu0
      %v650 = vadd.f32 %v250, %v649
      %v651 = vpop.f32.mrf.mxu0
      %v652 = vadd.f32 %v250, %v651
      %653 = vmatmul.bf16.gmra.mxu0 %v504
      %v654 = vpop.f32.mrf.mxu0
      %v655 = vadd.f32 %v250, %v654
      %v656 = vpop.f32.mrf.mxu0
      %v657 = vadd.f32 %v250, %v656
      %658 = vmatmul.bf16.gmra.mxu0 %v507
      %v659 = vpop.f32.mrf.mxu0
      %v660 = vadd.f32 %v250, %v659
      %v661 = vpop.f32.mrf.mxu0
      %v662 = vadd.f32 %v250, %v661
      %663 = vmatmul.bf16.gmra.mxu0 %v510
      %v664 = vpop.f32.mrf.mxu0
      %v665 = vadd.f32 %v250, %v664
      %v666 = vpop.f32.mrf.mxu0
      %v667 = vadd.f32 %v250, %v666
      %668 = vmatmul.bf16.gmra.mxu0 %v513
      %v669 = vpop.f32.mrf.mxu0
      %v670 = vadd.f32 %v250, %v669
      %v671 = vpop.f32.mrf.mxu0
      %v672 = vadd.f32 %v250, %v671
      %673 = vmatmul.bf16.gmra.mxu0 %v516
      %v674 = vpop.f32.mrf.mxu0
      %v675 = vadd.f32 %v250, %v674
      %v676 = vpop.f32.mrf.mxu0
      %v677 = vadd.f32 %v250, %v676
      %678 = vmatmul.bf16.gmra.mxu0 %v519
      %v679 = vpop.f32.mrf.mxu0
      %v680 = vadd.f32 %v250, %v679
      %v681 = vpop.f32.mrf.mxu0
      %v682 = vadd.f32 %v250, %v681
      %683 = vmatmul.bf16.gmra.mxu0 %v522
      %v684 = vpop.f32.mrf.mxu0
      %v685 = vadd.f32 %v250, %v684
      %v686 = vpop.f32.mrf.mxu0
      %v687 = vadd.f32 %v250, %v686
      %688 = vmatmul.bf16.gmra.mxu0 %v525
      %v689 = vpop.f32.mrf.mxu0
      %v690 = vadd.f32 %v250, %v689
      %v691 = vpop.f32.mrf.mxu0
      %v692 = vadd.f32 %v250, %v691
      %693 = vmatmul.bf16.gmra.mxu0 %v528
      %v694 = vpop.f32.mrf.mxu0
      %v695 = vadd.f32 %v250, %v694
      %v696 = vpop.f32.mrf.mxu0
      %v697 = vadd.f32 %v250, %v696
      %698 = vmatmul.bf16.gmra.mxu0 %v531
      %v699 = vpop.f32.mrf.mxu0
      %v700 = vadd.f32 %v250, %v699
      %v701 = vpop.f32.mrf.mxu0
      %v702 = vadd.f32 %v250, %v701
      %703 = vmatmul.bf16.gmra.mxu0 %v534
      %v704 = vpop.f32.mrf.mxu0
      %v705 = vadd.f32 %v250, %v704
      %v706 = vpop.f32.mrf.mxu0
      %v707 = vadd.f32 %v250, %v706
      %708 = vdwg.mxu0
      %v709 = vmax.f32 %v550, 0.0
      %v710 = vmax.f32 %v552, 0.0
      %v711 = vmax.f32 %v555, 0.0
      %v712 = vmax.f32 %v557, 0.0
      %v713 = vmax.f32 %v560, 0.0
      %v714 = vmax.f32 %v562, 0.0
      %v715 = vmax.f32 %v565, 0.0
      %v716 = vmax.f32 %v567, 0.0
      %v717 = vmax.f32 %v570, 0.0
      %v718 = vmax.f32 %v572, 0.0
      %v719 = vmax.f32 %v575, 0.0
      %v720 = vmax.f32 %v577, 0.0
      %v721 = vmax.f32 %v580, 0.0
      %v722 = vmax.f32 %v582, 0.0
      %v723 = vmax.f32 %v585, 0.0
      %v724 = vmax.f32 %v587, 0.0
      %v725 = vmax.f32 %v590, 0.0
      %v726 = vmax.f32 %v592, 0.0
      %v727 = vmax.f32 %v595, 0.0
      %v728 = vmax.f32 %v597, 0.0
      %v729 = vmax.f32 %v600, 0.0
      %v730 = vmax.f32 %v602, 0.0
      %v731 = vmax.f32 %v605, 0.0
      %v732 = vmax.f32 %v607, 0.0
      %v733 = vmax.f32 %v610, 0.0
      %v734 = vmax.f32 %v612, 0.0
      %v735 = vmax.f32 %v615, 0.0
      %v736 = vmax.f32 %v617, 0.0
      %v737 = vmax.f32 %v620, 0.0
      %v738 = vmax.f32 %v622, 0.0
      %v739 = vmax.f32 %v625, 0.0
      %v740 = vmax.f32 %v627, 0.0
      %v741 = vmax.f32 %v630, 0.0
      %v742 = vmax.f32 %v632, 0.0
      %v743 = vmax.f32 %v635, 0.0
      %v744 = vmax.f32 %v637, 0.0
      %v745 = vmax.f32 %v640, 0.0
      %v746 = vmax.f32 %v642, 0.0
      %v747 = vmax.f32 %v645, 0.0
      %v748 = vmax.f32 %v647, 0.0
      %v749 = vmax.f32 %v650, 0.0
      %v750 = vmax.f32 %v652, 0.0
      %v751 = vmax.f32 %v655, 0.0
      %v752 = vmax.f32 %v657, 0.0
      %v753 = vmax.f32 %v660, 0.0
      %v754 = vmax.f32 %v662, 0.0
      %v755 = vmax.f32 %v665, 0.0
      %v756 = vmax.f32 %v667, 0.0
      %v757 = vmax.f32 %v670, 0.0
      %v758 = vmax.f32 %v672, 0.0
      %v759 = vmax.f32 %v675, 0.0
      %v760 = vmax.f32 %v677, 0.0
      %v761 = vmax.f32 %v680, 0.0
      %v762 = vmax.f32 %v682, 0.0
      %v763 = vmax.f32 %v685, 0.0
      %v764 = vmax.f32 %v687, 0.0
      %v765 = vmax.f32 %v690, 0.0
      %v766 = vmax.f32 %v692, 0.0
      %v767 = vmax.f32 %v695, 0.0
      %v768 = vmax.f32 %v697, 0.0
      %v769 = vmax.f32 %v700, 0.0
      %v770 = vmax.f32 %v702, 0.0
      %v771 = vmax.f32 %v705, 0.0
      %v772 = vmax.f32 %v707, 0.0
      %v773 = vpack.c.bf16 %v709, %v709
      %v774 = vpack.c.bf16 %v710, %v710
      %v775 = vpack.c.bf16 %v711, %v711
      %v776 = vpack.c.bf16 %v712, %v712
      %v777 = vpack.c.bf16 %v713, %v713
      %v778 = vpack.c.bf16 %v714, %v714
      %v779 = vpack.c.bf16 %v715, %v715
      %v780 = vpack.c.bf16 %v716, %v716
      %v781 = vpack.c.bf16 %v717, %v717
      %v782 = vpack.c.bf16 %v718, %v718
      %v783 = vpack.c.bf16 %v719, %v719
      %v784 = vpack.c.bf16 %v720, %v720
      %v785 = vpack.c.bf16 %v721, %v721
      %v786 = vpack.c.bf16 %v722, %v722
      %v787 = vpack.c.bf16 %v723, %v723
      %v788 = vpack.c.bf16 %v724, %v724
      %v789 = vpack.c.bf16 %v725, %v725
      %v790 = vpack.c.bf16 %v726, %v726
      %v791 = vpack.c.bf16 %v727, %v727
      %v792 = vpack.c.bf16 %v728, %v728
      %v793 = vpack.c.bf16 %v729, %v729
      %v794 = vpack.c.bf16 %v730, %v730
      %v795 = vpack.c.bf16 %v731, %v731
      %v796 = vpack.c.bf16 %v732, %v732
      %v797 = vpack.c.bf16 %v733, %v733
      %v798 = vpack.c.bf16 %v734, %v734
      %v799 = vpack.c.bf16 %v735, %v735
      %v800 = vpack.c.bf16 %v736, %v736
      %v801 = vpack.c.bf16 %v737, %v737
      %v802 = vpack.c.bf16 %v738, %v738
      %v803 = vpack.c.bf16 %v739, %v739
      %v804 = vpack.c.bf16 %v740, %v740
      %v805 = vpack.c.bf16 %v741, %v741
      %v806 = vpack.c.bf16 %v742, %v742
      %v807 = vpack.c.bf16 %v743, %v743
      %v808 = vpack.c.bf16 %v744, %v744
      %v809 = vpack.c.bf16 %v745, %v745
      %v810 = vpack.c.bf16 %v746, %v746
      %v811 = vpack.c.bf16 %v747, %v747
      %v812 = vpack.c.bf16 %v748, %v748
      %v813 = vpack.c.bf16 %v749, %v749
      %v814 = vpack.c.bf16 %v750, %v750
      %v815 = vpack.c.bf16 %v751, %v751
      %v816 = vpack.c.bf16 %v752, %v752
      %v817 = vpack.c.bf16 %v753, %v753
      %v818 = vpack.c.bf16 %v754, %v754
      %v819 = vpack.c.bf16 %v755, %v755
      %v820 = vpack.c.bf16 %v756, %v756
      %v821 = vpack.c.bf16 %v757, %v757
      %v822 = vpack.c.bf16 %v758, %v758
      %v823 = vpack.c.bf16 %v759, %v759
      %v824 = vpack.c.bf16 %v760, %v760
      %v825 = vpack.c.bf16 %v761, %v761
      %v826 = vpack.c.bf16 %v762, %v762
      %v827 = vpack.c.bf16 %v763, %v763
      %v828 = vpack.c.bf16 %v764, %v764
      %v829 = vpack.c.bf16 %v765, %v765
      %v830 = vpack.c.bf16 %v766, %v766
      %v831 = vpack.c.bf16 %v767, %v767
      %v832 = vpack.c.bf16 %v768, %v768
      %v833 = vpack.c.bf16 %v769, %v769
      %v834 = vpack.c.bf16 %v770, %v770
      %v835 = vpack.c.bf16 %v771, %v771
      %v836 = vpack.c.bf16 %v772, %v772
      %837 = vst [vmem:[%s172] sm:$0xf] %v773
      %838 = vst [vmem:[%s172 + $0x4] sm:$0xf] %v774
      %839 = vst [vmem:[%s172 + $0x8] sm:$0xf] %v775
      %840 = vst [vmem:[%s172 + $0xc] sm:$0xf] %v776
      %841 = vst [vmem:[%s172 + $0x10] sm:$0xf] %v777
      %842 = vst [vmem:[%s172 + $0x14] sm:$0xf] %v778
      %843 = vst [vmem:[%s172 + $0x18] sm:$0xf] %v779
      %844 = vst [vmem:[%s172 + $0x1c] sm:$0xf] %v780
      %845 = vst [vmem:[%s172 + $0x20] sm:$0xf] %v781
      %846 = vst [vmem:[%s172 + $0x24] sm:$0xf] %v782
      %847 = vst [vmem:[%s172 + $0x28] sm:$0xf] %v783
      %848 = vst [vmem:[%s172 + $0x2c] sm:$0xf] %v784
      %849 = vst [vmem:[%s172 + $0x30] sm:$0xf] %v785
      %850 = vst [vmem:[%s172 + $0x34] sm:$0xf] %v786
      %851 = vst [vmem:[%s172 + $0x38] sm:$0xf] %v787
      %852 = vst [vmem:[%s172 + $0x3c] sm:$0xf] %v788
      %853 = vst [vmem:[%s172 + $0x40] sm:$0xf] %v789
      %854 = vst [vmem:[%s172 + $0x44] sm:$0xf] %v790
      %855 = vst [vmem:[%s172 + $0x48] sm:$0xf] %v791
      %856 = vst [vmem:[%s172 + $0x4c] sm:$0xf] %v792
      %857 = vst [vmem:[%s172 + $0x50] sm:$0xf] %v793
      %858 = vst [vmem:[%s172 + $0x54] sm:$0xf] %v794
      %859 = vst [vmem:[%s172 + $0x58] sm:$0xf] %v795
      %860 = vst [vmem:[%s172 + $0x5c] sm:$0xf] %v796
      %861 = vst [vmem:[%s172 + $0x60] sm:$0xf] %v797
      %862 = vst [vmem:[%s172 + $0x64] sm:$0xf] %v798
      %863 = vst [vmem:[%s172 + $0x68] sm:$0xf] %v799
      %864 = vst [vmem:[%s172 + $0x6c] sm:$0xf] %v800
      %865 = vst [vmem:[%s172 + $0x70] sm:$0xf] %v801
      %866 = vst [vmem:[%s172 + $0x74] sm:$0xf] %v802
      %867 = vst [vmem:[%s172 + $0x78] sm:$0xf] %v803
      %868 = vst [vmem:[%s172 + $0x7c] sm:$0xf] %v804
      %869 = vst [vmem:[%s172 + $0x80] sm:$0xf] %v805
      %870 = vst [vmem:[%s172 + $0x84] sm:$0xf] %v806
      %871 = vst [vmem:[%s172 + $0x88] sm:$0xf] %v807
      %872 = vst [vmem:[%s172 + $0x8c] sm:$0xf] %v808
      %873 = vst [vmem:[%s172 + $0x90] sm:$0xf] %v809
      %874 = vst [vmem:[%s172 + $0x94] sm:$0xf] %v810
      %875 = vst [vmem:[%s172 + $0x98] sm:$0xf] %v811
      %876 = vst [vmem:[%s172 + $0x9c] sm:$0xf] %v812
      %877 = vst [vmem:[%s172 + $0xa0] sm:$0xf] %v813
      %878 = vst [vmem:[%s172 + $0xa4] sm:$0xf] %v814
      %879 = vst [vmem:[%s172 + $0xa8] sm:$0xf] %v815
      %880 = vst [vmem:[%s172 + $0xac] sm:$0xf] %v816
      %881 = vst [vmem:[%s172 + $0xb0] sm:$0xf] %v817
      %882 = vst [vmem:[%s172 + $0xb4] sm:$0xf] %v818
      %883 = vst [vmem:[%s172 + $0xb8] sm:$0xf] %v819
      %884 = vst [vmem:[%s172 + $0xbc] sm:$0xf] %v820
      %885 = vst [vmem:[%s172 + $0xc0] sm:$0xf] %v821
      %886 = vst [vmem:[%s172 + $0xc4] sm:$0xf] %v822
      %887 = vst [vmem:[%s172 + $0xc8] sm:$0xf] %v823
      %888 = vst [vmem:[%s172 + $0xcc] sm:$0xf] %v824
      %889 = vst [vmem:[%s172 + $0xd0] sm:$0xf] %v825
      %890 = vst [vmem:[%s172 + $0xd4] sm:$0xf] %v826
      %891 = vst [vmem:[%s172 + $0xd8] sm:$0xf] %v827
      %892 = vst [vmem:[%s172 + $0xdc] sm:$0xf] %v828
      %893 = vst [vmem:[%s172 + $0xe0] sm:$0xf] %v829
      %894 = vst [vmem:[%s172 + $0xe4] sm:$0xf] %v830
      %895 = vst [vmem:[%s172 + $0xe8] sm:$0xf] %v831
      %896 = vst [vmem:[%s172 + $0xec] sm:$0xf] %v832
      %897 = vst [vmem:[%s172 + $0xf0] sm:$0xf] %v833
      %898 = vst [vmem:[%s172 + $0xf4] sm:$0xf] %v834
      %899 = vst [vmem:[%s172 + $0xf8] sm:$0xf] %v835
      %900 = vst [vmem:[%s172 + $0xfc] sm:$0xf] %v836
      %s901 = smul.u32 64, %s14
      %p902 = scmp.lt.s32.totalorder %s901, 255
      %s903 = scalar_select %p902, %s901, 255
      %s904 = smul.addr %s903, 4
      %s905 = scalar_lea.vmem %s3, %s904
      // Predicated region
      $region33: #{dimpnet_forward.4} parent=31 // pred_check
        %p906 = pneg %p100
      $region34: #{dimpnet_forward.4} parent=31 // pred_check_branch
        %908 = sbr.rel (%p906) target = $region36
      $region35: #{dimpnet_forward.4} parent=31 // pred_region
        %s909 = smul.u32 64, %s14
      $region36: #{dimpnet_forward.4} parent=31 // pred_fallthru
        _
    $region32: #{dimpnet_forward.4} parent=5 // pred_fallthru
      _
    %p910 = scmp.le.s32.totalorder 2, %s9
    // Predicated region
    $region37: #{dimpnet_forward.4} parent=5 // pred_check
      %p911 = pneg %p910
    $region38: #{dimpnet_forward.4} parent=5 // pred_check_branch
      %913 = sbr.rel (%p911) target = $region40
    $region39: #{dimpnet_forward.4} parent=5 // pred_region
      %s914 = ssub.s32 %s9, 2
      // Predicated region
      $region41: #{dimpnet_forward.4} parent=39 // pred_check
        %p915 = pneg %p106
      $region42: #{dimpnet_forward.4} parent=39 // pred_check_branch
        %917 = sbr.rel (%p915) target = $region44
      $region43: #{dimpnet_forward.4} parent=39 // pred_region
        %s918 = smul.u32 64, %s15
        %p919 = scmp.lt.s32.totalorder %s918, 255
        %s920 = scalar_select %p919, %s918, 255
        %s921 = smul.addr %s920, 4
        %s922 = scalar_lea.vmem %s3, %s921
      $region44: #{dimpnet_forward.4} parent=39 // pred_fallthru
        _
    $region40: #{dimpnet_forward.4} parent=5 // pred_fallthru
      _
  $region6: #{dimpnet_forward.4} parent=0 // loop_footer
    %s13 = sadd.s32 1, %s9
  $region7: #{dimpnet_forward.4} parent=0 // loop_footer_branch
    %8 = sbr.rel target = $region3
  $region8: #{dimpnet_forward.4} parent=0 // loop_exit
    _

// kernel: dimpnet_forward.5
$region0: #{dimpnet_forward.5}
  #allocation0 [shape = 'u32[]', space=smem, size = 0x4, offset = 0x4, fixed_abs, tag = 'smem constant byte address 0x4 - core index']
  #allocation1 [shape = 'u32[72,128]{1,0:T(1,128)}', space=vmem, size = 0x9000, scoped, tag = 'internal scratch']
  %s0 = inlined_call_operand.vmem [shape: bf16[512,1152], index: 0, kind: input, shape index: {}]
  %s1 = inlined_call_operand.vmem [shape: bf16[1152,128], index: 1, kind: input, shape index: {}]
  %s2 = inlined_call_operand.vmem [shape: f32[1,128], index: 2, kind: input, shape index: {}]
  %s3 = inlined_call_operand.vmem [shape: bf16[512,128], index: 3, kind: output, shape index: {}]
  %s4 = sld [smem:[#allocation0]]
  $region45: #{dimpnet_forward.5} parent=0
    _
  %s6 = ssub.s32 1, %s4
  %s7 = scalar_select 0, %s6, %s4
  loop: start=0, step=1, limit=6
  $region2: #{dimpnet_forward.5} parent=0 // loop_pre_header
    _
  $region3: #{dimpnet_forward.5} parent=0 // loop_header
    %s9 = sphi 0, %s13
    %p10 = scmp.ge.s32.totalorder %s9, 6
    %s19 = sphi 0, %s21
    %s22 = sphi 0, %s19
    %s23 = sphi 0, %s22
    %s39 = sphi 0, %s23
    %s43 = sphi 0, %s43
    %s45 = sphi 0, %s43
    %s46 = sphi 0, %s45
    %s60 = sphi 0, %s46
    %s64 = sphi 0, %s64
    %s66 = sphi 0, %s64
    %s67 = sphi 0, %s66
    %s81 = sphi 0, %s67
    %s87 = sphi 0, %s89
    %s90 = sphi 0, %s87
    %s91 = sphi 0, %s90
    %s107 = sphi 0, %s91
  $region4: #{dimpnet_forward.5} parent=0 // loop_header_branch
    %12 = sbr.rel (%p10) target = $region8
  $region5: #{dimpnet_forward.5} parent=0 // loop_body
    %s14 = ssub.s32 %s9, 1
    %s15 = ssub.s32 %s9, 2
    %s16 = sadd.s32 %s9, 1
    %s17 = ssub.s32 %s9, %s16
    %p18 = scmp.eq.s32.totalorder %s17, 0
    %s20 = sadd.s32 %s19, 1
    %s21 = scalar_select %p18, %s19, %s20
    %p24 = pneg %p18
    %p25 = scmp.eq.s32.totalorder %s9, 3
    %p26 = por %p24, %p25
    %p27 = scmp.ne.s32.totalorder %s19, %s22
    %p28 = scmp.eq.s32.totalorder %s9, 0
    %p29 = por %p27, %p28
    %p30 = scmp.ne.s32.totalorder %s19, %s22
    %p31 = scmp.eq.s32.totalorder %s14, 3
    %p32 = por %p30, %p31
    %p33 = scmp.ne.s32.totalorder %s22, %s23
    %p34 = scmp.eq.s32.totalorder %s14, 0
    %p35 = por %p33, %p34
    %p36 = scmp.ne.s32.totalorder %s22, %s23
    %p37 = scmp.eq.s32.totalorder %s15, 3
    %p38 = por %p36, %p37
    %p40 = scmp.ne.s32.totalorder %s23, %s39
    %p41 = scmp.eq.s32.totalorder %s15, 0
    %p42 = por %p40, %p41
    %s44 = sadd.s32 %s43, 1
    %p47 = scmp.eq.s32.totalorder %s9, 3
    %p48 = scmp.ne.s32.totalorder %s43, %s45
    %p49 = scmp.eq.s32.totalorder %s9, 0
    %p50 = por %p48, %p49
    %p51 = scmp.ne.s32.totalorder %s43, %s45
    %p52 = scmp.eq.s32.totalorder %s14, 3
    %p53 = por %p51, %p52
    %p54 = scmp.ne.s32.totalorder %s45, %s46
    %p55 = scmp.eq.s32.totalorder %s14, 0
    %p56 = por %p54, %p55
    %p57 = scmp.ne.s32.totalorder %s45, %s46
    %p58 = scmp.eq.s32.totalorder %s15, 3
    %p59 = por %p57, %p58
    %p61 = scmp.ne.s32.totalorder %s46, %s60
    %p62 = scmp.eq.s32.totalorder %s15, 0
    %p63 = por %p61, %p62
    %s65 = sadd.s32 %s64, 1
    %p68 = scmp.eq.s32.totalorder %s9, 3
    %p69 = scmp.ne.s32.totalorder %s64, %s66
    %p70 = scmp.eq.s32.totalorder %s9, 0
    %p71 = por %p69, %p70
    %p72 = scmp.ne.s32.totalorder %s64, %s66
    %p73 = scmp.eq.s32.totalorder %s14, 3
    %p74 = por %p72, %p73
    %p75 = scmp.ne.s32.totalorder %s66, %s67
    %p76 = scmp.eq.s32.totalorder %s14, 0
    %p77 = por %p75, %p76
    %p78 = scmp.ne.s32.totalorder %s66, %s67
    %p79 = scmp.eq.s32.totalorder %s15, 3
    %p80 = por %p78, %p79
    %p82 = scmp.ne.s32.totalorder %s67, %s81
    %p83 = scmp.eq.s32.totalorder %s15, 0
    %p84 = por %p82, %p83
    %s85 = ssub.s32 %s9, %s16
    %p86 = scmp.eq.s32.totalorder %s85, 0
    %s88 = sadd.s32 %s87, 1
    %s89 = scalar_select %p86, %s87, %s88
    %p92 = pneg %p86
    %p93 = scmp.eq.s32.totalorder %s9, 3
    %p94 = por %p92, %p93
    %p95 = scmp.ne.s32.totalorder %s87, %s90
    %p96 = scmp.eq.s32.totalorder %s9, 0
    %p97 = por %p95, %p96
    %p98 = scmp.ne.s32.totalorder %s87, %s90
    %p99 = scmp.eq.s32.totalorder %s14, 3
    %p100 = por %p98, %p99
    %p101 = scmp.ne.s32.totalorder %s90, %s91
    %p102 = scmp.eq.s32.totalorder %s14, 0
    %p103 = por %p101, %p102
    %p104 = scmp.ne.s32.totalorder %s90, %s91
    %p105 = scmp.eq.s32.totalorder %s15, 3
    %p106 = por %p104, %p105
    %p108 = scmp.ne.s32.totalorder %s91, %s107
    %p109 = scmp.eq.s32.totalorder %s15, 0
    %p110 = por %p108, %p109
    %p111 = scmp.le.s32.totalorder 1, %s9
    %p112 = scmp.lt.s32.totalorder %s9, 5
    %p113 = pnand %p111, %p112
    %p114 = pneg %p113
    // Predicated region
    $region9: #{dimpnet_forward.5} parent=5 // pred_check
      _
    $region10: #{dimpnet_forward.5} parent=5 // pred_check_branch
      %116 = sbr.rel (%p113) target = $region12
    $region11: #{dimpnet_forward.5} parent=5 // pred_region
      %s117 = ssub.s32 %s9, 1
      // Predicated region
      $region13: #{dimpnet_forward.5} parent=11 // pred_check
        %p118 = pneg %p56
      $region14: #{dimpnet_forward.5} parent=11 // pred_check_branch
        %120 = sbr.rel (%p118) target = $region16
      $region15: #{dimpnet_forward.5} parent=11 // pred_region
        _
      $region16: #{dimpnet_forward.5} parent=11 // pred_fallthru
        _
      // Predicated region
      $region17: #{dimpnet_forward.5} parent=11 // pred_check
        %p121 = pneg %p77
      $region18: #{dimpnet_forward.5} parent=11 // pred_check_branch
        %123 = sbr.rel (%p121) target = $region20
      $region19: #{dimpnet_forward.5} parent=11 // pred_region
        _
      $region20: #{dimpnet_forward.5} parent=11 // pred_fallthru
        _
    $region12: #{dimpnet_forward.5} parent=5 // pred_fallthru
      _
    %p124 = scmp.lt.s32.totalorder %s9, 4
    // Predicated region
    $region21: #{dimpnet_forward.5} parent=5 // pred_check
      %p125 = pneg %p124
    $region22: #{dimpnet_forward.5} parent=5 // pred_check_branch
      %127 = sbr.rel (%p125) target = $region24
    $region23: #{dimpnet_forward.5} parent=5 // pred_region
      // Predicated region
      $region25: #{dimpnet_forward.5} parent=23 // pred_check
        %p128 = pneg %p29
      $region26: #{dimpnet_forward.5} parent=23 // pred_check_branch
        %130 = sbr.rel (%p128) target = $region28
      $region27: #{dimpnet_forward.5} parent=23 // pred_region
        %s131 = smul.u32 16, %s9
        %p132 = scmp.lt.s32.totalorder %s131, 63
        %s133 = scalar_select %p132, %s131, 63
        %s134 = smul.addr %s133, 9
        %s135 = smul.addr %s134, 4
        %s136 = scalar_lea.vmem %s0, %s135
        %s137 = smul.u32 16, %s9
      $region28: #{dimpnet_forward.5} parent=23 // pred_fallthru
        _
    $region24: #{dimpnet_forward.5} parent=5 // pred_fallthru
      _
    %p138 = scmp.le.s32.totalorder 1, %s9
    %p139 = scmp.lt.s32.totalorder %s9, 5
    %p140 = pnand %p138, %p139
    %p141 = pneg %p140
    // Predicated region
    $region29: #{dimpnet_forward.5} parent=5 // pred_check
      _
    $region30: #{dimpnet_forward.5} parent=5 // pred_check_branch
      %143 = sbr.rel (%p140) target = $region32
    $region31: #{dimpnet_forward.5} parent=5 // pred_region
      %s144 = ssub.s32 %s9, 1
      %s145 = smul.u32 16, %s14
      %p146 = scmp.lt.s32.totalorder %s145, 63
      %s147 = scalar_select %p146, %s145, 63
      %s148 = smul.addr %s147, 9
      %s149 = smul.addr %s148, 4
      %s150 = scalar_lea.vmem %s0, %s149
      %p151 = pneg %p35
      %p152 = pneg %p32
      %p153 = pneg %p56
      %p154 = pneg %p53
      %p155 = pneg %p77
      %p156 = pneg %p74
      %p157 = pneg %p103
      %p158 = pneg %p100
      %s159 = smul.u32 16, %s14
      %p160 = scmp.lt.s32.totalorder %s159, 63
      %s161 = scalar_select %p160, %s159, 63
      %s162 = smul.addr %s161, 4
      %s163 = scalar_lea.vmem %s3, %s162
      %s164 = smul.u32 16, %s14
      %p165 = scmp.lt.s32.totalorder %s164, 63
      %s166 = scalar_select %p165, %s164, 63
      %s167 = smul.addr %s166, 9
      %s168 = smul.addr %s167, 4
      %s169 = scalar_lea.vmem %s0, %s168
      %s170 = smul.u32 16, %s14
      %s171 = smul.u32 16, %s14
      %p172 = scmp.lt.s32.totalorder %s171, 63
      %s173 = scalar_select %p172, %s171, 63
      %s174 = smul.addr %s173, 4
      %s175 = scalar_lea.vmem %s3, %s174
      %s176 = smul.u32 16, %s14
      %v177 = vld [vmem:[%s169] sm:$0xff]
      %v178 = vld [vmem:[%s169 + $0x8] sm:$0xff]
      %v179 = vld [vmem:[%s169 + $0x10] sm:$0xff]
      %v180 = vld [vmem:[%s169 + $0x18] sm:$0xff]
      %v181 = vld [vmem:[%s169 + $0x20] sm:$0xf]
      %v182 = vld [vmem:[%s169 + $0x24] sm:$0xff]
      %v183 = vld [vmem:[%s169 + $0x2c] sm:$0xff]
      %v184 = vld [vmem:[%s169 + $0x34] sm:$0xff]
      %v185 = vld [vmem:[%s169 + $0x3c] sm:$0xff]
      %v186 = vld [vmem:[%s169 + $0x44] sm:$0xf]
      %v187 = vld [vmem:[%s169 + $0x48] sm:$0xff]
      %v188 = vld [vmem:[%s169 + $0x50] sm:$0xff]
      %v189 = vld [vmem:[%s169 + $0x58] sm:$0xff]
      %v190 = vld [vmem:[%s169 + $0x60] sm:$0xff]
      %v191 = vld [vmem:[%s169 + $0x68] sm:$0xf]
      %v192 = vld [vmem:[%s169 + $0x6c] sm:$0xff]
      %v193 = vld [vmem:[%s169 + $0x74] sm:$0xff]
      %v194 = vld [vmem:[%s169 + $0x7c] sm:$0xff]
      %v195 = vld [vmem:[%s169 + $0x84] sm:$0xff]
      %v196 = vld [vmem:[%s169 + $0x8c] sm:$0xf]
      %v197 = vld [vmem:[%s169 + $0x90] sm:$0xff]
      %v198 = vld [vmem:[%s169 + $0x98] sm:$0xff]
      %v199 = vld [vmem:[%s169 + $0xa0] sm:$0xff]
      %v200 = vld [vmem:[%s169 + $0xa8] sm:$0xff]
      %v201 = vld [vmem:[%s169 + $0xb0] sm:$0xf]
      %v202 = vld [vmem:[%s169 + $0xb4] sm:$0xff]
      %v203 = vld [vmem:[%s169 + $0xbc] sm:$0xff]
      %v204 = vld [vmem:[%s169 + $0xc4] sm:$0xff]
      %v205 = vld [vmem:[%s169 + $0xcc] sm:$0xff]
      %v206 = vld [vmem:[%s169 + $0xd4] sm:$0xf]
      %v207 = vld [vmem:[%s169 + $0xd8] sm:$0xff]
      %v208 = vld [vmem:[%s169 + $0xe0] sm:$0xff]
      %v209 = vld [vmem:[%s169 + $0xe8] sm:$0xff]
      %v210 = vld [vmem:[%s169 + $0xf0] sm:$0xff]
      %v211 = vld [vmem:[%s169 + $0xf8] sm:$0xf]
      %v212 = vld [vmem:[%s169 + $0xfc] sm:$0xff]
      %v213 = vld [vmem:[%s169 + $0x104] sm:$0xff]
      %v214 = vld [vmem:[%s169 + $0x10c] sm:$0xff]
      %v215 = vld [vmem:[%s169 + $0x114] sm:$0xff]
      %v216 = vld [vmem:[%s169 + $0x11c] sm:$0xf]
      %v217 = vld [vmem:[%s169 + $0x120] sm:$0xff]
      %v218 = vld [vmem:[%s169 + $0x128] sm:$0xff]
      %v219 = vld [vmem:[%s169 + $0x130] sm:$0xff]
      %v220 = vld [vmem:[%s169 + $0x138] sm:$0xff]
      %v221 = vld [vmem:[%s169 + $0x140] sm:$0xf]
      %v222 = vld [vmem:[%s169 + $0x144] sm:$0xff]
      %v223 = vld [vmem:[%s169 + $0x14c] sm:$0xff]
      %v224 = vld [vmem:[%s169 + $0x154] sm:$0xff]
      %v225 = vld [vmem:[%s169 + $0x15c] sm:$0xff]
      %v226 = vld [vmem:[%s169 + $0x164] sm:$0xf]
      %v227 = vld [vmem:[%s169 + $0x168] sm:$0xff]
      %v228 = vld [vmem:[%s169 + $0x170] sm:$0xff]
      %v229 = vld [vmem:[%s169 + $0x178] sm:$0xff]
      %v230 = vld [vmem:[%s169 + $0x180] sm:$0xff]
      %v231 = vld [vmem:[%s169 + $0x188] sm:$0xf]
      %v232 = vld [vmem:[%s169 + $0x18c] sm:$0xff]
      %v233 = vld [vmem:[%s169 + $0x194] sm:$0xff]
      %v234 = vld [vmem:[%s169 + $0x19c] sm:$0xff]
      %v235 = vld [vmem:[%s169 + $0x1a4] sm:$0xff]
      %v236 = vld [vmem:[%s169 + $0x1ac] sm:$0xf]
      %v237 = vld [vmem:[%s169 + $0x1b0] sm:$0xff]
      %v238 = vld [vmem:[%s169 + $0x1b8] sm:$0xff]
      %v239 = vld [vmem:[%s169 + $0x1c0] sm:$0xff]
      %v240 = vld [vmem:[%s169 + $0x1c8] sm:$0xff]
      %v241 = vld [vmem:[%s169 + $0x1d0] sm:$0xf]
      %v242 = vld [vmem:[%s169 + $0x1d4] sm:$0xff]
      %v243 = vld [vmem:[%s169 + $0x1dc] sm:$0xff]
      %v244 = vld [vmem:[%s169 + $0x1e4] sm:$0xff]
      %v245 = vld [vmem:[%s169 + $0x1ec] sm:$0xff]
      %v246 = vld [vmem:[%s169 + $0x1f4] sm:$0xf]
      %v247 = vld [vmem:[%s169 + $0x1f8] sm:$0xff]
      %v248 = vld [vmem:[%s169 + $0x200] sm:$0xff]
      %v249 = vld [vmem:[%s169 + $0x208] sm:$0xff]
      %v250 = vld [vmem:[%s169 + $0x210] sm:$0xff]
      %v251 = vld [vmem:[%s169 + $0x218] sm:$0xf]
      %v252 = vld [vmem:[%s169 + $0x21c] sm:$0xff]
      %v253 = vld [vmem:[%s169 + $0x224] sm:$0xff]
      %v254 = vld [vmem:[%s169 + $0x22c] sm:$0xff]
      %v255 = vld [vmem:[%s169 + $0x234] sm:$0xff]
      %v256 = vld [vmem:[%s169 + $0x23c] sm:$0xf]
      %v257 = vld [vmem:[%s1] sm:$0xf]
      %v258 = vld [vmem:[%s1 + $0x4] sm:$0xf]
      %v259 = vld [vmem:[%s1 + $0x8] sm:$0xf]
      %v260 = vld [vmem:[%s1 + $0xc] sm:$0xf]
      %v261 = vld [vmem:[%s1 + $0x10] sm:$0xf]
      %v262 = vld [vmem:[%s1 + $0x14] sm:$0xf]
      %v263 = vld [vmem:[%s1 + $0x18] sm:$0xf]
      %v264 = vld [vmem:[%s1 + $0x1c] sm:$0xf]
      %v265 = vld [vmem:[%s1 + $0x20] sm:$0xf]
      %v266 = vld [vmem:[%s1 + $0x24] sm:$0xf]
      %v267 = vld [vmem:[%s1 + $0x28] sm:$0xf]
      %v268 = vld [vmem:[%s1 + $0x2c] sm:$0xf]
      %v269 = vld [vmem:[%s1 + $0x30] sm:$0xf]
      %v270 = vld [vmem:[%s1 + $0x34] sm:$0xf]
      %v271 = vld [vmem:[%s1 + $0x38] sm:$0xf]
      %v272 = vld [vmem:[%s1 + $0x3c] sm:$0xf]
      %v273 = vld [vmem:[%s1 + $0x40] sm:$0xf]
      %v274 = vld [vmem:[%s1 + $0x44] sm:$0xf]
      %v275 = vld [vmem:[%s1 + $0x48] sm:$0xf]
      %v276 = vld [vmem:[%s1 + $0x4c] sm:$0xf]
      %v277 = vld [vmem:[%s1 + $0x50] sm:$0xf]
      %v278 = vld [vmem:[%s1 + $0x54] sm:$0xf]
      %v279 = vld [vmem:[%s1 + $0x58] sm:$0xf]
      %v280 = vld [vmem:[%s1 + $0x5c] sm:$0xf]
      %v281 = vld [vmem:[%s1 + $0x60] sm:$0xf]
      %v282 = vld [vmem:[%s1 + $0x64] sm:$0xf]
      %v283 = vld [vmem:[%s1 + $0x68] sm:$0xf]
      %v284 = vld [vmem:[%s1 + $0x6c] sm:$0xf]
      %v285 = vld [vmem:[%s1 + $0x70] sm:$0xf]
      %v286 = vld [vmem:[%s1 + $0x74] sm:$0xf]
      %v287 = vld [vmem:[%s1 + $0x78] sm:$0xf]
      %v288 = vld [vmem:[%s1 + $0x7c] sm:$0xf]
      %v289 = vld [vmem:[%s1 + $0x80] sm:$0xf]
      %v290 = vld [vmem:[%s1 + $0x84] sm:$0xf]
      %v291 = vld [vmem:[%s1 + $0x88] sm:$0xf]
      %v292 = vld [vmem:[%s1 + $0x8c] sm:$0xf]
      %v293 = vld [vmem:[%s1 + $0x90] sm:$0xf]
      %v294 = vld [vmem:[%s1 + $0x94] sm:$0xf]
      %v295 = vld [vmem:[%s1 + $0x98] sm:$0xf]
      %v296 = vld [vmem:[%s1 + $0x9c] sm:$0xf]
      %v297 = vld [vmem:[%s1 + $0xa0] sm:$0xf]
      %v298 = vld [vmem:[%s1 + $0xa4] sm:$0xf]
      %v299 = vld [vmem:[%s1 + $0xa8] sm:$0xf]
      %v300 = vld [vmem:[%s1 + $0xac] sm:$0xf]
      %v301 = vld [vmem:[%s1 + $0xb0] sm:$0xf]
      %v302 = vld [vmem:[%s1 + $0xb4] sm:$0xf]
      %v303 = vld [vmem:[%s1 + $0xb8] sm:$0xf]
      %v304 = vld [vmem:[%s1 + $0xbc] sm:$0xf]
      %v305 = vld [vmem:[%s1 + $0xc0] sm:$0xf]
      %v306 = vld [vmem:[%s1 + $0xc4] sm:$0xf]
      %v307 = vld [vmem:[%s1 + $0xc8] sm:$0xf]
      %v308 = vld [vmem:[%s1 + $0xcc] sm:$0xf]
      %v309 = vld [vmem:[%s1 + $0xd0] sm:$0xf]
      %v310 = vld [vmem:[%s1 + $0xd4] sm:$0xf]
      %v311 = vld [vmem:[%s1 + $0xd8] sm:$0xf]
      %v312 = vld [vmem:[%s1 + $0xdc] sm:$0xf]
      %v313 = vld [vmem:[%s1 + $0xe0] sm:$0xf]
      %v314 = vld [vmem:[%s1 + $0xe4] sm:$0xf]
      %v315 = vld [vmem:[%s1 + $0xe8] sm:$0xf]
      %v316 = vld [vmem:[%s1 + $0xec] sm:$0xf]
      %v317 = vld [vmem:[%s1 + $0xf0] sm:$0xf]
      %v318 = vld [vmem:[%s1 + $0xf4] sm:$0xf]
      %v319 = vld [vmem:[%s1 + $0xf8] sm:$0xf]
      %v320 = vld [vmem:[%s1 + $0xfc] sm:$0xf]
      %v321 = vld [vmem:[%s1 + $0x100] sm:$0xf]
      %v322 = vld [vmem:[%s1 + $0x104] sm:$0xf]
      %v323 = vld [vmem:[%s1 + $0x108] sm:$0xf]
      %v324 = vld [vmem:[%s1 + $0x10c] sm:$0xf]
      %v325 = vld [vmem:[%s1 + $0x110] sm:$0xf]
      %v326 = vld [vmem:[%s1 + $0x114] sm:$0xf]
      %v327 = vld [vmem:[%s1 + $0x118] sm:$0xf]
      %v328 = vld [vmem:[%s1 + $0x11c] sm:$0xf]
      %v329 = vld [vmem:[%s1 + $0x120] sm:$0xf]
      %v330 = vld [vmem:[%s1 + $0x124] sm:$0xf]
      %v331 = vld [vmem:[%s1 + $0x128] sm:$0xf]
      %v332 = vld [vmem:[%s1 + $0x12c] sm:$0xf]
      %v333 = vld [vmem:[%s1 + $0x130] sm:$0xf]
      %v334 = vld [vmem:[%s1 + $0x134] sm:$0xf]
      %v335 = vld [vmem:[%s1 + $0x138] sm:$0xf]
      %v336 = vld [vmem:[%s1 + $0x13c] sm:$0xf]
      %v337 = vld [vmem:[%s1 + $0x140] sm:$0xf]
      %v338 = vld [vmem:[%s1 + $0x144] sm:$0xf]
      %v339 = vld [vmem:[%s1 + $0x148] sm:$0xf]
      %v340 = vld [vmem:[%s1 + $0x14c] sm:$0xf]
      %v341 = vld [vmem:[%s1 + $0x150] sm:$0xf]
      %v342 = vld [vmem:[%s1 + $0x154] sm:$0xf]
      %v343 = vld [vmem:[%s1 + $0x158] sm:$0xf]
      %v344 = vld [vmem:[%s1 + $0x15c] sm:$0xf]
      %v345 = vld [vmem:[%s1 + $0x160] sm:$0xf]
      %v346 = vld [vmem:[%s1 + $0x164] sm:$0xf]
      %v347 = vld [vmem:[%s1 + $0x168] sm:$0xf]
      %v348 = vld [vmem:[%s1 + $0x16c] sm:$0xf]
      %v349 = vld [vmem:[%s1 + $0x170] sm:$0xf]
      %v350 = vld [vmem:[%s1 + $0x174] sm:$0xf]
      %v351 = vld [vmem:[%s1 + $0x178] sm:$0xf]
      %v352 = vld [vmem:[%s1 + $0x17c] sm:$0xf]
      %v353 = vld [vmem:[%s1 + $0x180] sm:$0xf]
      %v354 = vld [vmem:[%s1 + $0x184] sm:$0xf]
      %v355 = vld [vmem:[%s1 + $0x188] sm:$0xf]
      %v356 = vld [vmem:[%s1 + $0x18c] sm:$0xf]
      %v357 = vld [vmem:[%s1 + $0x190] sm:$0xf]
      %v358 = vld [vmem:[%s1 + $0x194] sm:$0xf]
      %v359 = vld [vmem:[%s1 + $0x198] sm:$0xf]
      %v360 = vld [vmem:[%s1 + $0x19c] sm:$0xf]
      %v361 = vld [vmem:[%s1 + $0x1a0] sm:$0xf]
      %v362 = vld [vmem:[%s1 + $0x1a4] sm:$0xf]
      %v363 = vld [vmem:[%s1 + $0x1a8] sm:$0xf]
      %v364 = vld [vmem:[%s1 + $0x1ac] sm:$0xf]
      %v365 = vld [vmem:[%s1 + $0x1b0] sm:$0xf]
      %v366 = vld [vmem:[%s1 + $0x1b4] sm:$0xf]
      %v367 = vld [vmem:[%s1 + $0x1b8] sm:$0xf]
      %v368 = vld [vmem:[%s1 + $0x1bc] sm:$0xf]
      %v369 = vld [vmem:[%s1 + $0x1c0] sm:$0xf]
      %v370 = vld [vmem:[%s1 + $0x1c4] sm:$0xf]
      %v371 = vld [vmem:[%s1 + $0x1c8] sm:$0xf]
      %v372 = vld [vmem:[%s1 + $0x1cc] sm:$0xf]
      %v373 = vld [vmem:[%s1 + $0x1d0] sm:$0xf]
      %v374 = vld [vmem:[%s1 + $0x1d4] sm:$0xf]
      %v375 = vld [vmem:[%s1 + $0x1d8] sm:$0xf]
      %v376 = vld [vmem:[%s1 + $0x1dc] sm:$0xf]
      %v377 = vld [vmem:[%s1 + $0x1e0] sm:$0xf]
      %v378 = vld [vmem:[%s1 + $0x1e4] sm:$0xf]
      %v379 = vld [vmem:[%s1 + $0x1e8] sm:$0xf]
      %v380 = vld [vmem:[%s1 + $0x1ec] sm:$0xf]
      %v381 = vld [vmem:[%s1 + $0x1f0] sm:$0xf]
      %v382 = vld [vmem:[%s1 + $0x1f4] sm:$0xf]
      %v383 = vld [vmem:[%s1 + $0x1f8] sm:$0xf]
      %v384 = vld [vmem:[%s1 + $0x1fc] sm:$0xf]
      %v385 = vld [vmem:[%s1 + $0x200] sm:$0xf]
      %v386 = vld [vmem:[%s1 + $0x204] sm:$0xf]
      %v387 = vld [vmem:[%s1 + $0x208] sm:$0xf]
      %v388 = vld [vmem:[%s1 + $0x20c] sm:$0xf]
      %v389 = vld [vmem:[%s1 + $0x210] sm:$0xf]
      %v390 = vld [vmem:[%s1 + $0x214] sm:$0xf]
      %v391 = vld [vmem:[%s1 + $0x218] sm:$0xf]
      %v392 = vld [vmem:[%s1 + $0x21c] sm:$0xf]
      %v393 = vld [vmem:[%s1 + $0x220] sm:$0xf]
      %v394 = vld [vmem:[%s1 + $0x224] sm:$0xf]
      %v395 = vld [vmem:[%s1 + $0x228] sm:$0xf]
      %v396 = vld [vmem:[%s1 + $0x22c] sm:$0xf]
      %v397 = vld [vmem:[%s1 + $0x230] sm:$0xf]
      %v398 = vld [vmem:[%s1 + $0x234] sm:$0xf]
      %v399 = vld [vmem:[%s1 + $0x238] sm:$0xf]
      %v400 = vld [vmem:[%s1 + $0x23c] sm:$0xf]
      %v401 = vld [vmem:[%s2] sm:$0x1]
      %v403 = vperm.slane %v401, 0
      %v485 = vunpack.c.l.b16 %v177
      %v486 = vunpack.c.h.b16 %v177
      %v487 = vunpack.c.l.b16 %v178
      %v488 = vunpack.c.h.b16 %v178
      %v489 = vunpack.c.l.b16 %v179
      %v490 = vunpack.c.h.b16 %v179
      %v491 = vunpack.c.l.b16 %v180
      %v492 = vunpack.c.h.b16 %v180
      %v493 = vunpack.c.l.b16 %v181
      %v494 = vunpack.c.l.b16 %v182
      %v495 = vunpack.c.h.b16 %v182
      %v496 = vunpack.c.l.b16 %v183
      %v497 = vunpack.c.h.b16 %v183
      %v498 = vunpack.c.l.b16 %v184
      %v499 = vunpack.c.h.b16 %v184
      %v500 = vunpack.c.l.b16 %v185
      %v501 = vunpack.c.h.b16 %v185
      %v502 = vunpack.c.l.b16 %v186
      %v503 = vunpack.c.l.b16 %v187
      %v504 = vunpack.c.h.b16 %v187
      %v505 = vunpack.c.l.b16 %v188
      %v506 = vunpack.c.h.b16 %v188
      %v507 = vunpack.c.l.b16 %v189
      %v508 = vunpack.c.h.b16 %v189
      %v509 = vunpack.c.l.b16 %v190
      %v510 = vunpack.c.h.b16 %v190
      %v511 = vunpack.c.l.b16 %v191
      %v512 = vunpack.c.l.b16 %v192
      %v513 = vunpack.c.h.b16 %v192
      %v514 = vunpack.c.l.b16 %v193
      %v515 = vunpack.c.h.b16 %v193
      %v516 = vunpack.c.l.b16 %v194
      %v517 = vunpack.c.h.b16 %v194
      %v518 = vunpack.c.l.b16 %v195
      %v519 = vunpack.c.h.b16 %v195
      %v520 = vunpack.c.l.b16 %v196
      %v521 = vunpack.c.l.b16 %v197
      %v522 = vunpack.c.h.b16 %v197
      %v523 = vunpack.c.l.b16 %v198
      %v524 = vunpack.c.h.b16 %v198
      %v525 = vunpack.c.l.b16 %v199
      %v526 = vunpack.c.h.b16 %v199
      %v527 = vunpack.c.l.b16 %v200
      %v528 = vunpack.c.h.b16 %v200
      %v529 = vunpack.c.l.b16 %v201
      %v530 = vunpack.c.l.b16 %v202
      %v531 = vunpack.c.h.b16 %v202
      %v532 = vunpack.c.l.b16 %v203
      %v533 = vunpack.c.h.b16 %v203
      %v534 = vunpack.c.l.b16 %v204
      %v535 = vunpack.c.h.b16 %v204
      %v536 = vunpack.c.l.b16 %v205
      %v537 = vunpack.c.h.b16 %v205
      %v538 = vunpack.c.l.b16 %v206
      %v539 = vunpack.c.l.b16 %v207
      %v540 = vunpack.c.h.b16 %v207
      %v541 = vunpack.c.l.b16 %v208
      %v542 = vunpack.c.h.b16 %v208
      %v543 = vunpack.c.l.b16 %v209
      %v544 = vunpack.c.h.b16 %v209
      %v545 = vunpack.c.l.b16 %v210
      %v546 = vunpack.c.h.b16 %v210
      %v547 = vunpack.c.l.b16 %v211
      %v548 = vunpack.c.l.b16 %v212
      %v549 = vunpack.c.h.b16 %v212
      %v550 = vunpack.c.l.b16 %v213
      %v551 = vunpack.c.h.b16 %v213
      %v552 = vunpack.c.l.b16 %v214
      %v553 = vunpack.c.h.b16 %v214
      %v554 = vunpack.c.l.b16 %v215
      %v555 = vunpack.c.h.b16 %v215
      %v556 = vunpack.c.l.b16 %v216
      %v557 = vunpack.c.l.b16 %v217
      %v558 = vunpack.c.h.b16 %v217
      %v559 = vunpack.c.l.b16 %v218
      %v560 = vunpack.c.h.b16 %v218
      %v561 = vunpack.c.l.b16 %v219
      %v562 = vunpack.c.h.b16 %v219
      %v563 = vunpack.c.l.b16 %v220
      %v564 = vunpack.c.h.b16 %v220
      %v565 = vunpack.c.l.b16 %v221
      %v566 = vunpack.c.l.b16 %v222
      %v567 = vunpack.c.h.b16 %v222
      %v568 = vunpack.c.l.b16 %v223
      %v569 = vunpack.c.h.b16 %v223
      %v570 = vunpack.c.l.b16 %v224
      %v571 = vunpack.c.h.b16 %v224
      %v572 = vunpack.c.l.b16 %v225
      %v573 = vunpack.c.h.b16 %v225
      %v574 = vunpack.c.l.b16 %v226
      %v575 = vunpack.c.l.b16 %v227
      %v576 = vunpack.c.h.b16 %v227
      %v577 = vunpack.c.l.b16 %v228
      %v578 = vunpack.c.h.b16 %v228
      %v579 = vunpack.c.l.b16 %v229
      %v580 = vunpack.c.h.b16 %v229
      %v581 = vunpack.c.l.b16 %v230
      %v582 = vunpack.c.h.b16 %v230
      %v583 = vunpack.c.l.b16 %v231
      %v584 = vunpack.c.l.b16 %v232
      %v585 = vunpack.c.h.b16 %v232
      %v586 = vunpack.c.l.b16 %v233
      %v587 = vunpack.c.h.b16 %v233
      %v588 = vunpack.c.l.b16 %v234
      %v589 = vunpack.c.h.b16 %v234
      %v590 = vunpack.c.l.b16 %v235
      %v591 = vunpack.c.h.b16 %v235
      %v592 = vunpack.c.l.b16 %v236
      %v593 = vunpack.c.l.b16 %v237
      %v594 = vunpack.c.h.b16 %v237
      %v595 = vunpack.c.l.b16 %v238
      %v596 = vunpack.c.h.b16 %v238
      %v597 = vunpack.c.l.b16 %v239
      %v598 = vunpack.c.h.b16 %v239
      %v599 = vunpack.c.l.b16 %v240
      %v600 = vunpack.c.h.b16 %v240
      %v601 = vunpack.c.l.b16 %v241
      %v602 = vunpack.c.l.b16 %v242
      %v603 = vunpack.c.h.b16 %v242
      %v604 = vunpack.c.l.b16 %v243
      %v605 = vunpack.c.h.b16 %v243
      %v606 = vunpack.c.l.b16 %v244
      %v607 = vunpack.c.h.b16 %v244
      %v608 = vunpack.c.l.b16 %v245
      %v609 = vunpack.c.h.b16 %v245
      %v610 = vunpack.c.l.b16 %v246
      %v611 = vunpack.c.l.b16 %v247
      %v612 = vunpack.c.h.b16 %v247
      %v613 = vunpack.c.l.b16 %v248
      %v614 = vunpack.c.h.b16 %v248
      %v615 = vunpack.c.l.b16 %v249
      %v616 = vunpack.c.h.b16 %v249
      %v617 = vunpack.c.l.b16 %v250
      %v618 = vunpack.c.h.b16 %v250
      %v619 = vunpack.c.l.b16 %v251
      %v620 = vunpack.c.l.b16 %v252
      %v621 = vunpack.c.h.b16 %v252
      %v622 = vunpack.c.l.b16 %v253
      %v623 = vunpack.c.h.b16 %v253
      %v624 = vunpack.c.l.b16 %v254
      %v625 = vunpack.c.h.b16 %v254
      %v626 = vunpack.c.l.b16 %v255
      %v627 = vunpack.c.h.b16 %v255
      %v628 = vunpack.c.l.b16 %v256
      %v629 = vpack.c.b16 %v494, %v485
      %v630 = vpack.c.b16 %v495, %v486
      %v631 = vpack.c.b16 %v496, %v487
      %v632 = vpack.c.b16 %v497, %v488
      %v633 = vpack.c.b16 %v498, %v489
      %v634 = vpack.c.b16 %v499, %v490
      %v635 = vpack.c.b16 %v500, %v491
      %v636 = vpack.c.b16 %v501, %v492
      %v637 = vpack.c.b16 %v502, %v493
      %v638 = vpack.c.b16 %v512, %v503
      %v639 = vpack.c.b16 %v513, %v504
      %v640 = vpack.c.b16 %v514, %v505
      %v641 = vpack.c.b16 %v515, %v506
      %v642 = vpack.c.b16 %v516, %v507
      %v643 = vpack.c.b16 %v517, %v508
      %v644 = vpack.c.b16 %v518, %v509
      %v645 = vpack.c.b16 %v519, %v510
      %v646 = vpack.c.b16 %v520, %v511
      %v647 = vpack.c.b16 %v530, %v521
      %v648 = vpack.c.b16 %v531, %v522
      %v649 = vpack.c.b16 %v532, %v523
      %v650 = vpack.c.b16 %v533, %v524
      %v651 = vpack.c.b16 %v534, %v525
      %v652 = vpack.c.b16 %v535, %v526
      %v653 = vpack.c.b16 %v536, %v527
      %v654 = vpack.c.b16 %v537, %v528
      %v655 = vpack.c.b16 %v538, %v529
      %v656 = vpack.c.b16 %v548, %v539
      %v657 = vpack.c.b16 %v549, %v540
      %v658 = vpack.c.b16 %v550, %v541
      %v659 = vpack.c.b16 %v551, %v542
      %v660 = vpack.c.b16 %v552, %v543
      %v661 = vpack.c.b16 %v553, %v544
      %v662 = vpack.c.b16 %v554, %v545
      %v663 = vpack.c.b16 %v555, %v546
      %v664 = vpack.c.b16 %v556, %v547
      %v665 = vpack.c.b16 %v566, %v557
      %v666 = vpack.c.b16 %v567, %v558
      %v667 = vpack.c.b16 %v568, %v559
      %v668 = vpack.c.b16 %v569, %v560
      %v669 = vpack.c.b16 %v570, %v561
      %v670 = vpack.c.b16 %v571, %v562
      %v671 = vpack.c.b16 %v572, %v563
      %v672 = vpack.c.b16 %v573, %v564
      %v673 = vpack.c.b16 %v574, %v565
      %v674 = vpack.c.b16 %v584, %v575
      %v675 = vpack.c.b16 %v585, %v576
      %v676 = vpack.c.b16 %v586, %v577
      %v677 = vpack.c.b16 %v587, %v578
      %v678 = vpack.c.b16 %v588, %v579
      %v679 = vpack.c.b16 %v589, %v580
      %v680 = vpack.c.b16 %v590, %v581
      %v681 = vpack.c.b16 %v591, %v582
      %v682 = vpack.c.b16 %v592, %v583
      %v683 = vpack.c.b16 %v602, %v593
      %v684 = vpack.c.b16 %v603, %v594
      %v685 = vpack.c.b16 %v604, %v595
      %v686 = vpack.c.b16 %v605, %v596
      %v687 = vpack.c.b16 %v606, %v597
      %v688 = vpack.c.b16 %v607, %v598
      %v689 = vpack.c.b16 %v608, %v599
      %v690 = vpack.c.b16 %v609, %v600
      %v691 = vpack.c.b16 %v610, %v601
      %v692 = vpack.c.b16 %v620, %v611
      %v693 = vpack.c.b16 %v621, %v612
      %v694 = vpack.c.b16 %v622, %v613
      %v695 = vpack.c.b16 %v623, %v614
      %v696 = vpack.c.b16 %v624, %v615
      %v697 = vpack.c.b16 %v625, %v616
      %v698 = vpack.c.b16 %v626, %v617
      %v699 = vpack.c.b16 %v627, %v618
      %v700 = vpack.c.b16 %v628, %v619
      %v917 = vunpack.c.l.b16 %v257
      %v918 = vunpack.c.l.b16 %v258
      %v919 = vunpack.c.l.b16 %v259
      %v920 = vunpack.c.l.b16 %v260
      %v921 = vunpack.c.l.b16 %v261
      %v922 = vunpack.c.l.b16 %v262
      %v923 = vunpack.c.l.b16 %v263
      %v924 = vunpack.c.l.b16 %v264
      %v925 = vunpack.c.l.b16 %v265
      %v926 = vunpack.c.l.b16 %v266
      %v927 = vunpack.c.l.b16 %v267
      %v928 = vunpack.c.l.b16 %v268
      %v929 = vunpack.c.l.b16 %v269
      %v930 = vunpack.c.l.b16 %v270
      %v931 = vunpack.c.l.b16 %v271
      %v932 = vunpack.c.l.b16 %v272
      %v933 = vunpack.c.l.b16 %v273
      %v934 = vunpack.c.l.b16 %v274
      %v935 = vunpack.c.l.b16 %v275
      %v936 = vunpack.c.l.b16 %v276
      %v937 = vunpack.c.l.b16 %v277
      %v938 = vunpack.c.l.b16 %v278
      %v939 = vunpack.c.l.b16 %v279
      %v940 = vunpack.c.l.b16 %v280
      %v941 = vunpack.c.l.b16 %v281
      %v942 = vunpack.c.l.b16 %v282
      %v943 = vunpack.c.l.b16 %v283
      %v944 = vunpack.c.l.b16 %v284
      %v945 = vunpack.c.l.b16 %v285
      %v946 = vunpack.c.l.b16 %v286
      %v947 = vunpack.c.l.b16 %v287
      %v948 = vunpack.c.l.b16 %v288
      %v949 = vunpack.c.l.b16 %v289
      %v950 = vunpack.c.l.b16 %v290
      %v951 = vunpack.c.l.b16 %v291
      %v952 = vunpack.c.l.b16 %v292
      %v953 = vunpack.c.l.b16 %v293
      %v954 = vunpack.c.l.b16 %v294
      %v955 = vunpack.c.l.b16 %v295
      %v956 = vunpack.c.l.b16 %v296
      %v957 = vunpack.c.l.b16 %v297
      %v958 = vunpack.c.l.b16 %v298
      %v959 = vunpack.c.l.b16 %v299
      %v960 = vunpack.c.l.b16 %v300
      %v961 = vunpack.c.l.b16 %v301
      %v962 = vunpack.c.l.b16 %v302
      %v963 = vunpack.c.l.b16 %v303
      %v964 = vunpack.c.l.b16 %v304
      %v965 = vunpack.c.l.b16 %v305
      %v966 = vunpack.c.l.b16 %v306
      %v967 = vunpack.c.l.b16 %v307
      %v968 = vunpack.c.l.b16 %v308
      %v969 = vunpack.c.l.b16 %v309
      %v970 = vunpack.c.l.b16 %v310
      %v971 = vunpack.c.l.b16 %v311
      %v972 = vunpack.c.l.b16 %v312
      %v973 = vunpack.c.l.b16 %v313
      %v974 = vunpack.c.l.b16 %v314
      %v975 = vunpack.c.l.b16 %v315
      %v976 = vunpack.c.l.b16 %v316
      %v977 = vunpack.c.l.b16 %v317
      %v978 = vunpack.c.l.b16 %v318
      %v979 = vunpack.c.l.b16 %v319
      %v980 = vunpack.c.l.b16 %v320
      %v981 = vunpack.c.l.b16 %v321
      %v982 = vunpack.c.l.b16 %v322
      %v983 = vunpack.c.l.b16 %v323
      %v984 = vunpack.c.l.b16 %v324
      %v985 = vunpack.c.l.b16 %v325
      %v986 = vunpack.c.l.b16 %v326
      %v987 = vunpack.c.l.b16 %v327
      %v988 = vunpack.c.l.b16 %v328
      %v989 = vunpack.c.l.b16 %v329
      %v990 = vunpack.c.l.b16 %v330
      %v991 = vunpack.c.l.b16 %v331
      %v992 = vunpack.c.l.b16 %v332
      %v993 = vunpack.c.l.b16 %v333
      %v994 = vunpack.c.l.b16 %v334
      %v995 = vunpack.c.l.b16 %v335
      %v996 = vunpack.c.l.b16 %v336
      %v997 = vunpack.c.l.b16 %v337
      %v998 = vunpack.c.l.b16 %v338
      %v999 = vunpack.c.l.b16 %v339
      %v1000 = vunpack.c.l.b16 %v340
      %v1001 = vunpack.c.l.b16 %v341
      %v1002 = vunpack.c.l.b16 %v342
      %v1003 = vunpack.c.l.b16 %v343
      %v1004 = vunpack.c.l.b16 %v344
      %v1005 = vunpack.c.l.b16 %v345
      %v1006 = vunpack.c.l.b16 %v346
      %v1007 = vunpack.c.l.b16 %v347
      %v1008 = vunpack.c.l.b16 %v348
      %v1009 = vunpack.c.l.b16 %v349
      %v1010 = vunpack.c.l.b16 %v350
      %v1011 = vunpack.c.l.b16 %v351
      %v1012 = vunpack.c.l.b16 %v352
      %v1013 = vunpack.c.l.b16 %v353
      %v1014 = vunpack.c.l.b16 %v354
      %v1015 = vunpack.c.l.b16 %v355
      %v1016 = vunpack.c.l.b16 %v356
      %v1017 = vunpack.c.l.b16 %v357
      %v1018 = vunpack.c.l.b16 %v358
      %v1019 = vunpack.c.l.b16 %v359
      %v1020 = vunpack.c.l.b16 %v360
      %v1021 = vunpack.c.l.b16 %v361
      %v1022 = vunpack.c.l.b16 %v362
      %v1023 = vunpack.c.l.b16 %v363
      %v1024 = vunpack.c.l.b16 %v364
      %v1025 = vunpack.c.l.b16 %v365
      %v1026 = vunpack.c.l.b16 %v366
      %v1027 = vunpack.c.l.b16 %v367
      %v1028 = vunpack.c.l.b16 %v368
      %v1029 = vunpack.c.l.b16 %v369
      %v1030 = vunpack.c.l.b16 %v370
      %v1031 = vunpack.c.l.b16 %v371
      %v1032 = vunpack.c.l.b16 %v372
      %v1033 = vunpack.c.l.b16 %v373
      %v1034 = vunpack.c.l.b16 %v374
      %v1035 = vunpack.c.l.b16 %v375
      %v1036 = vunpack.c.l.b16 %v376
      %v1037 = vunpack.c.l.b16 %v377
      %v1038 = vunpack.c.l.b16 %v378
      %v1039 = vunpack.c.l.b16 %v379
      %v1040 = vunpack.c.l.b16 %v380
      %v1041 = vunpack.c.l.b16 %v381
      %v1042 = vunpack.c.l.b16 %v382
      %v1043 = vunpack.c.l.b16 %v383
      %v1044 = vunpack.c.l.b16 %v384
      %v1045 = vunpack.c.l.b16 %v385
      %v1046 = vunpack.c.l.b16 %v386
      %v1047 = vunpack.c.l.b16 %v387
      %v1048 = vunpack.c.l.b16 %v388
      %v1049 = vunpack.c.l.b16 %v389
      %v1050 = vunpack.c.l.b16 %v390
      %v1051 = vunpack.c.l.b16 %v391
      %v1052 = vunpack.c.l.b16 %v392
      %v1053 = vunpack.c.l.b16 %v393
      %v1054 = vunpack.c.l.b16 %v394
      %v1055 = vunpack.c.l.b16 %v395
      %v1056 = vunpack.c.l.b16 %v396
      %v1057 = vunpack.c.l.b16 %v397
      %v1058 = vunpack.c.l.b16 %v398
      %v1059 = vunpack.c.l.b16 %v399
      %v1060 = vunpack.c.l.b16 %v400
      %v1061 = vpack.c.b16 %v918, %v917
      %v1062 = vpack.c.b16 %v920, %v919
      %v1063 = vpack.c.b16 %v922, %v921
      %v1064 = vpack.c.b16 %v924, %v923
      %v1065 = vpack.c.b16 %v926, %v925
      %v1066 = vpack.c.b16 %v928, %v927
      %v1067 = vpack.c.b16 %v930, %v929
      %v1068 = vpack.c.b16 %v932, %v931
      %v1069 = vpack.c.b16 %v934, %v933
      %v1070 = vpack.c.b16 %v936, %v935
      %v1071 = vpack.c.b16 %v938, %v937
      %v1072 = vpack.c.b16 %v940, %v939
      %v1073 = vpack.c.b16 %v942, %v941
      %v1074 = vpack.c.b16 %v944, %v943
      %v1075 = vpack.c.b16 %v946, %v945
      %v1076 = vpack.c.b16 %v948, %v947
      %v1077 = vpack.c.b16 %v950, %v949
      %v1078 = vpack.c.b16 %v952, %v951
      %v1079 = vpack.c.b16 %v954, %v953
      %v1080 = vpack.c.b16 %v956, %v955
      %v1081 = vpack.c.b16 %v958, %v957
      %v1082 = vpack.c.b16 %v960, %v959
      %v1083 = vpack.c.b16 %v962, %v961
      %v1084 = vpack.c.b16 %v964, %v963
      %v1085 = vpack.c.b16 %v966, %v965
      %v1086 = vpack.c.b16 %v968, %v967
      %v1087 = vpack.c.b16 %v970, %v969
      %v1088 = vpack.c.b16 %v972, %v971
      %v1089 = vpack.c.b16 %v974, %v973
      %v1090 = vpack.c.b16 %v976, %v975
      %v1091 = vpack.c.b16 %v978, %v977
      %v1092 = vpack.c.b16 %v980, %v979
      %v1093 = vpack.c.b16 %v982, %v981
      %v1094 = vpack.c.b16 %v984, %v983
      %v1095 = vpack.c.b16 %v986, %v985
      %v1096 = vpack.c.b16 %v988, %v987
      %v1097 = vpack.c.b16 %v990, %v989
      %v1098 = vpack.c.b16 %v992, %v991
      %v1099 = vpack.c.b16 %v994, %v993
      %v1100 = vpack.c.b16 %v996, %v995
      %v1101 = vpack.c.b16 %v998, %v997
      %v1102 = vpack.c.b16 %v1000, %v999
      %v1103 = vpack.c.b16 %v1002, %v1001
      %v1104 = vpack.c.b16 %v1004, %v1003
      %v1105 = vpack.c.b16 %v1006, %v1005
      %v1106 = vpack.c.b16 %v1008, %v1007
      %v1107 = vpack.c.b16 %v1010, %v1009
      %v1108 = vpack.c.b16 %v1012, %v1011
      %v1109 = vpack.c.b16 %v1014, %v1013
      %v1110 = vpack.c.b16 %v1016, %v1015
      %v1111 = vpack.c.b16 %v1018, %v1017
      %v1112 = vpack.c.b16 %v1020, %v1019
      %v1113 = vpack.c.b16 %v1022, %v1021
      %v1114 = vpack.c.b16 %v1024, %v1023
      %v1115 = vpack.c.b16 %v1026, %v1025
      %v1116 = vpack.c.b16 %v1028, %v1027
      %v1117 = vpack.c.b16 %v1030, %v1029
      %v1118 = vpack.c.b16 %v1032, %v1031
      %v1119 = vpack.c.b16 %v1034, %v1033
      %v1120 = vpack.c.b16 %v1036, %v1035
      %v1121 = vpack.c.b16 %v1038, %v1037
      %v1122 = vpack.c.b16 %v1040, %v1039
      %v1123 = vpack.c.b16 %v1042, %v1041
      %v1124 = vpack.c.b16 %v1044, %v1043
      %v1125 = vpack.c.b16 %v1046, %v1045
      %v1126 = vpack.c.b16 %v1048, %v1047
      %v1127 = vpack.c.b16 %v1050, %v1049
      %v1128 = vpack.c.b16 %v1052, %v1051
      %v1129 = vpack.c.b16 %v1054, %v1053
      %v1130 = vpack.c.b16 %v1056, %v1055
      %v1131 = vpack.c.b16 %v1058, %v1057
      %v1132 = vpack.c.b16 %v1060, %v1059
      %1205 = vmatpush.bf16.msra.mxu0 %v1068
      %1206 = vmatpush.bf16.msra.mxu0 %v1067
      %1207 = vmatpush.bf16.msra.mxu0 %v1066
      %1208 = vmatpush.bf16.msra.mxu0 %v1065
      %1209 = vmatpush.bf16.msra.mxu0 %v1064
      %1210 = vmatpush.bf16.msra.mxu0 %v1063
      %1211 = vmatpush.bf16.msra.mxu0 %v1062
      %1212 = vmatpush.bf16.msra.mxu0 %v1061
      %1213 = vmatmul.bf16.gmra.mxu0 %v629
      %v1214 = vpop.f32.mrf.mxu0
      %v1215 = vadd.f32 %v403, %v1214
      %v1216 = vpop.f32.mrf.mxu0
      %v1217 = vadd.f32 %v403, %v1216
      %1218 = vmatmul.bf16.gmra.mxu0 %v638
      %v1219 = vpop.f32.mrf.mxu0
      %v1220 = vadd.f32 %v403, %v1219
      %v1221 = vpop.f32.mrf.mxu0
      %v1222 = vadd.f32 %v403, %v1221
      %1223 = vmatmul.bf16.gmra.mxu0 %v647
      %v1224 = vpop.f32.mrf.mxu0
      %v1225 = vadd.f32 %v403, %v1224
      %v1226 = vpop.f32.mrf.mxu0
      %v1227 = vadd.f32 %v403, %v1226
      %1228 = vmatmul.bf16.gmra.mxu0 %v656
      %v1229 = vpop.f32.mrf.mxu0
      %v1230 = vadd.f32 %v403, %v1229
      %v1231 = vpop.f32.mrf.mxu0
      %v1232 = vadd.f32 %v403, %v1231
      %1233 = vmatmul.bf16.gmra.mxu0 %v665
      %v1234 = vpop.f32.mrf.mxu0
      %v1235 = vadd.f32 %v403, %v1234
      %v1236 = vpop.f32.mrf.mxu0
      %v1237 = vadd.f32 %v403, %v1236
      %1238 = vmatmul.bf16.gmra.mxu0 %v674
      %v1239 = vpop.f32.mrf.mxu0
      %v1240 = vadd.f32 %v403, %v1239
      %v1241 = vpop.f32.mrf.mxu0
      %v1242 = vadd.f32 %v403, %v1241
      %1243 = vmatmul.bf16.gmra.mxu0 %v683
      %v1244 = vpop.f32.mrf.mxu0
      %v1245 = vadd.f32 %v403, %v1244
      %v1246 = vpop.f32.mrf.mxu0
      %v1247 = vadd.f32 %v403, %v1246
      %1248 = vmatmul.bf16.gmra.mxu0 %v692
      %v1249 = vpop.f32.mrf.mxu0
      %v1250 = vadd.f32 %v403, %v1249
      %v1251 = vpop.f32.mrf.mxu0
      %v1252 = vadd.f32 %v403, %v1251
      %1253 = vdwg.mxu0
      %1254 = vmatpush.bf16.msra.mxu0 %v1076
      %1255 = vmatpush.bf16.msra.mxu0 %v1075
      %1256 = vmatpush.bf16.msra.mxu0 %v1074
      %1257 = vmatpush.bf16.msra.mxu0 %v1073
      %1258 = vmatpush.bf16.msra.mxu0 %v1072
      %1259 = vmatpush.bf16.msra.mxu0 %v1071
      %1260 = vmatpush.bf16.msra.mxu0 %v1070
      %1261 = vmatpush.bf16.msra.mxu0 %v1069
      %1262 = vmatmul.bf16.gmra.mxu0 %v630
      %v1263 = vpop.f32.mrf.mxu0
      %v1264 = vadd.f32 %v1215, %v1263
      %v1265 = vpop.f32.mrf.mxu0
      %v1266 = vadd.f32 %v1217, %v1265
      %1267 = vmatmul.bf16.gmra.mxu0 %v639
      %v1268 = vpop.f32.mrf.mxu0
      %v1269 = vadd.f32 %v1220, %v1268
      %v1270 = vpop.f32.mrf.mxu0
      %v1271 = vadd.f32 %v1222, %v1270
      %1272 = vmatmul.bf16.gmra.mxu0 %v648
      %v1273 = vpop.f32.mrf.mxu0
      %v1274 = vadd.f32 %v1225, %v1273
      %v1275 = vpop.f32.mrf.mxu0
      %v1276 = vadd.f32 %v1227, %v1275
      %1277 = vmatmul.bf16.gmra.mxu0 %v657
      %v1278 = vpop.f32.mrf.mxu0
      %v1279 = vadd.f32 %v1230, %v1278
      %v1280 = vpop.f32.mrf.mxu0
      %v1281 = vadd.f32 %v1232, %v1280
      %1282 = vmatmul.bf16.gmra.mxu0 %v666
      %v1283 = vpop.f32.mrf.mxu0
      %v1284 = vadd.f32 %v1235, %v1283
      %v1285 = vpop.f32.mrf.mxu0
      %v1286 = vadd.f32 %v1237, %v1285
      %1287 = vmatmul.bf16.gmra.mxu0 %v675
      %v1288 = vpop.f32.mrf.mxu0
      %v1289 = vadd.f32 %v1240, %v1288
      %v1290 = vpop.f32.mrf.mxu0
      %v1291 = vadd.f32 %v1242, %v1290
      %1292 = vmatmul.bf16.gmra.mxu0 %v684
      %v1293 = vpop.f32.mrf.mxu0
      %v1294 = vadd.f32 %v1245, %v1293
      %v1295 = vpop.f32.mrf.mxu0
      %v1296 = vadd.f32 %v1247, %v1295
      %1297 = vmatmul.bf16.gmra.mxu0 %v693
      %v1298 = vpop.f32.mrf.mxu0
      %v1299 = vadd.f32 %v1250, %v1298
      %v1300 = vpop.f32.mrf.mxu0
      %v1301 = vadd.f32 %v1252, %v1300
      %1302 = vdwg.mxu0
      %1303 = vmatpush.bf16.msra.mxu0 %v1084
      %1304 = vmatpush.bf16.msra.mxu0 %v1083
      %1305 = vmatpush.bf16.msra.mxu0 %v1082
      %1306 = vmatpush.bf16.msra.mxu0 %v1081
      %1307 = vmatpush.bf16.msra.mxu0 %v1080
      %1308 = vmatpush.bf16.msra.mxu0 %v1079
      %1309 = vmatpush.bf16.msra.mxu0 %v1078
      %1310 = vmatpush.bf16.msra.mxu0 %v1077
      %1311 = vmatmul.bf16.gmra.mxu0 %v631
      %v1312 = vpop.f32.mrf.mxu0
      %v1313 = vadd.f32 %v1264, %v1312
      %v1314 = vpop.f32.mrf.mxu0
      %v1315 = vadd.f32 %v1266, %v1314
      %1316 = vmatmul.bf16.gmra.mxu0 %v640
      %v1317 = vpop.f32.mrf.mxu0
      %v1318 = vadd.f32 %v1269, %v1317
      %v1319 = vpop.f32.mrf.mxu0
      %v1320 = vadd.f32 %v1271, %v1319
      %1321 = vmatmul.bf16.gmra.mxu0 %v649
      %v1322 = vpop.f32.mrf.mxu0
      %v1323 = vadd.f32 %v1274, %v1322
      %v1324 = vpop.f32.mrf.mxu0
      %v1325 = vadd.f32 %v1276, %v1324
      %1326 = vmatmul.bf16.gmra.mxu0 %v658
      %v1327 = vpop.f32.mrf.mxu0
      %v1328 = vadd.f32 %v1279, %v1327
      %v1329 = vpop.f32.mrf.mxu0
      %v1330 = vadd.f32 %v1281, %v1329
      %1331 = vmatmul.bf16.gmra.mxu0 %v667
      %v1332 = vpop.f32.mrf.mxu0
      %v1333 = vadd.f32 %v1284, %v1332
      %v1334 = vpop.f32.mrf.mxu0
      %v1335 = vadd.f32 %v1286, %v1334
      %1336 = vmatmul.bf16.gmra.mxu0 %v676
      %v1337 = vpop.f32.mrf.mxu0
      %v1338 = vadd.f32 %v1289, %v1337
      %v1339 = vpop.f32.mrf.mxu0
      %v1340 = vadd.f32 %v1291, %v1339
      %1341 = vmatmul.bf16.gmra.mxu0 %v685
      %v1342 = vpop.f32.mrf.mxu0
      %v1343 = vadd.f32 %v1294, %v1342
      %v1344 = vpop.f32.mrf.mxu0
      %v1345 = vadd.f32 %v1296, %v1344
      %1346 = vmatmul.bf16.gmra.mxu0 %v694
      %v1347 = vpop.f32.mrf.mxu0
      %v1348 = vadd.f32 %v1299, %v1347
      %v1349 = vpop.f32.mrf.mxu0
      %v1350 = vadd.f32 %v1301, %v1349
      %1351 = vdwg.mxu0
      %1352 = vmatpush.bf16.msra.mxu0 %v1092
      %1353 = vmatpush.bf16.msra.mxu0 %v1091
      %1354 = vmatpush.bf16.msra.mxu0 %v1090
      %1355 = vmatpush.bf16.msra.mxu0 %v1089
      %1356 = vmatpush.bf16.msra.mxu0 %v1088
      %1357 = vmatpush.bf16.msra.mxu0 %v1087
      %1358 = vmatpush.bf16.msra.mxu0 %v1086
      %1359 = vmatpush.bf16.msra.mxu0 %v1085
      %1360 = vmatmul.bf16.gmra.mxu0 %v632
      %v1361 = vpop.f32.mrf.mxu0
      %v1362 = vadd.f32 %v1313, %v1361
      %v1363 = vpop.f32.mrf.mxu0
      %v1364 = vadd.f32 %v1315, %v1363
      %1365 = vmatmul.bf16.gmra.mxu0 %v641
      %v1366 = vpop.f32.mrf.mxu0
      %v1367 = vadd.f32 %v1318, %v1366
      %v1368 = vpop.f32.mrf.mxu0
      %v1369 = vadd.f32 %v1320, %v1368
      %1370 = vmatmul.bf16.gmra.mxu0 %v650
      %v1371 = vpop.f32.mrf.mxu0
      %v1372 = vadd.f32 %v1323, %v1371
      %v1373 = vpop.f32.mrf.mxu0
      %v1374 = vadd.f32 %v1325, %v1373
      %1375 = vmatmul.bf16.gmra.mxu0 %v659
      %v1376 = vpop.f32.mrf.mxu0
      %v1377 = vadd.f32 %v1328, %v1376
      %v1378 = vpop.f32.mrf.mxu0
      %v1379 = vadd.f32 %v1330, %v1378
      %1380 = vmatmul.bf16.gmra.mxu0 %v668
      %v1381 = vpop.f32.mrf.mxu0
      %v1382 = vadd.f32 %v1333, %v1381
      %v1383 = vpop.f32.mrf.mxu0
      %v1384 = vadd.f32 %v1335, %v1383
      %1385 = vmatmul.bf16.gmra.mxu0 %v677
      %v1386 = vpop.f32.mrf.mxu0
      %v1387 = vadd.f32 %v1338, %v1386
      %v1388 = vpop.f32.mrf.mxu0
      %v1389 = vadd.f32 %v1340, %v1388
      %1390 = vmatmul.bf16.gmra.mxu0 %v686
      %v1391 = vpop.f32.mrf.mxu0
      %v1392 = vadd.f32 %v1343, %v1391
      %v1393 = vpop.f32.mrf.mxu0
      %v1394 = vadd.f32 %v1345, %v1393
      %1395 = vmatmul.bf16.gmra.mxu0 %v695
      %v1396 = vpop.f32.mrf.mxu0
      %v1397 = vadd.f32 %v1348, %v1396
      %v1398 = vpop.f32.mrf.mxu0
      %v1399 = vadd.f32 %v1350, %v1398
      %1400 = vdwg.mxu0
      %1401 = vmatpush.bf16.msra.mxu0 %v1100
      %1402 = vmatpush.bf16.msra.mxu0 %v1099
      %1403 = vmatpush.bf16.msra.mxu0 %v1098
      %1404 = vmatpush.bf16.msra.mxu0 %v1097
      %1405 = vmatpush.bf16.msra.mxu0 %v1096
      %1406 = vmatpush.bf16.msra.mxu0 %v1095
      %1407 = vmatpush.bf16.msra.mxu0 %v1094
      %1408 = vmatpush.bf16.msra.mxu0 %v1093
      %1409 = vmatmul.bf16.gmra.mxu0 %v633
      %v1410 = vpop.f32.mrf.mxu0
      %v1411 = vadd.f32 %v1362, %v1410
      %v1412 = vpop.f32.mrf.mxu0
      %v1413 = vadd.f32 %v1364, %v1412
      %1414 = vmatmul.bf16.gmra.mxu0 %v642
      %v1415 = vpop.f32.mrf.mxu0
      %v1416 = vadd.f32 %v1367, %v1415
      %v1417 = vpop.f32.mrf.mxu0
      %v1418 = vadd.f32 %v1369, %v1417
      %1419 = vmatmul.bf16.gmra.mxu0 %v651
      %v1420 = vpop.f32.mrf.mxu0
      %v1421 = vadd.f32 %v1372, %v1420
      %v1422 = vpop.f32.mrf.mxu0
      %v1423 = vadd.f32 %v1374, %v1422
      %1424 = vmatmul.bf16.gmra.mxu0 %v660
      %v1425 = vpop.f32.mrf.mxu0
      %v1426 = vadd.f32 %v1377, %v1425
      %v1427 = vpop.f32.mrf.mxu0
      %v1428 = vadd.f32 %v1379, %v1427
      %1429 = vmatmul.bf16.gmra.mxu0 %v669
      %v1430 = vpop.f32.mrf.mxu0
      %v1431 = vadd.f32 %v1382, %v1430
      %v1432 = vpop.f32.mrf.mxu0
      %v1433 = vadd.f32 %v1384, %v1432
      %1434 = vmatmul.bf16.gmra.mxu0 %v678
      %v1435 = vpop.f32.mrf.mxu0
      %v1436 = vadd.f32 %v1387, %v1435
      %v1437 = vpop.f32.mrf.mxu0
      %v1438 = vadd.f32 %v1389, %v1437
      %1439 = vmatmul.bf16.gmra.mxu0 %v687
      %v1440 = vpop.f32.mrf.mxu0
      %v1441 = vadd.f32 %v1392, %v1440
      %v1442 = vpop.f32.mrf.mxu0
      %v1443 = vadd.f32 %v1394, %v1442
      %1444 = vmatmul.bf16.gmra.mxu0 %v696
      %v1445 = vpop.f32.mrf.mxu0
      %v1446 = vadd.f32 %v1397, %v1445
      %v1447 = vpop.f32.mrf.mxu0
      %v1448 = vadd.f32 %v1399, %v1447
      %1449 = vdwg.mxu0
      %1450 = vmatpush.bf16.msra.mxu0 %v1108
      %1451 = vmatpush.bf16.msra.mxu0 %v1107
      %1452 = vmatpush.bf16.msra.mxu0 %v1106
      %1453 = vmatpush.bf16.msra.mxu0 %v1105
      %1454 = vmatpush.bf16.msra.mxu0 %v1104
      %1455 = vmatpush.bf16.msra.mxu0 %v1103
      %1456 = vmatpush.bf16.msra.mxu0 %v1102
      %1457 = vmatpush.bf16.msra.mxu0 %v1101
      %1458 = vmatmul.bf16.gmra.mxu0 %v634
      %v1459 = vpop.f32.mrf.mxu0
      %v1460 = vadd.f32 %v1411, %v1459
      %v1461 = vpop.f32.mrf.mxu0
      %v1462 = vadd.f32 %v1413, %v1461
      %1463 = vmatmul.bf16.gmra.mxu0 %v643
      %v1464 = vpop.f32.mrf.mxu0
      %v1465 = vadd.f32 %v1416, %v1464
      %v1466 = vpop.f32.mrf.mxu0
      %v1467 = vadd.f32 %v1418, %v1466
      %1468 = vmatmul.bf16.gmra.mxu0 %v652
      %v1469 = vpop.f32.mrf.mxu0
      %v1470 = vadd.f32 %v1421, %v1469
      %v1471 = vpop.f32.mrf.mxu0
      %v1472 = vadd.f32 %v1423, %v1471
      %1473 = vmatmul.bf16.gmra.mxu0 %v661
      %v1474 = vpop.f32.mrf.mxu0
      %v1475 = vadd.f32 %v1426, %v1474
      %v1476 = vpop.f32.mrf.mxu0
      %v1477 = vadd.f32 %v1428, %v1476
      %1478 = vmatmul.bf16.gmra.mxu0 %v670
      %v1479 = vpop.f32.mrf.mxu0
      %v1480 = vadd.f32 %v1431, %v1479
      %v1481 = vpop.f32.mrf.mxu0
      %v1482 = vadd.f32 %v1433, %v1481
      %1483 = vmatmul.bf16.gmra.mxu0 %v679
      %v1484 = vpop.f32.mrf.mxu0
      %v1485 = vadd.f32 %v1436, %v1484
      %v1486 = vpop.f32.mrf.mxu0
      %v1487 = vadd.f32 %v1438, %v1486
      %1488 = vmatmul.bf16.gmra.mxu0 %v688
      %v1489 = vpop.f32.mrf.mxu0
      %v1490 = vadd.f32 %v1441, %v1489
      %v1491 = vpop.f32.mrf.mxu0
      %v1492 = vadd.f32 %v1443, %v1491
      %1493 = vmatmul.bf16.gmra.mxu0 %v697
      %v1494 = vpop.f32.mrf.mxu0
      %v1495 = vadd.f32 %v1446, %v1494
      %v1496 = vpop.f32.mrf.mxu0
      %v1497 = vadd.f32 %v1448, %v1496
      %1498 = vdwg.mxu0
      %1499 = vmatpush.bf16.msra.mxu0 %v1116
      %1500 = vmatpush.bf16.msra.mxu0 %v1115
      %1501 = vmatpush.bf16.msra.mxu0 %v1114
      %1502 = vmatpush.bf16.msra.mxu0 %v1113
      %1503 = vmatpush.bf16.msra.mxu0 %v1112
      %1504 = vmatpush.bf16.msra.mxu0 %v1111
      %1505 = vmatpush.bf16.msra.mxu0 %v1110
      %1506 = vmatpush.bf16.msra.mxu0 %v1109
      %1507 = vmatmul.bf16.gmra.mxu0 %v635
      %v1508 = vpop.f32.mrf.mxu0
      %v1509 = vadd.f32 %v1460, %v1508
      %v1510 = vpop.f32.mrf.mxu0
      %v1511 = vadd.f32 %v1462, %v1510
      %1512 = vmatmul.bf16.gmra.mxu0 %v644
      %v1513 = vpop.f32.mrf.mxu0
      %v1514 = vadd.f32 %v1465, %v1513
      %v1515 = vpop.f32.mrf.mxu0
      %v1516 = vadd.f32 %v1467, %v1515
      %1517 = vmatmul.bf16.gmra.mxu0 %v653
      %v1518 = vpop.f32.mrf.mxu0
      %v1519 = vadd.f32 %v1470, %v1518
      %v1520 = vpop.f32.mrf.mxu0
      %v1521 = vadd.f32 %v1472, %v1520
      %1522 = vmatmul.bf16.gmra.mxu0 %v662
      %v1523 = vpop.f32.mrf.mxu0
      %v1524 = vadd.f32 %v1475, %v1523
      %v1525 = vpop.f32.mrf.mxu0
      %v1526 = vadd.f32 %v1477, %v1525
      %1527 = vmatmul.bf16.gmra.mxu0 %v671
      %v1528 = vpop.f32.mrf.mxu0
      %v1529 = vadd.f32 %v1480, %v1528
      %v1530 = vpop.f32.mrf.mxu0
      %v1531 = vadd.f32 %v1482, %v1530
      %1532 = vmatmul.bf16.gmra.mxu0 %v680
      %v1533 = vpop.f32.mrf.mxu0
      %v1534 = vadd.f32 %v1485, %v1533
      %v1535 = vpop.f32.mrf.mxu0
      %v1536 = vadd.f32 %v1487, %v1535
      %1537 = vmatmul.bf16.gmra.mxu0 %v689
      %v1538 = vpop.f32.mrf.mxu0
      %v1539 = vadd.f32 %v1490, %v1538
      %v1540 = vpop.f32.mrf.mxu0
      %v1541 = vadd.f32 %v1492, %v1540
      %1542 = vmatmul.bf16.gmra.mxu0 %v698
      %v1543 = vpop.f32.mrf.mxu0
      %v1544 = vadd.f32 %v1495, %v1543
      %v1545 = vpop.f32.mrf.mxu0
      %v1546 = vadd.f32 %v1497, %v1545
      %1547 = vdwg.mxu0
      %1548 = vmatpush.bf16.msra.mxu0 %v1124
      %1549 = vmatpush.bf16.msra.mxu0 %v1123
      %1550 = vmatpush.bf16.msra.mxu0 %v1122
      %1551 = vmatpush.bf16.msra.mxu0 %v1121
      %1552 = vmatpush.bf16.msra.mxu0 %v1120
      %1553 = vmatpush.bf16.msra.mxu0 %v1119
      %1554 = vmatpush.bf16.msra.mxu0 %v1118
      %1555 = vmatpush.bf16.msra.mxu0 %v1117
      %1556 = vmatmul.bf16.gmra.mxu0 %v636
      %v1557 = vpop.f32.mrf.mxu0
      %v1558 = vadd.f32 %v1509, %v1557
      %v1559 = vpop.f32.mrf.mxu0
      %v1560 = vadd.f32 %v1511, %v1559
      %1561 = vmatmul.bf16.gmra.mxu0 %v645
      %v1562 = vpop.f32.mrf.mxu0
      %v1563 = vadd.f32 %v1514, %v1562
      %v1564 = vpop.f32.mrf.mxu0
      %v1565 = vadd.f32 %v1516, %v1564
      %1566 = vmatmul.bf16.gmra.mxu0 %v654
      %v1567 = vpop.f32.mrf.mxu0
      %v1568 = vadd.f32 %v1519, %v1567
      %v1569 = vpop.f32.mrf.mxu0
      %v1570 = vadd.f32 %v1521, %v1569
      %1571 = vmatmul.bf16.gmra.mxu0 %v663
      %v1572 = vpop.f32.mrf.mxu0
      %v1573 = vadd.f32 %v1524, %v1572
      %v1574 = vpop.f32.mrf.mxu0
      %v1575 = vadd.f32 %v1526, %v1574
      %1576 = vmatmul.bf16.gmra.mxu0 %v672
      %v1577 = vpop.f32.mrf.mxu0
      %v1578 = vadd.f32 %v1529, %v1577
      %v1579 = vpop.f32.mrf.mxu0
      %v1580 = vadd.f32 %v1531, %v1579
      %1581 = vmatmul.bf16.gmra.mxu0 %v681
      %v1582 = vpop.f32.mrf.mxu0
      %v1583 = vadd.f32 %v1534, %v1582
      %v1584 = vpop.f32.mrf.mxu0
      %v1585 = vadd.f32 %v1536, %v1584
      %1586 = vmatmul.bf16.gmra.mxu0 %v690
      %v1587 = vpop.f32.mrf.mxu0
      %v1588 = vadd.f32 %v1539, %v1587
      %v1589 = vpop.f32.mrf.mxu0
      %v1590 = vadd.f32 %v1541, %v1589
      %1591 = vmatmul.bf16.gmra.mxu0 %v699
      %v1592 = vpop.f32.mrf.mxu0
      %v1593 = vadd.f32 %v1544, %v1592
      %v1594 = vpop.f32.mrf.mxu0
      %v1595 = vadd.f32 %v1546, %v1594
      %1596 = vdwg.mxu0
      %1597 = vmatpush.bf16.msra.mxu0 %v1132
      %1598 = vmatpush.bf16.msra.mxu0 %v1131
      %1599 = vmatpush.bf16.msra.mxu0 %v1130
      %1600 = vmatpush.bf16.msra.mxu0 %v1129
      %1601 = vmatpush.bf16.msra.mxu0 %v1128
      %1602 = vmatpush.bf16.msra.mxu0 %v1127
      %1603 = vmatpush.bf16.msra.mxu0 %v1126
      %1604 = vmatpush.bf16.msra.mxu0 %v1125
      %1605 = vmatmul.bf16.gmra.mxu0 %v637
      %v1606 = vpop.f32.mrf.mxu0
      %v1607 = vadd.f32 %v1558, %v1606
      %v1608 = vpop.f32.mrf.mxu0
      %v1609 = vadd.f32 %v1560, %v1608
      %1610 = vmatmul.bf16.gmra.mxu0 %v646
      %v1611 = vpop.f32.mrf.mxu0
      %v1612 = vadd.f32 %v1563, %v1611
      %v1613 = vpop.f32.mrf.mxu0
      %v1614 = vadd.f32 %v1565, %v1613
      %1615 = vmatmul.bf16.gmra.mxu0 %v655
      %v1616 = vpop.f32.mrf.mxu0
      %v1617 = vadd.f32 %v1568, %v1616
      %v1618 = vpop.f32.mrf.mxu0
      %v1619 = vadd.f32 %v1570, %v1618
      %1620 = vmatmul.bf16.gmra.mxu0 %v664
      %v1621 = vpop.f32.mrf.mxu0
      %v1622 = vadd.f32 %v1573, %v1621
      %v1623 = vpop.f32.mrf.mxu0
      %v1624 = vadd.f32 %v1575, %v1623
      %1625 = vmatmul.bf16.gmra.mxu0 %v673
      %v1626 = vpop.f32.mrf.mxu0
      %v1627 = vadd.f32 %v1578, %v1626
      %v1628 = vpop.f32.mrf.mxu0
      %v1629 = vadd.f32 %v1580, %v1628
      %1630 = vmatmul.bf16.gmra.mxu0 %v682
      %v1631 = vpop.f32.mrf.mxu0
      %v1632 = vadd.f32 %v1583, %v1631
      %v1633 = vpop.f32.mrf.mxu0
      %v1634 = vadd.f32 %v1585, %v1633
      %1635 = vmatmul.bf16.gmra.mxu0 %v691
      %v1636 = vpop.f32.mrf.mxu0
      %v1637 = vadd.f32 %v1588, %v1636
      %v1638 = vpop.f32.mrf.mxu0
      %v1639 = vadd.f32 %v1590, %v1638
      %1640 = vmatmul.bf16.gmra.mxu0 %v700
      %v1641 = vpop.f32.mrf.mxu0
      %v1642 = vadd.f32 %v1593, %v1641
      %v1643 = vpop.f32.mrf.mxu0
      %v1644 = vadd.f32 %v1595, %v1643
      %1645 = vdwg.mxu0
      %v1646 = vmax.f32 %v1607, 0.0
      %v1647 = vmax.f32 %v1609, 0.0
      %v1648 = vmax.f32 %v1612, 0.0
      %v1649 = vmax.f32 %v1614, 0.0
      %v1650 = vmax.f32 %v1617, 0.0
      %v1651 = vmax.f32 %v1619, 0.0
      %v1652 = vmax.f32 %v1622, 0.0
      %v1653 = vmax.f32 %v1624, 0.0
      %v1654 = vmax.f32 %v1627, 0.0
      %v1655 = vmax.f32 %v1629, 0.0
      %v1656 = vmax.f32 %v1632, 0.0
      %v1657 = vmax.f32 %v1634, 0.0
      %v1658 = vmax.f32 %v1637, 0.0
      %v1659 = vmax.f32 %v1639, 0.0
      %v1660 = vmax.f32 %v1642, 0.0
      %v1661 = vmax.f32 %v1644, 0.0
      %v1662 = vpack.c.bf16 %v1646, %v1646
      %v1663 = vpack.c.bf16 %v1647, %v1647
      %v1664 = vpack.c.bf16 %v1648, %v1648
      %v1665 = vpack.c.bf16 %v1649, %v1649
      %v1666 = vpack.c.bf16 %v1650, %v1650
      %v1667 = vpack.c.bf16 %v1651, %v1651
      %v1668 = vpack.c.bf16 %v1652, %v1652
      %v1669 = vpack.c.bf16 %v1653, %v1653
      %v1670 = vpack.c.bf16 %v1654, %v1654
      %v1671 = vpack.c.bf16 %v1655, %v1655
      %v1672 = vpack.c.bf16 %v1656, %v1656
      %v1673 = vpack.c.bf16 %v1657, %v1657
      %v1674 = vpack.c.bf16 %v1658, %v1658
      %v1675 = vpack.c.bf16 %v1659, %v1659
      %v1676 = vpack.c.bf16 %v1660, %v1660
      %v1677 = vpack.c.bf16 %v1661, %v1661
      %1678 = vst [vmem:[%s175] sm:$0xf] %v1662
      %1679 = vst [vmem:[%s175 + $0x4] sm:$0xf] %v1663
      %1680 = vst [vmem:[%s175 + $0x8] sm:$0xf] %v1664
      %1681 = vst [vmem:[%s175 + $0xc] sm:$0xf] %v1665
      %1682 = vst [vmem:[%s175 + $0x10] sm:$0xf] %v1666
      %1683 = vst [vmem:[%s175 + $0x14] sm:$0xf] %v1667
      %1684 = vst [vmem:[%s175 + $0x18] sm:$0xf] %v1668
      %1685 = vst [vmem:[%s175 + $0x1c] sm:$0xf] %v1669
      %1686 = vst [vmem:[%s175 + $0x20] sm:$0xf] %v1670
      %1687 = vst [vmem:[%s175 + $0x24] sm:$0xf] %v1671
      %1688 = vst [vmem:[%s175 + $0x28] sm:$0xf] %v1672
      %1689 = vst [vmem:[%s175 + $0x2c] sm:$0xf] %v1673
      %1690 = vst [vmem:[%s175 + $0x30] sm:$0xf] %v1674
      %1691 = vst [vmem:[%s175 + $0x34] sm:$0xf] %v1675
      %1692 = vst [vmem:[%s175 + $0x38] sm:$0xf] %v1676
      %1693 = vst [vmem:[%s175 + $0x3c] sm:$0xf] %v1677
      %s1694 = smul.u32 16, %s14
      %p1695 = scmp.lt.s32.totalorder %s1694, 63
      %s1696 = scalar_select %p1695, %s1694, 63
      %s1697 = smul.addr %s1696, 4
      %s1698 = scalar_lea.vmem %s3, %s1697
      // Predicated region
      $region33: #{dimpnet_forward.5} parent=31 // pred_check
        %p1699 = pneg %p100
      $region34: #{dimpnet_forward.5} parent=31 // pred_check_branch
        %1701 = sbr.rel (%p1699) target = $region36
      $region35: #{dimpnet_forward.5} parent=31 // pred_region
        %s1702 = smul.u32 16, %s14
      $region36: #{dimpnet_forward.5} parent=31 // pred_fallthru
        _
    $region32: #{dimpnet_forward.5} parent=5 // pred_fallthru
      _
    %p1703 = scmp.le.s32.totalorder 2, %s9
    // Predicated region
    $region37: #{dimpnet_forward.5} parent=5 // pred_check
      %p1704 = pneg %p1703
    $region38: #{dimpnet_forward.5} parent=5 // pred_check_branch
      %1706 = sbr.rel (%p1704) target = $region40
    $region39: #{dimpnet_forward.5} parent=5 // pred_region
      %s1707 = ssub.s32 %s9, 2
      // Predicated region
      $region41: #{dimpnet_forward.5} parent=39 // pred_check
        %p1708 = pneg %p106
      $region42: #{dimpnet_forward.5} parent=39 // pred_check_branch
        %1710 = sbr.rel (%p1708) target = $region44
      $region43: #{dimpnet_forward.5} parent=39 // pred_region
        %s1711 = smul.u32 16, %s15
        %p1712 = scmp.lt.s32.totalorder %s1711, 63
        %s1713 = scalar_select %p1712, %s1711, 63
        %s1714 = smul.addr %s1713, 4
        %s1715 = scalar_lea.vmem %s3, %s1714
      $region44: #{dimpnet_forward.5} parent=39 // pred_fallthru
        _
    $region40: #{dimpnet_forward.5} parent=5 // pred_fallthru
      _
  $region6: #{dimpnet_forward.5} parent=0 // loop_footer
    %s13 = sadd.s32 1, %s9
  $region7: #{dimpnet_forward.5} parent=0 // loop_footer_branch
    %8 = sbr.rel target = $region3
  $region8: #{dimpnet_forward.5} parent=0 // loop_exit
    _

// kernel: dimpnet_forward.6
$region0: #{dimpnet_forward.6}
  #allocation0 [shape = 'u32[]', space=smem, size = 0x4, offset = 0x4, fixed_abs, tag = 'smem constant byte address 0x4 - core index']
  #allocation1 [shape = 'u32[72,128]{1,0:T(1,128)}', space=vmem, size = 0x9000, scoped, tag = 'internal scratch']
  %s0 = inlined_call_operand.vmem [shape: bf16[128,1152], index: 0, kind: input, shape index: {}]
  %s1 = inlined_call_operand.vmem [shape: bf16[1152,128], index: 1, kind: input, shape index: {}]
  %s2 = inlined_call_operand.vmem [shape: f32[1,128], index: 2, kind: input, shape index: {}]
  %s3 = inlined_call_operand.vmem [shape: bf16[128,128], index: 3, kind: output, shape index: {}]
  %s4 = sld [smem:[#allocation0]]
  $region45: #{dimpnet_forward.6} parent=0
    _
  %s6 = ssub.s32 1, %s4
  %s7 = scalar_select 0, %s6, %s4
  loop: start=0, step=1, limit=6
  $region2: #{dimpnet_forward.6} parent=0 // loop_pre_header
    _
  $region3: #{dimpnet_forward.6} parent=0 // loop_header
    %s9 = sphi 0, %s13
    %p10 = scmp.ge.s32.totalorder %s9, 6
    %s19 = sphi 0, %s21
    %s22 = sphi 0, %s19
    %s23 = sphi 0, %s22
    %s39 = sphi 0, %s23
    %s43 = sphi 0, %s43
    %s45 = sphi 0, %s43
    %s46 = sphi 0, %s45
    %s60 = sphi 0, %s46
    %s64 = sphi 0, %s64
    %s66 = sphi 0, %s64
    %s67 = sphi 0, %s66
    %s81 = sphi 0, %s67
    %s87 = sphi 0, %s89
    %s90 = sphi 0, %s87
    %s91 = sphi 0, %s90
    %s107 = sphi 0, %s91
  $region4: #{dimpnet_forward.6} parent=0 // loop_header_branch
    %12 = sbr.rel (%p10) target = $region8
  $region5: #{dimpnet_forward.6} parent=0 // loop_body
    %s14 = ssub.s32 %s9, 1
    %s15 = ssub.s32 %s9, 2
    %s16 = sadd.s32 %s9, 1
    %s17 = ssub.s32 %s9, %s16
    %p18 = scmp.eq.s32.totalorder %s17, 0
    %s20 = sadd.s32 %s19, 1
    %s21 = scalar_select %p18, %s19, %s20
    %p24 = pneg %p18
    %p25 = scmp.eq.s32.totalorder %s9, 3
    %p26 = por %p24, %p25
    %p27 = scmp.ne.s32.totalorder %s19, %s22
    %p28 = scmp.eq.s32.totalorder %s9, 0
    %p29 = por %p27, %p28
    %p30 = scmp.ne.s32.totalorder %s19, %s22
    %p31 = scmp.eq.s32.totalorder %s14, 3
    %p32 = por %p30, %p31
    %p33 = scmp.ne.s32.totalorder %s22, %s23
    %p34 = scmp.eq.s32.totalorder %s14, 0
    %p35 = por %p33, %p34
    %p36 = scmp.ne.s32.totalorder %s22, %s23
    %p37 = scmp.eq.s32.totalorder %s15, 3
    %p38 = por %p36, %p37
    %p40 = scmp.ne.s32.totalorder %s23, %s39
    %p41 = scmp.eq.s32.totalorder %s15, 0
    %p42 = por %p40, %p41
    %s44 = sadd.s32 %s43, 1
    %p47 = scmp.eq.s32.totalorder %s9, 3
    %p48 = scmp.ne.s32.totalorder %s43, %s45
    %p49 = scmp.eq.s32.totalorder %s9, 0
    %p50 = por %p48, %p49
    %p51 = scmp.ne.s32.totalorder %s43, %s45
    %p52 = scmp.eq.s32.totalorder %s14, 3
    %p53 = por %p51, %p52
    %p54 = scmp.ne.s32.totalorder %s45, %s46
    %p55 = scmp.eq.s32.totalorder %s14, 0
    %p56 = por %p54, %p55
    %p57 = scmp.ne.s32.totalorder %s45, %s46
    %p58 = scmp.eq.s32.totalorder %s15, 3
    %p59 = por %p57, %p58
    %p61 = scmp.ne.s32.totalorder %s46, %s60
    %p62 = scmp.eq.s32.totalorder %s15, 0
    %p63 = por %p61, %p62
    %s65 = sadd.s32 %s64, 1
    %p68 = scmp.eq.s32.totalorder %s9, 3
    %p69 = scmp.ne.s32.totalorder %s64, %s66
    %p70 = scmp.eq.s32.totalorder %s9, 0
    %p71 = por %p69, %p70
    %p72 = scmp.ne.s32.totalorder %s64, %s66
    %p73 = scmp.eq.s32.totalorder %s14, 3
    %p74 = por %p72, %p73
    %p75 = scmp.ne.s32.totalorder %s66, %s67
    %p76 = scmp.eq.s32.totalorder %s14, 0
    %p77 = por %p75, %p76
    %p78 = scmp.ne.s32.totalorder %s66, %s67
    %p79 = scmp.eq.s32.totalorder %s15, 3
    %p80 = por %p78, %p79
    %p82 = scmp.ne.s32.totalorder %s67, %s81
    %p83 = scmp.eq.s32.totalorder %s15, 0
    %p84 = por %p82, %p83
    %s85 = ssub.s32 %s9, %s16
    %p86 = scmp.eq.s32.totalorder %s85, 0
    %s88 = sadd.s32 %s87, 1
    %s89 = scalar_select %p86, %s87, %s88
    %p92 = pneg %p86
    %p93 = scmp.eq.s32.totalorder %s9, 3
    %p94 = por %p92, %p93
    %p95 = scmp.ne.s32.totalorder %s87, %s90
    %p96 = scmp.eq.s32.totalorder %s9, 0
    %p97 = por %p95, %p96
    %p98 = scmp.ne.s32.totalorder %s87, %s90
    %p99 = scmp.eq.s32.totalorder %s14, 3
    %p100 = por %p98, %p99
    %p101 = scmp.ne.s32.totalorder %s90, %s91
    %p102 = scmp.eq.s32.totalorder %s14, 0
    %p103 = por %p101, %p102
    %p104 = scmp.ne.s32.totalorder %s90, %s91
    %p105 = scmp.eq.s32.totalorder %s15, 3
    %p106 = por %p104, %p105
    %p108 = scmp.ne.s32.totalorder %s91, %s107
    %p109 = scmp.eq.s32.totalorder %s15, 0
    %p110 = por %p108, %p109
    %p111 = scmp.le.s32.totalorder 1, %s9
    %p112 = scmp.lt.s32.totalorder %s9, 5
    %p113 = pnand %p111, %p112
    %p114 = pneg %p113
    // Predicated region
    $region9: #{dimpnet_forward.6} parent=5 // pred_check
      _
    $region10: #{dimpnet_forward.6} parent=5 // pred_check_branch
      %116 = sbr.rel (%p113) target = $region12
    $region11: #{dimpnet_forward.6} parent=5 // pred_region
      %s117 = ssub.s32 %s9, 1
      // Predicated region
      $region13: #{dimpnet_forward.6} parent=11 // pred_check
        %p118 = pneg %p56
      $region14: #{dimpnet_forward.6} parent=11 // pred_check_branch
        %120 = sbr.rel (%p118) target = $region16
      $region15: #{dimpnet_forward.6} parent=11 // pred_region
        _
      $region16: #{dimpnet_forward.6} parent=11 // pred_fallthru
        _
      // Predicated region
      $region17: #{dimpnet_forward.6} parent=11 // pred_check
        %p121 = pneg %p77
      $region18: #{dimpnet_forward.6} parent=11 // pred_check_branch
        %123 = sbr.rel (%p121) target = $region20
      $region19: #{dimpnet_forward.6} parent=11 // pred_region
        _
      $region20: #{dimpnet_forward.6} parent=11 // pred_fallthru
        _
    $region12: #{dimpnet_forward.6} parent=5 // pred_fallthru
      _
    %p124 = scmp.lt.s32.totalorder %s9, 4
    // Predicated region
    $region21: #{dimpnet_forward.6} parent=5 // pred_check
      %p125 = pneg %p124
    $region22: #{dimpnet_forward.6} parent=5 // pred_check_branch
      %127 = sbr.rel (%p125) target = $region24
    $region23: #{dimpnet_forward.6} parent=5 // pred_region
      // Predicated region
      $region25: #{dimpnet_forward.6} parent=23 // pred_check
        %p128 = pneg %p29
      $region26: #{dimpnet_forward.6} parent=23 // pred_check_branch
        %130 = sbr.rel (%p128) target = $region28
      $region27: #{dimpnet_forward.6} parent=23 // pred_region
        %s131 = smul.u32 4, %s9
        %p132 = scmp.lt.s32.totalorder %s131, 15
        %s133 = scalar_select %p132, %s131, 15
        %s134 = smul.addr %s133, 9
        %s135 = smul.addr %s134, 4
        %s136 = scalar_lea.vmem %s0, %s135
        %s137 = smul.u32 4, %s9
      $region28: #{dimpnet_forward.6} parent=23 // pred_fallthru
        _
    $region24: #{dimpnet_forward.6} parent=5 // pred_fallthru
      _
    %p138 = scmp.le.s32.totalorder 1, %s9
    %p139 = scmp.lt.s32.totalorder %s9, 5
    %p140 = pnand %p138, %p139
    %p141 = pneg %p140
    // Predicated region
    $region29: #{dimpnet_forward.6} parent=5 // pred_check
      _
    $region30: #{dimpnet_forward.6} parent=5 // pred_check_branch
      %143 = sbr.rel (%p140) target = $region32
    $region31: #{dimpnet_forward.6} parent=5 // pred_region
      %s144 = ssub.s32 %s9, 1
      %s145 = smul.u32 4, %s14
      %p146 = scmp.lt.s32.totalorder %s145, 15
      %s147 = scalar_select %p146, %s145, 15
      %s148 = smul.addr %s147, 9
      %s149 = smul.addr %s148, 4
      %s150 = scalar_lea.vmem %s0, %s149
      %p151 = pneg %p35
      %p152 = pneg %p32
      %p153 = pneg %p56
      %p154 = pneg %p53
      %p155 = pneg %p77
      %p156 = pneg %p74
      %p157 = pneg %p103
      %p158 = pneg %p100
      %s159 = smul.u32 4, %s14
      %p160 = scmp.lt.s32.totalorder %s159, 15
      %s161 = scalar_select %p160, %s159, 15
      %s162 = smul.addr %s161, 4
      %s163 = scalar_lea.vmem %s3, %s162
      %s164 = smul.u32 4, %s14
      %p165 = scmp.lt.s32.totalorder %s164, 15
      %s166 = scalar_select %p165, %s164, 15
      %s167 = smul.addr %s166, 9
      %s168 = smul.addr %s167, 4
      %s169 = scalar_lea.vmem %s0, %s168
      %s170 = smul.u32 4, %s14
      %s171 = smul.u32 4, %s14
      %p172 = scmp.lt.s32.totalorder %s171, 15
      %s173 = scalar_select %p172, %s171, 15
      %s174 = smul.addr %s173, 4
      %s175 = scalar_lea.vmem %s3, %s174
      %s176 = smul.u32 4, %s14
      %v177 = vld [vmem:[%s169] sm:$0xff]
      %v178 = vld [vmem:[%s169 + $0x8] sm:$0xff]
      %v179 = vld [vmem:[%s169 + $0x10] sm:$0xff]
      %v180 = vld [vmem:[%s169 + $0x18] sm:$0xff]
      %v181 = vld [vmem:[%s169 + $0x20] sm:$0xf]
      %v182 = vld [vmem:[%s169 + $0x24] sm:$0xff]
      %v183 = vld [vmem:[%s169 + $0x2c] sm:$0xff]
      %v184 = vld [vmem:[%s169 + $0x34] sm:$0xff]
      %v185 = vld [vmem:[%s169 + $0x3c] sm:$0xff]
      %v186 = vld [vmem:[%s169 + $0x44] sm:$0xf]
      %v187 = vld [vmem:[%s169 + $0x48] sm:$0xff]
      %v188 = vld [vmem:[%s169 + $0x50] sm:$0xff]
      %v189 = vld [vmem:[%s169 + $0x58] sm:$0xff]
      %v190 = vld [vmem:[%s169 + $0x60] sm:$0xff]
      %v191 = vld [vmem:[%s169 + $0x68] sm:$0xf]
      %v192 = vld [vmem:[%s169 + $0x6c] sm:$0xff]
      %v193 = vld [vmem:[%s169 + $0x74] sm:$0xff]
      %v194 = vld [vmem:[%s169 + $0x7c] sm:$0xff]
      %v195 = vld [vmem:[%s169 + $0x84] sm:$0xff]
      %v196 = vld [vmem:[%s169 + $0x8c] sm:$0xf]
      %v197 = vld [vmem:[%s1] sm:$0xf]
      %v198 = vld [vmem:[%s1 + $0x4] sm:$0xf]
      %v199 = vld [vmem:[%s1 + $0x8] sm:$0xf]
      %v200 = vld [vmem:[%s1 + $0xc] sm:$0xf]
      %v201 = vld [vmem:[%s1 + $0x10] sm:$0xf]
      %v202 = vld [vmem:[%s1 + $0x14] sm:$0xf]
      %v203 = vld [vmem:[%s1 + $0x18] sm:$0xf]
      %v204 = vld [vmem:[%s1 + $0x1c] sm:$0xf]
      %v205 = vld [vmem:[%s1 + $0x20] sm:$0xf]
      %v206 = vld [vmem:[%s1 + $0x24] sm:$0xf]
      %v207 = vld [vmem:[%s1 + $0x28] sm:$0xf]
      %v208 = vld [vmem:[%s1 + $0x2c] sm:$0xf]
      %v209 = vld [vmem:[%s1 + $0x30] sm:$0xf]
      %v210 = vld [vmem:[%s1 + $0x34] sm:$0xf]
      %v211 = vld [vmem:[%s1 + $0x38] sm:$0xf]
      %v212 = vld [vmem:[%s1 + $0x3c] sm:$0xf]
      %v213 = vld [vmem:[%s1 + $0x40] sm:$0xf]
      %v214 = vld [vmem:[%s1 + $0x44] sm:$0xf]
      %v215 = vld [vmem:[%s1 + $0x48] sm:$0xf]
      %v216 = vld [vmem:[%s1 + $0x4c] sm:$0xf]
      %v217 = vld [vmem:[%s1 + $0x50] sm:$0xf]
      %v218 = vld [vmem:[%s1 + $0x54] sm:$0xf]
      %v219 = vld [vmem:[%s1 + $0x58] sm:$0xf]
      %v220 = vld [vmem:[%s1 + $0x5c] sm:$0xf]
      %v221 = vld [vmem:[%s1 + $0x60] sm:$0xf]
      %v222 = vld [vmem:[%s1 + $0x64] sm:$0xf]
      %v223 = vld [vmem:[%s1 + $0x68] sm:$0xf]
      %v224 = vld [vmem:[%s1 + $0x6c] sm:$0xf]
      %v225 = vld [vmem:[%s1 + $0x70] sm:$0xf]
      %v226 = vld [vmem:[%s1 + $0x74] sm:$0xf]
      %v227 = vld [vmem:[%s1 + $0x78] sm:$0xf]
      %v228 = vld [vmem:[%s1 + $0x7c] sm:$0xf]
      %v229 = vld [vmem:[%s1 + $0x80] sm:$0xf]
      %v230 = vld [vmem:[%s1 + $0x84] sm:$0xf]
      %v231 = vld [vmem:[%s1 + $0x88] sm:$0xf]
      %v232 = vld [vmem:[%s1 + $0x8c] sm:$0xf]
      %v233 = vld [vmem:[%s1 + $0x90] sm:$0xf]
      %v234 = vld [vmem:[%s1 + $0x94] sm:$0xf]
      %v235 = vld [vmem:[%s1 + $0x98] sm:$0xf]
      %v236 = vld [vmem:[%s1 + $0x9c] sm:$0xf]
      %v237 = vld [vmem:[%s1 + $0xa0] sm:$0xf]
      %v238 = vld [vmem:[%s1 + $0xa4] sm:$0xf]
      %v239 = vld [vmem:[%s1 + $0xa8] sm:$0xf]
      %v240 = vld [vmem:[%s1 + $0xac] sm:$0xf]
      %v241 = vld [vmem:[%s1 + $0xb0] sm:$0xf]
      %v242 = vld [vmem:[%s1 + $0xb4] sm:$0xf]
      %v243 = vld [vmem:[%s1 + $0xb8] sm:$0xf]
      %v244 = vld [vmem:[%s1 + $0xbc] sm:$0xf]
      %v245 = vld [vmem:[%s1 + $0xc0] sm:$0xf]
      %v246 = vld [vmem:[%s1 + $0xc4] sm:$0xf]
      %v247 = vld [vmem:[%s1 + $0xc8] sm:$0xf]
      %v248 = vld [vmem:[%s1 + $0xcc] sm:$0xf]
      %v249 = vld [vmem:[%s1 + $0xd0] sm:$0xf]
      %v250 = vld [vmem:[%s1 + $0xd4] sm:$0xf]
      %v251 = vld [vmem:[%s1 + $0xd8] sm:$0xf]
      %v252 = vld [vmem:[%s1 + $0xdc] sm:$0xf]
      %v253 = vld [vmem:[%s1 + $0xe0] sm:$0xf]
      %v254 = vld [vmem:[%s1 + $0xe4] sm:$0xf]
      %v255 = vld [vmem:[%s1 + $0xe8] sm:$0xf]
      %v256 = vld [vmem:[%s1 + $0xec] sm:$0xf]
      %v257 = vld [vmem:[%s1 + $0xf0] sm:$0xf]
      %v258 = vld [vmem:[%s1 + $0xf4] sm:$0xf]
      %v259 = vld [vmem:[%s1 + $0xf8] sm:$0xf]
      %v260 = vld [vmem:[%s1 + $0xfc] sm:$0xf]
      %v261 = vld [vmem:[%s1 + $0x100] sm:$0xf]
      %v262 = vld [vmem:[%s1 + $0x104] sm:$0xf]
      %v263 = vld [vmem:[%s1 + $0x108] sm:$0xf]
      %v264 = vld [vmem:[%s1 + $0x10c] sm:$0xf]
      %v265 = vld [vmem:[%s1 + $0x110] sm:$0xf]
      %v266 = vld [vmem:[%s1 + $0x114] sm:$0xf]
      %v267 = vld [vmem:[%s1 + $0x118] sm:$0xf]
      %v268 = vld [vmem:[%s1 + $0x11c] sm:$0xf]
      %v269 = vld [vmem:[%s1 + $0x120] sm:$0xf]
      %v270 = vld [vmem:[%s1 + $0x124] sm:$0xf]
      %v271 = vld [vmem:[%s1 + $0x128] sm:$0xf]
      %v272 = vld [vmem:[%s1 + $0x12c] sm:$0xf]
      %v273 = vld [vmem:[%s1 + $0x130] sm:$0xf]
      %v274 = vld [vmem:[%s1 + $0x134] sm:$0xf]
      %v275 = vld [vmem:[%s1 + $0x138] sm:$0xf]
      %v276 = vld [vmem:[%s1 + $0x13c] sm:$0xf]
      %v277 = vld [vmem:[%s1 + $0x140] sm:$0xf]
      %v278 = vld [vmem:[%s1 + $0x144] sm:$0xf]
      %v279 = vld [vmem:[%s1 + $0x148] sm:$0xf]
      %v280 = vld [vmem:[%s1 + $0x14c] sm:$0xf]
      %v281 = vld [vmem:[%s1 + $0x150] sm:$0xf]
      %v282 = vld [vmem:[%s1 + $0x154] sm:$0xf]
      %v283 = vld [vmem:[%s1 + $0x158] sm:$0xf]
      %v284 = vld [vmem:[%s1 + $0x15c] sm:$0xf]
      %v285 = vld [vmem:[%s1 + $0x160] sm:$0xf]
      %v286 = vld [vmem:[%s1 + $0x164] sm:$0xf]
      %v287 = vld [vmem:[%s1 + $0x168] sm:$0xf]
      %v288 = vld [vmem:[%s1 + $0x16c] sm:$0xf]
      %v289 = vld [vmem:[%s1 + $0x170] sm:$0xf]
      %v290 = vld [vmem:[%s1 + $0x174] sm:$0xf]
      %v291 = vld [vmem:[%s1 + $0x178] sm:$0xf]
      %v292 = vld [vmem:[%s1 + $0x17c] sm:$0xf]
      %v293 = vld [vmem:[%s1 + $0x180] sm:$0xf]
      %v294 = vld [vmem:[%s1 + $0x184] sm:$0xf]
      %v295 = vld [vmem:[%s1 + $0x188] sm:$0xf]
      %v296 = vld [vmem:[%s1 + $0x18c] sm:$0xf]
      %v297 = vld [vmem:[%s1 + $0x190] sm:$0xf]
      %v298 = vld [vmem:[%s1 + $0x194] sm:$0xf]
      %v299 = vld [vmem:[%s1 + $0x198] sm:$0xf]
      %v300 = vld [vmem:[%s1 + $0x19c] sm:$0xf]
      %v301 = vld [vmem:[%s1 + $0x1a0] sm:$0xf]
      %v302 = vld [vmem:[%s1 + $0x1a4] sm:$0xf]
      %v303 = vld [vmem:[%s1 + $0x1a8] sm:$0xf]
      %v304 = vld [vmem:[%s1 + $0x1ac] sm:$0xf]
      %v305 = vld [vmem:[%s1 + $0x1b0] sm:$0xf]
      %v306 = vld [vmem:[%s1 + $0x1b4] sm:$0xf]
      %v307 = vld [vmem:[%s1 + $0x1b8] sm:$0xf]
      %v308 = vld [vmem:[%s1 + $0x1bc] sm:$0xf]
      %v309 = vld [vmem:[%s1 + $0x1c0] sm:$0xf]
      %v310 = vld [vmem:[%s1 + $0x1c4] sm:$0xf]
      %v311 = vld [vmem:[%s1 + $0x1c8] sm:$0xf]
      %v312 = vld [vmem:[%s1 + $0x1cc] sm:$0xf]
      %v313 = vld [vmem:[%s1 + $0x1d0] sm:$0xf]
      %v314 = vld [vmem:[%s1 + $0x1d4] sm:$0xf]
      %v315 = vld [vmem:[%s1 + $0x1d8] sm:$0xf]
      %v316 = vld [vmem:[%s1 + $0x1dc] sm:$0xf]
      %v317 = vld [vmem:[%s1 + $0x1e0] sm:$0xf]
      %v318 = vld [vmem:[%s1 + $0x1e4] sm:$0xf]
      %v319 = vld [vmem:[%s1 + $0x1e8] sm:$0xf]
      %v320 = vld [vmem:[%s1 + $0x1ec] sm:$0xf]
      %v321 = vld [vmem:[%s1 + $0x1f0] sm:$0xf]
      %v322 = vld [vmem:[%s1 + $0x1f4] sm:$0xf]
      %v323 = vld [vmem:[%s1 + $0x1f8] sm:$0xf]
      %v324 = vld [vmem:[%s1 + $0x1fc] sm:$0xf]
      %v325 = vld [vmem:[%s1 + $0x200] sm:$0xf]
      %v326 = vld [vmem:[%s1 + $0x204] sm:$0xf]
      %v327 = vld [vmem:[%s1 + $0x208] sm:$0xf]
      %v328 = vld [vmem:[%s1 + $0x20c] sm:$0xf]
      %v329 = vld [vmem:[%s1 + $0x210] sm:$0xf]
      %v330 = vld [vmem:[%s1 + $0x214] sm:$0xf]
      %v331 = vld [vmem:[%s1 + $0x218] sm:$0xf]
      %v332 = vld [vmem:[%s1 + $0x21c] sm:$0xf]
      %v333 = vld [vmem:[%s1 + $0x220] sm:$0xf]
      %v334 = vld [vmem:[%s1 + $0x224] sm:$0xf]
      %v335 = vld [vmem:[%s1 + $0x228] sm:$0xf]
      %v336 = vld [vmem:[%s1 + $0x22c] sm:$0xf]
      %v337 = vld [vmem:[%s1 + $0x230] sm:$0xf]
      %v338 = vld [vmem:[%s1 + $0x234] sm:$0xf]
      %v339 = vld [vmem:[%s1 + $0x238] sm:$0xf]
      %v340 = vld [vmem:[%s1 + $0x23c] sm:$0xf]
      %v341 = vld [vmem:[%s2] sm:$0x1]
      %v343 = vperm.slane %v341, 0
      %v365 = vunpack.c.l.b16 %v177
      %v366 = vunpack.c.h.b16 %v177
      %v367 = vunpack.c.l.b16 %v178
      %v368 = vunpack.c.h.b16 %v178
      %v369 = vunpack.c.l.b16 %v179
      %v370 = vunpack.c.h.b16 %v179
      %v371 = vunpack.c.l.b16 %v180
      %v372 = vunpack.c.h.b16 %v180
      %v373 = vunpack.c.l.b16 %v181
      %v374 = vunpack.c.l.b16 %v182
      %v375 = vunpack.c.h.b16 %v182
      %v376 = vunpack.c.l.b16 %v183
      %v377 = vunpack.c.h.b16 %v183
      %v378 = vunpack.c.l.b16 %v184
      %v379 = vunpack.c.h.b16 %v184
      %v380 = vunpack.c.l.b16 %v185
      %v381 = vunpack.c.h.b16 %v185
      %v382 = vunpack.c.l.b16 %v186
      %v383 = vunpack.c.l.b16 %v187
      %v384 = vunpack.c.h.b16 %v187
      %v385 = vunpack.c.l.b16 %v188
      %v386 = vunpack.c.h.b16 %v188
      %v387 = vunpack.c.l.b16 %v189
      %v388 = vunpack.c.h.b16 %v189
      %v389 = vunpack.c.l.b16 %v190
      %v390 = vunpack.c.h.b16 %v190
      %v391 = vunpack.c.l.b16 %v191
      %v392 = vunpack.c.l.b16 %v192
      %v393 = vunpack.c.h.b16 %v192
      %v394 = vunpack.c.l.b16 %v193
      %v395 = vunpack.c.h.b16 %v193
      %v396 = vunpack.c.l.b16 %v194
      %v397 = vunpack.c.h.b16 %v194
      %v398 = vunpack.c.l.b16 %v195
      %v399 = vunpack.c.h.b16 %v195
      %v400 = vunpack.c.l.b16 %v196
      %v401 = vpack.c.b16 %v374, %v365
      %v402 = vpack.c.b16 %v375, %v366
      %v403 = vpack.c.b16 %v376, %v367
      %v404 = vpack.c.b16 %v377, %v368
      %v405 = vpack.c.b16 %v378, %v369
      %v406 = vpack.c.b16 %v379, %v370
      %v407 = vpack.c.b16 %v380, %v371
      %v408 = vpack.c.b16 %v381, %v372
      %v409 = vpack.c.b16 %v382, %v373
      %v410 = vpack.c.b16 %v392, %v383
      %v411 = vpack.c.b16 %v393, %v384
      %v412 = vpack.c.b16 %v394, %v385
      %v413 = vpack.c.b16 %v395, %v386
      %v414 = vpack.c.b16 %v396, %v387
      %v415 = vpack.c.b16 %v397, %v388
      %v416 = vpack.c.b16 %v398, %v389
      %v417 = vpack.c.b16 %v399, %v390
      %v418 = vpack.c.b16 %v400, %v391
      %v581 = vunpack.c.l.b16 %v197
      %v582 = vunpack.c.l.b16 %v198
      %v583 = vunpack.c.l.b16 %v199
      %v584 = vunpack.c.l.b16 %v200
      %v585 = vunpack.c.l.b16 %v201
      %v586 = vunpack.c.l.b16 %v202
      %v587 = vunpack.c.l.b16 %v203
      %v588 = vunpack.c.l.b16 %v204
      %v589 = vunpack.c.l.b16 %v205
      %v590 = vunpack.c.l.b16 %v206
      %v591 = vunpack.c.l.b16 %v207
      %v592 = vunpack.c.l.b16 %v208
      %v593 = vunpack.c.l.b16 %v209
      %v594 = vunpack.c.l.b16 %v210
      %v595 = vunpack.c.l.b16 %v211
      %v596 = vunpack.c.l.b16 %v212
      %v597 = vunpack.c.l.b16 %v213
      %v598 = vunpack.c.l.b16 %v214
      %v599 = vunpack.c.l.b16 %v215
      %v600 = vunpack.c.l.b16 %v216
      %v601 = vunpack.c.l.b16 %v217
      %v602 = vunpack.c.l.b16 %v218
      %v603 = vunpack.c.l.b16 %v219
      %v604 = vunpack.c.l.b16 %v220
      %v605 = vunpack.c.l.b16 %v221
      %v606 = vunpack.c.l.b16 %v222
      %v607 = vunpack.c.l.b16 %v223
      %v608 = vunpack.c.l.b16 %v224
      %v609 = vunpack.c.l.b16 %v225
      %v610 = vunpack.c.l.b16 %v226
      %v611 = vunpack.c.l.b16 %v227
      %v612 = vunpack.c.l.b16 %v228
      %v613 = vunpack.c.l.b16 %v229
      %v614 = vunpack.c.l.b16 %v230
      %v615 = vunpack.c.l.b16 %v231
      %v616 = vunpack.c.l.b16 %v232
      %v617 = vunpack.c.l.b16 %v233
      %v618 = vunpack.c.l.b16 %v234
      %v619 = vunpack.c.l.b16 %v235
      %v620 = vunpack.c.l.b16 %v236
      %v621 = vunpack.c.l.b16 %v237
      %v622 = vunpack.c.l.b16 %v238
      %v623 = vunpack.c.l.b16 %v239
      %v624 = vunpack.c.l.b16 %v240
      %v625 = vunpack.c.l.b16 %v241
      %v626 = vunpack.c.l.b16 %v242
      %v627 = vunpack.c.l.b16 %v243
      %v628 = vunpack.c.l.b16 %v244
      %v629 = vunpack.c.l.b16 %v245
      %v630 = vunpack.c.l.b16 %v246
      %v631 = vunpack.c.l.b16 %v247
      %v632 = vunpack.c.l.b16 %v248
      %v633 = vunpack.c.l.b16 %v249
      %v634 = vunpack.c.l.b16 %v250
      %v635 = vunpack.c.l.b16 %v251
      %v636 = vunpack.c.l.b16 %v252
      %v637 = vunpack.c.l.b16 %v253
      %v638 = vunpack.c.l.b16 %v254
      %v639 = vunpack.c.l.b16 %v255
      %v640 = vunpack.c.l.b16 %v256
      %v641 = vunpack.c.l.b16 %v257
      %v642 = vunpack.c.l.b16 %v258
      %v643 = vunpack.c.l.b16 %v259
      %v644 = vunpack.c.l.b16 %v260
      %v645 = vunpack.c.l.b16 %v261
      %v646 = vunpack.c.l.b16 %v262
      %v647 = vunpack.c.l.b16 %v263
      %v648 = vunpack.c.l.b16 %v264
      %v649 = vunpack.c.l.b16 %v265
      %v650 = vunpack.c.l.b16 %v266
      %v651 = vunpack.c.l.b16 %v267
      %v652 = vunpack.c.l.b16 %v268
      %v653 = vunpack.c.l.b16 %v269
      %v654 = vunpack.c.l.b16 %v270
      %v655 = vunpack.c.l.b16 %v271
      %v656 = vunpack.c.l.b16 %v272
      %v657 = vunpack.c.l.b16 %v273
      %v658 = vunpack.c.l.b16 %v274
      %v659 = vunpack.c.l.b16 %v275
      %v660 = vunpack.c.l.b16 %v276
      %v661 = vunpack.c.l.b16 %v277
      %v662 = vunpack.c.l.b16 %v278
      %v663 = vunpack.c.l.b16 %v279
      %v664 = vunpack.c.l.b16 %v280
      %v665 = vunpack.c.l.b16 %v281
      %v666 = vunpack.c.l.b16 %v282
      %v667 = vunpack.c.l.b16 %v283
      %v668 = vunpack.c.l.b16 %v284
      %v669 = vunpack.c.l.b16 %v285
      %v670 = vunpack.c.l.b16 %v286
      %v671 = vunpack.c.l.b16 %v287
      %v672 = vunpack.c.l.b16 %v288
      %v673 = vunpack.c.l.b16 %v289
      %v674 = vunpack.c.l.b16 %v290
      %v675 = vunpack.c.l.b16 %v291
      %v676 = vunpack.c.l.b16 %v292
      %v677 = vunpack.c.l.b16 %v293
      %v678 = vunpack.c.l.b16 %v294
      %v679 = vunpack.c.l.b16 %v295
      %v680 = vunpack.c.l.b16 %v296
      %v681 = vunpack.c.l.b16 %v297
      %v682 = vunpack.c.l.b16 %v298
      %v683 = vunpack.c.l.b16 %v299
      %v684 = vunpack.c.l.b16 %v300
      %v685 = vunpack.c.l.b16 %v301
      %v686 = vunpack.c.l.b16 %v302
      %v687 = vunpack.c.l.b16 %v303
      %v688 = vunpack.c.l.b16 %v304
      %v689 = vunpack.c.l.b16 %v305
      %v690 = vunpack.c.l.b16 %v306
      %v691 = vunpack.c.l.b16 %v307
      %v692 = vunpack.c.l.b16 %v308
      %v693 = vunpack.c.l.b16 %v309
      %v694 = vunpack.c.l.b16 %v310
      %v695 = vunpack.c.l.b16 %v311
      %v696 = vunpack.c.l.b16 %v312
      %v697 = vunpack.c.l.b16 %v313
      %v698 = vunpack.c.l.b16 %v314
      %v699 = vunpack.c.l.b16 %v315
      %v700 = vunpack.c.l.b16 %v316
      %v701 = vunpack.c.l.b16 %v317
      %v702 = vunpack.c.l.b16 %v318
      %v703 = vunpack.c.l.b16 %v319
      %v704 = vunpack.c.l.b16 %v320
      %v705 = vunpack.c.l.b16 %v321
      %v706 = vunpack.c.l.b16 %v322
      %v707 = vunpack.c.l.b16 %v323
      %v708 = vunpack.c.l.b16 %v324
      %v709 = vunpack.c.l.b16 %v325
      %v710 = vunpack.c.l.b16 %v326
      %v711 = vunpack.c.l.b16 %v327
      %v712 = vunpack.c.l.b16 %v328
      %v713 = vunpack.c.l.b16 %v329
      %v714 = vunpack.c.l.b16 %v330
      %v715 = vunpack.c.l.b16 %v331
      %v716 = vunpack.c.l.b16 %v332
      %v717 = vunpack.c.l.b16 %v333
      %v718 = vunpack.c.l.b16 %v334
      %v719 = vunpack.c.l.b16 %v335
      %v720 = vunpack.c.l.b16 %v336
      %v721 = vunpack.c.l.b16 %v337
      %v722 = vunpack.c.l.b16 %v338
      %v723 = vunpack.c.l.b16 %v339
      %v724 = vunpack.c.l.b16 %v340
      %v725 = vpack.c.b16 %v582, %v581
      %v726 = vpack.c.b16 %v584, %v583
      %v727 = vpack.c.b16 %v586, %v585
      %v728 = vpack.c.b16 %v588, %v587
      %v729 = vpack.c.b16 %v590, %v589
      %v730 = vpack.c.b16 %v592, %v591
      %v731 = vpack.c.b16 %v594, %v593
      %v732 = vpack.c.b16 %v596, %v595
      %v733 = vpack.c.b16 %v598, %v597
      %v734 = vpack.c.b16 %v600, %v599
      %v735 = vpack.c.b16 %v602, %v601
      %v736 = vpack.c.b16 %v604, %v603
      %v737 = vpack.c.b16 %v606, %v605
      %v738 = vpack.c.b16 %v608, %v607
      %v739 = vpack.c.b16 %v610, %v609
      %v740 = vpack.c.b16 %v612, %v611
      %v741 = vpack.c.b16 %v614, %v613
      %v742 = vpack.c.b16 %v616, %v615
      %v743 = vpack.c.b16 %v618, %v617
      %v744 = vpack.c.b16 %v620, %v619
      %v745 = vpack.c.b16 %v622, %v621
      %v746 = vpack.c.b16 %v624, %v623
      %v747 = vpack.c.b16 %v626, %v625
      %v748 = vpack.c.b16 %v628, %v627
      %v749 = vpack.c.b16 %v630, %v629
      %v750 = vpack.c.b16 %v632, %v631
      %v751 = vpack.c.b16 %v634, %v633
      %v752 = vpack.c.b16 %v636, %v635
      %v753 = vpack.c.b16 %v638, %v637
      %v754 = vpack.c.b16 %v640, %v639
      %v755 = vpack.c.b16 %v642, %v641
      %v756 = vpack.c.b16 %v644, %v643
      %v757 = vpack.c.b16 %v646, %v645
      %v758 = vpack.c.b16 %v648, %v647
      %v759 = vpack.c.b16 %v650, %v649
      %v760 = vpack.c.b16 %v652, %v651
      %v761 = vpack.c.b16 %v654, %v653
      %v762 = vpack.c.b16 %v656, %v655
      %v763 = vpack.c.b16 %v658, %v657
      %v764 = vpack.c.b16 %v660, %v659
      %v765 = vpack.c.b16 %v662, %v661
      %v766 = vpack.c.b16 %v664, %v663
      %v767 = vpack.c.b16 %v666, %v665
      %v768 = vpack.c.b16 %v668, %v667
      %v769 = vpack.c.b16 %v670, %v669
      %v770 = vpack.c.b16 %v672, %v671
      %v771 = vpack.c.b16 %v674, %v673
      %v772 = vpack.c.b16 %v676, %v675
      %v773 = vpack.c.b16 %v678, %v677
      %v774 = vpack.c.b16 %v680, %v679
      %v775 = vpack.c.b16 %v682, %v681
      %v776 = vpack.c.b16 %v684, %v683
      %v777 = vpack.c.b16 %v686, %v685
      %v778 = vpack.c.b16 %v688, %v687
      %v779 = vpack.c.b16 %v690, %v689
      %v780 = vpack.c.b16 %v692, %v691
      %v781 = vpack.c.b16 %v694, %v693
      %v782 = vpack.c.b16 %v696, %v695
      %v783 = vpack.c.b16 %v698, %v697
      %v784 = vpack.c.b16 %v700, %v699
      %v785 = vpack.c.b16 %v702, %v701
      %v786 = vpack.c.b16 %v704, %v703
      %v787 = vpack.c.b16 %v706, %v705
      %v788 = vpack.c.b16 %v708, %v707
      %v789 = vpack.c.b16 %v710, %v709
      %v790 = vpack.c.b16 %v712, %v711
      %v791 = vpack.c.b16 %v714, %v713
      %v792 = vpack.c.b16 %v716, %v715
      %v793 = vpack.c.b16 %v718, %v717
      %v794 = vpack.c.b16 %v720, %v719
      %v795 = vpack.c.b16 %v722, %v721
      %v796 = vpack.c.b16 %v724, %v723
      %869 = vmatpush.bf16.msra.mxu0 %v732
      %870 = vmatpush.bf16.msra.mxu0 %v731
      %871 = vmatpush.bf16.msra.mxu0 %v730
      %872 = vmatpush.bf16.msra.mxu0 %v729
      %873 = vmatpush.bf16.msra.mxu0 %v728
      %874 = vmatpush.bf16.msra.mxu0 %v727
      %875 = vmatpush.bf16.msra.mxu0 %v726
      %876 = vmatpush.bf16.msra.mxu0 %v725
      %877 = vmatmul.bf16.gmra.mxu0 %v401
      %v878 = vpop.f32.mrf.mxu0
      %v879 = vadd.f32 %v343, %v878
      %v880 = vpop.f32.mrf.mxu0
      %v881 = vadd.f32 %v343, %v880
      %882 = vmatmul.bf16.gmra.mxu0 %v410
      %v883 = vpop.f32.mrf.mxu0
      %v884 = vadd.f32 %v343, %v883
      %v885 = vpop.f32.mrf.mxu0
      %v886 = vadd.f32 %v343, %v885
      %887 = vdwg.mxu0
      %888 = vmatpush.bf16.msra.mxu0 %v740
      %889 = vmatpush.bf16.msra.mxu0 %v739
      %890 = vmatpush.bf16.msra.mxu0 %v738
      %891 = vmatpush.bf16.msra.mxu0 %v737
      %892 = vmatpush.bf16.msra.mxu0 %v736
      %893 = vmatpush.bf16.msra.mxu0 %v735
      %894 = vmatpush.bf16.msra.mxu0 %v734
      %895 = vmatpush.bf16.msra.mxu0 %v733
      %896 = vmatmul.bf16.gmra.mxu0 %v402
      %v897 = vpop.f32.mrf.mxu0
      %v898 = vadd.f32 %v879, %v897
      %v899 = vpop.f32.mrf.mxu0
      %v900 = vadd.f32 %v881, %v899
      %901 = vmatmul.bf16.gmra.mxu0 %v411
      %v902 = vpop.f32.mrf.mxu0
      %v903 = vadd.f32 %v884, %v902
      %v904 = vpop.f32.mrf.mxu0
      %v905 = vadd.f32 %v886, %v904
      %906 = vdwg.mxu0
      %907 = vmatpush.bf16.msra.mxu0 %v748
      %908 = vmatpush.bf16.msra.mxu0 %v747
      %909 = vmatpush.bf16.msra.mxu0 %v746
      %910 = vmatpush.bf16.msra.mxu0 %v745
      %911 = vmatpush.bf16.msra.mxu0 %v744
      %912 = vmatpush.bf16.msra.mxu0 %v743
      %913 = vmatpush.bf16.msra.mxu0 %v742
      %914 = vmatpush.bf16.msra.mxu0 %v741
      %915 = vmatmul.bf16.gmra.mxu0 %v403
      %v916 = vpop.f32.mrf.mxu0
      %v917 = vadd.f32 %v898, %v916
      %v918 = vpop.f32.mrf.mxu0
      %v919 = vadd.f32 %v900, %v918
      %920 = vmatmul.bf16.gmra.mxu0 %v412
      %v921 = vpop.f32.mrf.mxu0
      %v922 = vadd.f32 %v903, %v921
      %v923 = vpop.f32.mrf.mxu0
      %v924 = vadd.f32 %v905, %v923
      %925 = vdwg.mxu0
      %926 = vmatpush.bf16.msra.mxu0 %v756
      %927 = vmatpush.bf16.msra.mxu0 %v755
      %928 = vmatpush.bf16.msra.mxu0 %v754
      %929 = vmatpush.bf16.msra.mxu0 %v753
      %930 = vmatpush.bf16.msra.mxu0 %v752
      %931 = vmatpush.bf16.msra.mxu0 %v751
      %932 = vmatpush.bf16.msra.mxu0 %v750
      %933 = vmatpush.bf16.msra.mxu0 %v749
      %934 = vmatmul.bf16.gmra.mxu0 %v404
      %v935 = vpop.f32.mrf.mxu0
      %v936 = vadd.f32 %v917, %v935
      %v937 = vpop.f32.mrf.mxu0
      %v938 = vadd.f32 %v919, %v937
      %939 = vmatmul.bf16.gmra.mxu0 %v413
      %v940 = vpop.f32.mrf.mxu0
      %v941 = vadd.f32 %v922, %v940
      %v942 = vpop.f32.mrf.mxu0
      %v943 = vadd.f32 %v924, %v942
      %944 = vdwg.mxu0
      %945 = vmatpush.bf16.msra.mxu0 %v764
      %946 = vmatpush.bf16.msra.mxu0 %v763
      %947 = vmatpush.bf16.msra.mxu0 %v762
      %948 = vmatpush.bf16.msra.mxu0 %v761
      %949 = vmatpush.bf16.msra.mxu0 %v760
      %950 = vmatpush.bf16.msra.mxu0 %v759
      %951 = vmatpush.bf16.msra.mxu0 %v758
      %952 = vmatpush.bf16.msra.mxu0 %v757
      %953 = vmatmul.bf16.gmra.mxu0 %v405
      %v954 = vpop.f32.mrf.mxu0
      %v955 = vadd.f32 %v936, %v954
      %v956 = vpop.f32.mrf.mxu0
      %v957 = vadd.f32 %v938, %v956
      %958 = vmatmul.bf16.gmra.mxu0 %v414
      %v959 = vpop.f32.mrf.mxu0
      %v960 = vadd.f32 %v941, %v959
      %v961 = vpop.f32.mrf.mxu0
      %v962 = vadd.f32 %v943, %v961
      %963 = vdwg.mxu0
      %964 = vmatpush.bf16.msra.mxu0 %v772
      %965 = vmatpush.bf16.msra.mxu0 %v771
      %966 = vmatpush.bf16.msra.mxu0 %v770
      %967 = vmatpush.bf16.msra.mxu0 %v769
      %968 = vmatpush.bf16.msra.mxu0 %v768
      %969 = vmatpush.bf16.msra.mxu0 %v767
      %970 = vmatpush.bf16.msra.mxu0 %v766
      %971 = vmatpush.bf16.msra.mxu0 %v765
      %972 = vmatmul.bf16.gmra.mxu0 %v406
      %v973 = vpop.f32.mrf.mxu0
      %v974 = vadd.f32 %v955, %v973
      %v975 = vpop.f32.mrf.mxu0
      %v976 = vadd.f32 %v957, %v975
      %977 = vmatmul.bf16.gmra.mxu0 %v415
      %v978 = vpop.f32.mrf.mxu0
      %v979 = vadd.f32 %v960, %v978
      %v980 = vpop.f32.mrf.mxu0
      %v981 = vadd.f32 %v962, %v980
      %982 = vdwg.mxu0
      %983 = vmatpush.bf16.msra.mxu0 %v780
      %984 = vmatpush.bf16.msra.mxu0 %v779
      %985 = vmatpush.bf16.msra.mxu0 %v778
      %986 = vmatpush.bf16.msra.mxu0 %v777
      %987 = vmatpush.bf16.msra.mxu0 %v776
      %988 = vmatpush.bf16.msra.mxu0 %v775
      %989 = vmatpush.bf16.msra.mxu0 %v774
      %990 = vmatpush.bf16.msra.mxu0 %v773
      %991 = vmatmul.bf16.gmra.mxu0 %v407
      %v992 = vpop.f32.mrf.mxu0
      %v993 = vadd.f32 %v974, %v992
      %v994 = vpop.f32.mrf.mxu0
      %v995 = vadd.f32 %v976, %v994
      %996 = vmatmul.bf16.gmra.mxu0 %v416
      %v997 = vpop.f32.mrf.mxu0
      %v998 = vadd.f32 %v979, %v997
      %v999 = vpop.f32.mrf.mxu0
      %v1000 = vadd.f32 %v981, %v999
      %1001 = vdwg.mxu0
      %1002 = vmatpush.bf16.msra.mxu0 %v788
      %1003 = vmatpush.bf16.msra.mxu0 %v787
      %1004 = vmatpush.bf16.msra.mxu0 %v786
      %1005 = vmatpush.bf16.msra.mxu0 %v785
      %1006 = vmatpush.bf16.msra.mxu0 %v784
      %1007 = vmatpush.bf16.msra.mxu0 %v783
      %1008 = vmatpush.bf16.msra.mxu0 %v782
      %1009 = vmatpush.bf16.msra.mxu0 %v781
      %1010 = vmatmul.bf16.gmra.mxu0 %v408
      %v1011 = vpop.f32.mrf.mxu0
      %v1012 = vadd.f32 %v993, %v1011
      %v1013 = vpop.f32.mrf.mxu0
      %v1014 = vadd.f32 %v995, %v1013
      %1015 = vmatmul.bf16.gmra.mxu0 %v417
      %v1016 = vpop.f32.mrf.mxu0
      %v1017 = vadd.f32 %v998, %v1016
      %v1018 = vpop.f32.mrf.mxu0
      %v1019 = vadd.f32 %v1000, %v1018
      %1020 = vdwg.mxu0
      %1021 = vmatpush.bf16.msra.mxu0 %v796
      %1022 = vmatpush.bf16.msra.mxu0 %v795
      %1023 = vmatpush.bf16.msra.mxu0 %v794
      %1024 = vmatpush.bf16.msra.mxu0 %v793
      %1025 = vmatpush.bf16.msra.mxu0 %v792
      %1026 = vmatpush.bf16.msra.mxu0 %v791
      %1027 = vmatpush.bf16.msra.mxu0 %v790
      %1028 = vmatpush.bf16.msra.mxu0 %v789
      %1029 = vmatmul.bf16.gmra.mxu0 %v409
      %v1030 = vpop.f32.mrf.mxu0
      %v1031 = vadd.f32 %v1012, %v1030
      %v1032 = vpop.f32.mrf.mxu0
      %v1033 = vadd.f32 %v1014, %v1032
      %1034 = vmatmul.bf16.gmra.mxu0 %v418
      %v1035 = vpop.f32.mrf.mxu0
      %v1036 = vadd.f32 %v1017, %v1035
      %v1037 = vpop.f32.mrf.mxu0
      %v1038 = vadd.f32 %v1019, %v1037
      %1039 = vdwg.mxu0
      %v1040 = vmax.f32 %v1031, 0.0
      %v1041 = vmax.f32 %v1033, 0.0
      %v1042 = vmax.f32 %v1036, 0.0
      %v1043 = vmax.f32 %v1038, 0.0
      %v1044 = vpack.c.bf16 %v1040, %v1040
      %v1045 = vpack.c.bf16 %v1041, %v1041
      %v1046 = vpack.c.bf16 %v1042, %v1042
      %v1047 = vpack.c.bf16 %v1043, %v1043
      %1048 = vst [vmem:[%s175] sm:$0xf] %v1044
      %1049 = vst [vmem:[%s175 + $0x4] sm:$0xf] %v1045
      %1050 = vst [vmem:[%s175 + $0x8] sm:$0xf] %v1046
      %1051 = vst [vmem:[%s175 + $0xc] sm:$0xf] %v1047
      %s1052 = smul.u32 4, %s14
      %p1053 = scmp.lt.s32.totalorder %s1052, 15
      %s1054 = scalar_select %p1053, %s1052, 15
      %s1055 = smul.addr %s1054, 4
      %s1056 = scalar_lea.vmem %s3, %s1055
      // Predicated region
      $region33: #{dimpnet_forward.6} parent=31 // pred_check
        %p1057 = pneg %p100
      $region34: #{dimpnet_forward.6} parent=31 // pred_check_branch
        %1059 = sbr.rel (%p1057) target = $region36
      $region35: #{dimpnet_forward.6} parent=31 // pred_region
        %s1060 = smul.u32 4, %s14
      $region36: #{dimpnet_forward.6} parent=31 // pred_fallthru
        _
    $region32: #{dimpnet_forward.6} parent=5 // pred_fallthru
      _
    %p1061 = scmp.le.s32.totalorder 2, %s9
    // Predicated region
    $region37: #{dimpnet_forward.6} parent=5 // pred_check
      %p1062 = pneg %p1061
    $region38: #{dimpnet_forward.6} parent=5 // pred_check_branch
      %1064 = sbr.rel (%p1062) target = $region40
    $region39: #{dimpnet_forward.6} parent=5 // pred_region
      %s1065 = ssub.s32 %s9, 2
      // Predicated region
      $region41: #{dimpnet_forward.6} parent=39 // pred_check
        %p1066 = pneg %p106
      $region42: #{dimpnet_forward.6} parent=39 // pred_check_branch
        %1068 = sbr.rel (%p1066) target = $region44
      $region43: #{dimpnet_forward.6} parent=39 // pred_region
        %s1069 = smul.u32 4, %s15
        %p1070 = scmp.lt.s32.totalorder %s1069, 15
        %s1071 = scalar_select %p1070, %s1069, 15
        %s1072 = smul.addr %s1071, 4
        %s1073 = scalar_lea.vmem %s3, %s1072
      $region44: #{dimpnet_forward.6} parent=39 // pred_fallthru
        _
    $region40: #{dimpnet_forward.6} parent=5 // pred_fallthru
      _
  $region6: #{dimpnet_forward.6} parent=0 // loop_footer
    %s13 = sadd.s32 1, %s9
  $region7: #{dimpnet_forward.6} parent=0 // loop_footer_branch
    %8 = sbr.rel target = $region3
  $region8: #{dimpnet_forward.6} parent=0 // loop_exit
    _

// kernel: dimpnet_forward.7
$region0: #{dimpnet_forward.7}
  #allocation0 [shape = 'u32[]', space=smem, size = 0x4, offset = 0x4, fixed_abs, tag = 'smem constant byte address 0x4 - core index']
  #allocation1 [shape = 'u32[72,128]{1,0:T(1,128)}', space=vmem, size = 0x9000, scoped, tag = 'internal scratch']
  %s0 = inlined_call_operand.vmem [shape: bf16[2,64,128], index: 0, kind: input, shape index: {}]
  %s1 = inlined_call_operand.vmem [shape: bf16[2,256,128], index: 1, kind: input, shape index: {}]
  %s2 = inlined_call_operand.vmem [shape: f32[2,1,32], index: 2, kind: input, shape index: {}]
  %s3 = inlined_call_operand.vmem [shape: f32[2,1,256], index: 3, kind: input, shape index: {}]
  %s4 = inlined_call_operand.vmem [shape: f32[2,2,8], index: 4, kind: input, shape index: {}]
  %s5 = inlined_call_operand.vmem [shape: bf16[128,128], index: 5, kind: input, shape index: {}]
  %s6 = inlined_call_operand.vmem [shape: f32[1,128], index: 6, kind: input, shape index: {}]
  %s7 = inlined_call_operand.vmem [shape: bf16[128,256], index: 7, kind: input, shape index: {}]
  %s8 = inlined_call_operand.vmem [shape: bf16[128,256], index: 8, kind: input, shape index: {}]
  %s9 = inlined_call_operand.vmem [shape: f32[1,128], index: 9, kind: input, shape index: {}]
  %s10 = inlined_call_operand.vmem [shape: f32[1,128], index: 10, kind: input, shape index: {}]
  %s11 = inlined_call_operand.vmem [shape: f32[2,1,32], index: 11, kind: output, shape index: {0}]
  %s12 = inlined_call_operand.vmem [shape: f32[2,2,8], index: 12, kind: output, shape index: {1}]
  %13 = xla_tuple %s11, %s12
  %s14 = sld [smem:[#allocation0]]
  $region85: #{dimpnet_forward.7} parent=0
    _
  %s16 = ssub.s32 1, %s14
  %s17 = scalar_select 0, %s16, %s14
  loop: start=0, step=1, limit=4
  $region2: #{dimpnet_forward.7} parent=0 // loop_pre_header
    _
  $region3: #{dimpnet_forward.7} parent=0 // loop_header
    %s19 = sphi 0, %s23
    %p20 = scmp.ge.s32.totalorder %s19, 4
    %s29 = sphi 0, %s31
    %s32 = sphi 0, %s29
    %s33 = sphi 0, %s32
    %s49 = sphi 0, %s33
    %s55 = sphi 0, %s57
    %s58 = sphi 0, %s55
    %s59 = sphi 0, %s58
    %s75 = sphi 0, %s59
    %s81 = sphi 0, %s83
    %s84 = sphi 0, %s81
    %s85 = sphi 0, %s84
    %s101 = sphi 0, %s85
    %s107 = sphi 0, %s109
    %s110 = sphi 0, %s107
    %s111 = sphi 0, %s110
    %s127 = sphi 0, %s111
    %s133 = sphi 0, %s135
    %s136 = sphi 0, %s133
    %s137 = sphi 0, %s136
    %s153 = sphi 0, %s137
    %s157 = sphi 0, %s157
    %s159 = sphi 0, %s157
    %s160 = sphi 0, %s159
    %s174 = sphi 0, %s160
    %s178 = sphi 0, %s178
    %s180 = sphi 0, %s178
    %s181 = sphi 0, %s180
    %s195 = sphi 0, %s181
    %s199 = sphi 0, %s199
    %s201 = sphi 0, %s199
    %s202 = sphi 0, %s201
    %s216 = sphi 0, %s202
    %s220 = sphi 0, %s220
    %s222 = sphi 0, %s220
    %s223 = sphi 0, %s222
    %s237 = sphi 0, %s223
    %s241 = sphi 0, %s241
    %s243 = sphi 0, %s241
    %s244 = sphi 0, %s243
    %s258 = sphi 0, %s244
    %s262 = sphi 0, %s262
    %s264 = sphi 0, %s262
    %s265 = sphi 0, %s264
    %s279 = sphi 0, %s265
    %s285 = sphi 0, %s287
    %s288 = sphi 0, %s285
    %s289 = sphi 0, %s288
    %s305 = sphi 0, %s289
    %s311 = sphi 0, %s313
    %s314 = sphi 0, %s311
    %s315 = sphi 0, %s314
    %s331 = sphi 0, %s315
  $region4: #{dimpnet_forward.7} parent=0 // loop_header_branch
    %22 = sbr.rel (%p20) target = $region8
  $region5: #{dimpnet_forward.7} parent=0 // loop_body
    %s24 = ssub.s32 %s19, 1
    %s25 = ssub.s32 %s19, 2
    %s26 = sadd.s32 %s19, 1
    %s27 = ssub.s32 %s19, %s26
    %p28 = scmp.eq.s32.totalorder %s27, 0
    %s30 = sadd.s32 %s29, 1
    %s31 = scalar_select %p28, %s29, %s30
    %p34 = pneg %p28
    %p35 = scmp.eq.s32.totalorder %s19, 1
    %p36 = por %p34, %p35
    %p37 = scmp.ne.s32.totalorder %s29, %s32
    %p38 = scmp.eq.s32.totalorder %s19, 0
    %p39 = por %p37, %p38
    %p40 = scmp.ne.s32.totalorder %s29, %s32
    %p41 = scmp.eq.s32.totalorder %s24, 1
    %p42 = por %p40, %p41
    %p43 = scmp.ne.s32.totalorder %s32, %s33
    %p44 = scmp.eq.s32.totalorder %s24, 0
    %p45 = por %p43, %p44
    %p46 = scmp.ne.s32.totalorder %s32, %s33
    %p47 = scmp.eq.s32.totalorder %s25, 1
    %p48 = por %p46, %p47
    %p50 = scmp.ne.s32.totalorder %s33, %s49
    %p51 = scmp.eq.s32.totalorder %s25, 0
    %p52 = por %p50, %p51
    %s53 = ssub.s32 %s19, %s26
    %p54 = scmp.eq.s32.totalorder %s53, 0
    %s56 = sadd.s32 %s55, 1
    %s57 = scalar_select %p54, %s55, %s56
    %p60 = pneg %p54
    %p61 = scmp.eq.s32.totalorder %s19, 1
    %p62 = por %p60, %p61
    %p63 = scmp.ne.s32.totalorder %s55, %s58
    %p64 = scmp.eq.s32.totalorder %s19, 0
    %p65 = por %p63, %p64
    %p66 = scmp.ne.s32.totalorder %s55, %s58
    %p67 = scmp.eq.s32.totalorder %s24, 1
    %p68 = por %p66, %p67
    %p69 = scmp.ne.s32.totalorder %s58, %s59
    %p70 = scmp.eq.s32.totalorder %s24, 0
    %p71 = por %p69, %p70
    %p72 = scmp.ne.s32.totalorder %s58, %s59
    %p73 = scmp.eq.s32.totalorder %s25, 1
    %p74 = por %p72, %p73
    %p76 = scmp.ne.s32.totalorder %s59, %s75
    %p77 = scmp.eq.s32.totalorder %s25, 0
    %p78 = por %p76, %p77
    %s79 = ssub.s32 %s19, %s26
    %p80 = scmp.eq.s32.totalorder %s79, 0
    %s82 = sadd.s32 %s81, 1
    %s83 = scalar_select %p80, %s81, %s82
    %p86 = pneg %p80
    %p87 = scmp.eq.s32.totalorder %s19, 1
    %p88 = por %p86, %p87
    %p89 = scmp.ne.s32.totalorder %s81, %s84
    %p90 = scmp.eq.s32.totalorder %s19, 0
    %p91 = por %p89, %p90
    %p92 = scmp.ne.s32.totalorder %s81, %s84
    %p93 = scmp.eq.s32.totalorder %s24, 1
    %p94 = por %p92, %p93
    %p95 = scmp.ne.s32.totalorder %s84, %s85
    %p96 = scmp.eq.s32.totalorder %s24, 0
    %p97 = por %p95, %p96
    %p98 = scmp.ne.s32.totalorder %s84, %s85
    %p99 = scmp.eq.s32.totalorder %s25, 1
    %p100 = por %p98, %p99
    %p102 = scmp.ne.s32.totalorder %s85, %s101
    %p103 = scmp.eq.s32.totalorder %s25, 0
    %p104 = por %p102, %p103
    %s105 = ssub.s32 %s19, %s26
    %p106 = scmp.eq.s32.totalorder %s105, 0
    %s108 = sadd.s32 %s107, 1
    %s109 = scalar_select %p106, %s107, %s108
    %p112 = pneg %p106
    %p113 = scmp.eq.s32.totalorder %s19, 1
    %p114 = por %p112, %p113
    %p115 = scmp.ne.s32.totalorder %s107, %s110
    %p116 = scmp.eq.s32.totalorder %s19, 0
    %p117 = por %p115, %p116
    %p118 = scmp.ne.s32.totalorder %s107, %s110
    %p119 = scmp.eq.s32.totalorder %s24, 1
    %p120 = por %p118, %p119
    %p121 = scmp.ne.s32.totalorder %s110, %s111
    %p122 = scmp.eq.s32.totalorder %s24, 0
    %p123 = por %p121, %p122
    %p124 = scmp.ne.s32.totalorder %s110, %s111
    %p125 = scmp.eq.s32.totalorder %s25, 1
    %p126 = por %p124, %p125
    %p128 = scmp.ne.s32.totalorder %s111, %s127
    %p129 = scmp.eq.s32.totalorder %s25, 0
    %p130 = por %p128, %p129
    %s131 = ssub.s32 %s19, %s26
    %p132 = scmp.eq.s32.totalorder %s131, 0
    %s134 = sadd.s32 %s133, 1
    %s135 = scalar_select %p132, %s133, %s134
    %p138 = pneg %p132
    %p139 = scmp.eq.s32.totalorder %s19, 1
    %p140 = por %p138, %p139
    %p141 = scmp.ne.s32.totalorder %s133, %s136
    %p142 = scmp.eq.s32.totalorder %s19, 0
    %p143 = por %p141, %p142
    %p144 = scmp.ne.s32.totalorder %s133, %s136
    %p145 = scmp.eq.s32.totalorder %s24, 1
    %p146 = por %p144, %p145
    %p147 = scmp.ne.s32.totalorder %s136, %s137
    %p148 = scmp.eq.s32.totalorder %s24, 0
    %p149 = por %p147, %p148
    %p150 = scmp.ne.s32.totalorder %s136, %s137
    %p151 = scmp.eq.s32.totalorder %s25, 1
    %p152 = por %p150, %p151
    %p154 = scmp.ne.s32.totalorder %s137, %s153
    %p155 = scmp.eq.s32.totalorder %s25, 0
    %p156 = por %p154, %p155
    %s158 = sadd.s32 %s157, 1
    %p161 = scmp.eq.s32.totalorder %s19, 1
    %p162 = scmp.ne.s32.totalorder %s157, %s159
    %p163 = scmp.eq.s32.totalorder %s19, 0
    %p164 = por %p162, %p163
    %p165 = scmp.ne.s32.totalorder %s157, %s159
    %p166 = scmp.eq.s32.totalorder %s24, 1
    %p167 = por %p165, %p166
    %p168 = scmp.ne.s32.totalorder %s159, %s160
    %p169 = scmp.eq.s32.totalorder %s24, 0
    %p170 = por %p168, %p169
    %p171 = scmp.ne.s32.totalorder %s159, %s160
    %p172 = scmp.eq.s32.totalorder %s25, 1
    %p173 = por %p171, %p172
    %p175 = scmp.ne.s32.totalorder %s160, %s174
    %p176 = scmp.eq.s32.totalorder %s25, 0
    %p177 = por %p175, %p176
    %s179 = sadd.s32 %s178, 1
    %p182 = scmp.eq.s32.totalorder %s19, 1
    %p183 = scmp.ne.s32.totalorder %s178, %s180
    %p184 = scmp.eq.s32.totalorder %s19, 0
    %p185 = por %p183, %p184
    %p186 = scmp.ne.s32.totalorder %s178, %s180
    %p187 = scmp.eq.s32.totalorder %s24, 1
    %p188 = por %p186, %p187
    %p189 = scmp.ne.s32.totalorder %s180, %s181
    %p190 = scmp.eq.s32.totalorder %s24, 0
    %p191 = por %p189, %p190
    %p192 = scmp.ne.s32.totalorder %s180, %s181
    %p193 = scmp.eq.s32.totalorder %s25, 1
    %p194 = por %p192, %p193
    %p196 = scmp.ne.s32.totalorder %s181, %s195
    %p197 = scmp.eq.s32.totalorder %s25, 0
    %p198 = por %p196, %p197
    %s200 = sadd.s32 %s199, 1
    %p203 = scmp.eq.s32.totalorder %s19, 1
    %p204 = scmp.ne.s32.totalorder %s199, %s201
    %p205 = scmp.eq.s32.totalorder %s19, 0
    %p206 = por %p204, %p205
    %p207 = scmp.ne.s32.totalorder %s199, %s201
    %p208 = scmp.eq.s32.totalorder %s24, 1
    %p209 = por %p207, %p208
    %p210 = scmp.ne.s32.totalorder %s201, %s202
    %p211 = scmp.eq.s32.totalorder %s24, 0
    %p212 = por %p210, %p211
    %p213 = scmp.ne.s32.totalorder %s201, %s202
    %p214 = scmp.eq.s32.totalorder %s25, 1
    %p215 = por %p213, %p214
    %p217 = scmp.ne.s32.totalorder %s202, %s216
    %p218 = scmp.eq.s32.totalorder %s25, 0
    %p219 = por %p217, %p218
    %s221 = sadd.s32 %s220, 1
    %p224 = scmp.eq.s32.totalorder %s19, 1
    %p225 = scmp.ne.s32.totalorder %s220, %s222
    %p226 = scmp.eq.s32.totalorder %s19, 0
    %p227 = por %p225, %p226
    %p228 = scmp.ne.s32.totalorder %s220, %s222
    %p229 = scmp.eq.s32.totalorder %s24, 1
    %p230 = por %p228, %p229
    %p231 = scmp.ne.s32.totalorder %s222, %s223
    %p232 = scmp.eq.s32.totalorder %s24, 0
    %p233 = por %p231, %p232
    %p234 = scmp.ne.s32.totalorder %s222, %s223
    %p235 = scmp.eq.s32.totalorder %s25, 1
    %p236 = por %p234, %p235
    %p238 = scmp.ne.s32.totalorder %s223, %s237
    %p239 = scmp.eq.s32.totalorder %s25, 0
    %p240 = por %p238, %p239
    %s242 = sadd.s32 %s241, 1
    %p245 = scmp.eq.s32.totalorder %s19, 1
    %p246 = scmp.ne.s32.totalorder %s241, %s243
    %p247 = scmp.eq.s32.totalorder %s19, 0
    %p248 = por %p246, %p247
    %p249 = scmp.ne.s32.totalorder %s241, %s243
    %p250 = scmp.eq.s32.totalorder %s24, 1
    %p251 = por %p249, %p250
    %p252 = scmp.ne.s32.totalorder %s243, %s244
    %p253 = scmp.eq.s32.totalorder %s24, 0
    %p254 = por %p252, %p253
    %p255 = scmp.ne.s32.totalorder %s243, %s244
    %p256 = scmp.eq.s32.totalorder %s25, 1
    %p257 = por %p255, %p256
    %p259 = scmp.ne.s32.totalorder %s244, %s258
    %p260 = scmp.eq.s32.totalorder %s25, 0
    %p261 = por %p259, %p260
    %s263 = sadd.s32 %s262, 1
    %p266 = scmp.eq.s32.totalorder %s19, 1
    %p267 = scmp.ne.s32.totalorder %s262, %s264
    %p268 = scmp.eq.s32.totalorder %s19, 0
    %p269 = por %p267, %p268
    %p270 = scmp.ne.s32.totalorder %s262, %s264
    %p271 = scmp.eq.s32.totalorder %s24, 1
    %p272 = por %p270, %p271
    %p273 = scmp.ne.s32.totalorder %s264, %s265
    %p274 = scmp.eq.s32.totalorder %s24, 0
    %p275 = por %p273, %p274
    %p276 = scmp.ne.s32.totalorder %s264, %s265
    %p277 = scmp.eq.s32.totalorder %s25, 1
    %p278 = por %p276, %p277
    %p280 = scmp.ne.s32.totalorder %s265, %s279
    %p281 = scmp.eq.s32.totalorder %s25, 0
    %p282 = por %p280, %p281
    %s283 = ssub.s32 %s19, %s26
    %p284 = scmp.eq.s32.totalorder %s283, 0
    %s286 = sadd.s32 %s285, 1
    %s287 = scalar_select %p284, %s285, %s286
    %p290 = pneg %p284
    %p291 = scmp.eq.s32.totalorder %s19, 1
    %p292 = por %p290, %p291
    %p293 = scmp.ne.s32.totalorder %s285, %s288
    %p294 = scmp.eq.s32.totalorder %s19, 0
    %p295 = por %p293, %p294
    %p296 = scmp.ne.s32.totalorder %s285, %s288
    %p297 = scmp.eq.s32.totalorder %s24, 1
    %p298 = por %p296, %p297
    %p299 = scmp.ne.s32.totalorder %s288, %s289
    %p300 = scmp.eq.s32.totalorder %s24, 0
    %p301 = por %p299, %p300
    %p302 = scmp.ne.s32.totalorder %s288, %s289
    %p303 = scmp.eq.s32.totalorder %s25, 1
    %p304 = por %p302, %p303
    %p306 = scmp.ne.s32.totalorder %s289, %s305
    %p307 = scmp.eq.s32.totalorder %s25, 0
    %p308 = por %p306, %p307
    %s309 = ssub.s32 %s19, %s26
    %p310 = scmp.eq.s32.totalorder %s309, 0
    %s312 = sadd.s32 %s311, 1
    %s313 = scalar_select %p310, %s311, %s312
    %p316 = pneg %p310
    %p317 = scmp.eq.s32.totalorder %s19, 1
    %p318 = por %p316, %p317
    %p319 = scmp.ne.s32.totalorder %s311, %s314
    %p320 = scmp.eq.s32.totalorder %s19, 0
    %p321 = por %p319, %p320
    %p322 = scmp.ne.s32.totalorder %s311, %s314
    %p323 = scmp.eq.s32.totalorder %s24, 1
    %p324 = por %p322, %p323
    %p325 = scmp.ne.s32.totalorder %s314, %s315
    %p326 = scmp.eq.s32.totalorder %s24, 0
    %p327 = por %p325, %p326
    %p328 = scmp.ne.s32.totalorder %s314, %s315
    %p329 = scmp.eq.s32.totalorder %s25, 1
    %p330 = por %p328, %p329
    %p332 = scmp.ne.s32.totalorder %s315, %s331
    %p333 = scmp.eq.s32.totalorder %s25, 0
    %p334 = por %p332, %p333
    %p335 = scmp.le.s32.totalorder 1, %s19
    %p336 = scmp.lt.s32.totalorder %s19, 3
    %p337 = pnand %p335, %p336
    %p338 = pneg %p337
    // Predicated region
    $region9: #{dimpnet_forward.7} parent=5 // pred_check
      _
    $region10: #{dimpnet_forward.7} parent=5 // pred_check_branch
      %340 = sbr.rel (%p337) target = $region12
    $region11: #{dimpnet_forward.7} parent=5 // pred_region
      %s341 = ssub.s32 %s19, 1
      // Predicated region
      $region13: #{dimpnet_forward.7} parent=11 // pred_check
        %p342 = pneg %p170
      $region14: #{dimpnet_forward.7} parent=11 // pred_check_branch
        %344 = sbr.rel (%p342) target = $region16
      $region15: #{dimpnet_forward.7} parent=11 // pred_region
        _
      $region16: #{dimpnet_forward.7} parent=11 // pred_fallthru
        _
      // Predicated region
      $region17: #{dimpnet_forward.7} parent=11 // pred_check
        %p345 = pneg %p191
      $region18: #{dimpnet_forward.7} parent=11 // pred_check_branch
        %347 = sbr.rel (%p345) target = $region20
      $region19: #{dimpnet_forward.7} parent=11 // pred_region
        _
      $region20: #{dimpnet_forward.7} parent=11 // pred_fallthru
        _
      // Predicated region
      $region21: #{dimpnet_forward.7} parent=11 // pred_check
        %p348 = pneg %p212
      $region22: #{dimpnet_forward.7} parent=11 // pred_check_branch
        %350 = sbr.rel (%p348) target = $region24
      $region23: #{dimpnet_forward.7} parent=11 // pred_region
        _
      $region24: #{dimpnet_forward.7} parent=11 // pred_fallthru
        _
      // Predicated region
      $region25: #{dimpnet_forward.7} parent=11 // pred_check
        %p351 = pneg %p233
      $region26: #{dimpnet_forward.7} parent=11 // pred_check_branch
        %353 = sbr.rel (%p351) target = $region28
      $region27: #{dimpnet_forward.7} parent=11 // pred_region
        _
      $region28: #{dimpnet_forward.7} parent=11 // pred_fallthru
        _
      // Predicated region
      $region29: #{dimpnet_forward.7} parent=11 // pred_check
        %p354 = pneg %p254
      $region30: #{dimpnet_forward.7} parent=11 // pred_check_branch
        %356 = sbr.rel (%p354) target = $region32
      $region31: #{dimpnet_forward.7} parent=11 // pred_region
        _
      $region32: #{dimpnet_forward.7} parent=11 // pred_fallthru
        _
      // Predicated region
      $region33: #{dimpnet_forward.7} parent=11 // pred_check
        %p357 = pneg %p275
      $region34: #{dimpnet_forward.7} parent=11 // pred_check_branch
        %359 = sbr.rel (%p357) target = $region36
      $region35: #{dimpnet_forward.7} parent=11 // pred_region
        _
      $region36: #{dimpnet_forward.7} parent=11 // pred_fallthru
        _
    $region12: #{dimpnet_forward.7} parent=5 // pred_fallthru
      _
    %p360 = scmp.lt.s32.totalorder %s19, 2
    // Predicated region
    $region37: #{dimpnet_forward.7} parent=5 // pred_check
      %p361 = pneg %p360
    $region38: #{dimpnet_forward.7} parent=5 // pred_check_branch
      %363 = sbr.rel (%p361) target = $region40
    $region39: #{dimpnet_forward.7} parent=5 // pred_region
      // Predicated region
      $region41: #{dimpnet_forward.7} parent=39 // pred_check
        %p364 = pneg %p39
      $region42: #{dimpnet_forward.7} parent=39 // pred_check_branch
        %366 = sbr.rel (%p364) target = $region44
      $region43: #{dimpnet_forward.7} parent=39 // pred_region
        %p367 = scmp.lt.s32.totalorder %s19, 1
        %s368 = scalar_select %p367, %s19, 1
        %s369 = smul.addr %s368, 8
        %s370 = smul.addr %s369, 4
        %s371 = scalar_lea.vmem %s0, %s370
      $region44: #{dimpnet_forward.7} parent=39 // pred_fallthru
        _
      // Predicated region
      $region45: #{dimpnet_forward.7} parent=39 // pred_check
        %p372 = pneg %p65
      $region46: #{dimpnet_forward.7} parent=39 // pred_check_branch
        %374 = sbr.rel (%p372) target = $region48
      $region47: #{dimpnet_forward.7} parent=39 // pred_region
        %p375 = scmp.lt.s32.totalorder %s19, 1
        %s376 = scalar_select %p375, %s19, 1
        %s377 = smul.addr %s376, 32
        %s378 = smul.addr %s377, 4
        %s379 = scalar_lea.vmem %s1, %s378
      $region48: #{dimpnet_forward.7} parent=39 // pred_fallthru
        _
      // Predicated region
      $region49: #{dimpnet_forward.7} parent=39 // pred_check
        %p380 = pneg %p91
      $region50: #{dimpnet_forward.7} parent=39 // pred_check_branch
        %382 = sbr.rel (%p380) target = $region52
      $region51: #{dimpnet_forward.7} parent=39 // pred_region
        %p383 = scmp.lt.s32.totalorder %s19, 1
        %s384 = scalar_select %p383, %s19, 1
        %s385 = scalar_lea.vmem %s2, %s384
      $region52: #{dimpnet_forward.7} parent=39 // pred_fallthru
        _
      // Predicated region
      $region53: #{dimpnet_forward.7} parent=39 // pred_check
        %p386 = pneg %p117
      $region54: #{dimpnet_forward.7} parent=39 // pred_check_branch
        %388 = sbr.rel (%p386) target = $region56
      $region55: #{dimpnet_forward.7} parent=39 // pred_region
        %p389 = scmp.lt.s32.totalorder %s19, 1
        %s390 = scalar_select %p389, %s19, 1
        %s391 = smul.addr %s390, 2
        %s392 = scalar_lea.vmem %s3, %s391
      $region56: #{dimpnet_forward.7} parent=39 // pred_fallthru
        _
      // Predicated region
      $region57: #{dimpnet_forward.7} parent=39 // pred_check
        %p393 = pneg %p143
      $region58: #{dimpnet_forward.7} parent=39 // pred_check_branch
        %395 = sbr.rel (%p393) target = $region60
      $region59: #{dimpnet_forward.7} parent=39 // pred_region
        %p396 = scmp.lt.s32.totalorder %s19, 1
        %s397 = scalar_select %p396, %s19, 1
        %s398 = smul.addr %s397, 2
        %s399 = scalar_lea.vmem %s4, %s398
      $region60: #{dimpnet_forward.7} parent=39 // pred_fallthru
        _
    $region40: #{dimpnet_forward.7} parent=5 // pred_fallthru
      _
    %p400 = scmp.le.s32.totalorder 1, %s19
    %p401 = scmp.lt.s32.totalorder %s19, 3
    %p402 = pnand %p400, %p401
    %p403 = pneg %p402
    // Predicated region
    $region61: #{dimpnet_forward.7} parent=5 // pred_check
      _
    $region62: #{dimpnet_forward.7} parent=5 // pred_check_branch
      %405 = sbr.rel (%p402) target = $region64
    $region63: #{dimpnet_forward.7} parent=5 // pred_region
      %s406 = ssub.s32 %s19, 1
      %p407 = scmp.lt.s32.totalorder %s24, 1
      %s408 = scalar_select %p407, %s24, 1
      %s409 = smul.addr %s408, 8
      %s410 = smul.addr %s409, 4
      %s411 = scalar_lea.vmem %s0, %s410
      %p412 = pneg %p45
      %p413 = pneg %p42
      %p414 = scmp.lt.s32.totalorder %s24, 1
      %s415 = scalar_select %p414, %s24, 1
      %s416 = smul.addr %s415, 32
      %s417 = smul.addr %s416, 4
      %s418 = scalar_lea.vmem %s1, %s417
      %p419 = pneg %p71
      %p420 = pneg %p68
      %p421 = scmp.lt.s32.totalorder %s24, 1
      %s422 = scalar_select %p421, %s24, 1
      %s423 = scalar_lea.vmem %s2, %s422
      %p424 = pneg %p97
      %p425 = pneg %p94
      %p426 = scmp.lt.s32.totalorder %s24, 1
      %s427 = scalar_select %p426, %s24, 1
      %s428 = smul.addr %s427, 2
      %s429 = scalar_lea.vmem %s3, %s428
      %p430 = pneg %p123
      %p431 = pneg %p120
      %p432 = scmp.lt.s32.totalorder %s24, 1
      %s433 = scalar_select %p432, %s24, 1
      %s434 = smul.addr %s433, 2
      %s435 = scalar_lea.vmem %s4, %s434
      %p436 = pneg %p149
      %p437 = pneg %p146
      %p438 = pneg %p170
      %p439 = pneg %p167
      %p440 = pneg %p191
      %p441 = pneg %p188
      %p442 = pneg %p212
      %p443 = pneg %p209
      %p444 = pneg %p233
      %p445 = pneg %p230
      %p446 = pneg %p254
      %p447 = pneg %p251
      %p448 = pneg %p275
      %p449 = pneg %p272
      %p450 = pneg %p301
      %p451 = pneg %p298
      %p452 = scmp.lt.s32.totalorder %s24, 1
      %s453 = scalar_select %p452, %s24, 1
      %s454 = scalar_lea.vmem %s11, %s453
      %p455 = pneg %p327
      %p456 = pneg %p324
      %p457 = scmp.lt.s32.totalorder %s24, 1
      %s458 = scalar_select %p457, %s24, 1
      %s459 = smul.addr %s458, 2
      %s460 = scalar_lea.vmem %s12, %s459
      %p461 = scmp.lt.s32.totalorder %s24, 1
      %s462 = scalar_select %p461, %s24, 1
      %s463 = smul.addr %s462, 8
      %s464 = smul.addr %s463, 4
      %s465 = scalar_lea.vmem %s0, %s464
      %p466 = scmp.lt.s32.totalorder %s24, 1
      %s467 = scalar_select %p466, %s24, 1
      %s468 = smul.addr %s467, 32
      %s469 = smul.addr %s468, 4
      %s470 = scalar_lea.vmem %s1, %s469
      %p471 = scmp.lt.s32.totalorder %s24, 1
      %s472 = scalar_select %p471, %s24, 1
      %s473 = scalar_lea.vmem %s2, %s472
      %p474 = scmp.lt.s32.totalorder %s24, 1
      %s475 = scalar_select %p474, %s24, 1
      %s476 = smul.addr %s475, 2
      %s477 = scalar_lea.vmem %s3, %s476
      %p478 = scmp.lt.s32.totalorder %s24, 1
      %s479 = scalar_select %p478, %s24, 1
      %s480 = smul.addr %s479, 2
      %s481 = scalar_lea.vmem %s4, %s480
      %p482 = scmp.lt.s32.totalorder %s24, 1
      %s483 = scalar_select %p482, %s24, 1
      %s484 = scalar_lea.vmem %s11, %s483
      %p485 = scmp.lt.s32.totalorder %s24, 1
      %s486 = scalar_select %p485, %s24, 1
      %s487 = smul.addr %s486, 2
      %s488 = scalar_lea.vmem %s12, %s487
      %v490 = vld [vmem:[%s465] sm:$0xf]
      %v491 = vld [vmem:[%s465 + $0x4] sm:$0xf]
      %v492 = vld [vmem:[%s465 + $0x8] sm:$0xf]
      %v493 = vld [vmem:[%s465 + $0xc] sm:$0xf]
      %v494 = vld [vmem:[%s465 + $0x10] sm:$0xf]
      %v495 = vld [vmem:[%s465 + $0x14] sm:$0xf]
      %v496 = vld [vmem:[%s465 + $0x18] sm:$0xf]
      %v497 = vld [vmem:[%s465 + $0x1c] sm:$0xf]
      %v498 = vld [vmem:[%s5] sm:$0xf]
      %v499 = vld [vmem:[%s5 + $0x4] sm:$0xf]
      %v500 = vld [vmem:[%s5 + $0x8] sm:$0xf]
      %v501 = vld [vmem:[%s5 + $0xc] sm:$0xf]
      %v502 = vld [vmem:[%s5 + $0x10] sm:$0xf]
      %v503 = vld [vmem:[%s5 + $0x14] sm:$0xf]
      %v504 = vld [vmem:[%s5 + $0x18] sm:$0xf]
      %v505 = vld [vmem:[%s5 + $0x1c] sm:$0xf]
      %v506 = vld [vmem:[%s5 + $0x20] sm:$0xf]
      %v507 = vld [vmem:[%s5 + $0x24] sm:$0xf]
      %v508 = vld [vmem:[%s5 + $0x28] sm:$0xf]
      %v509 = vld [vmem:[%s5 + $0x2c] sm:$0xf]
      %v510 = vld [vmem:[%s5 + $0x30] sm:$0xf]
      %v511 = vld [vmem:[%s5 + $0x34] sm:$0xf]
      %v512 = vld [vmem:[%s5 + $0x38] sm:$0xf]
      %v513 = vld [vmem:[%s5 + $0x3c] sm:$0xf]
      %v514 = vld [vmem:[%s6] sm:$0x1]
      %v516 = vperm.slane %v514, 0
      %v522 = vunpack.c.l.b16 %v490
      %v523 = vunpack.c.l.b16 %v491
      %v524 = vunpack.c.l.b16 %v492
      %v525 = vunpack.c.l.b16 %v493
      %v526 = vpack.c.b16 %v523, %v522
      %v527 = vpack.c.b16 %v525, %v524
      %v546 = vunpack.c.l.b16 %v498
      %v547 = vunpack.c.l.b16 %v499
      %v548 = vunpack.c.l.b16 %v500
      %v549 = vunpack.c.l.b16 %v501
      %v550 = vunpack.c.l.b16 %v502
      %v551 = vunpack.c.l.b16 %v503
      %v552 = vunpack.c.l.b16 %v504
      %v553 = vunpack.c.l.b16 %v505
      %v554 = vunpack.c.l.b16 %v506
      %v555 = vunpack.c.l.b16 %v507
      %v556 = vunpack.c.l.b16 %v508
      %v557 = vunpack.c.l.b16 %v509
      %v558 = vunpack.c.l.b16 %v510
      %v559 = vunpack.c.l.b16 %v511
      %v560 = vunpack.c.l.b16 %v512
      %v561 = vunpack.c.l.b16 %v513
      %v562 = vpack.c.b16 %v547, %v546
      %v563 = vpack.c.b16 %v549, %v548
      %v564 = vpack.c.b16 %v551, %v550
      %v565 = vpack.c.b16 %v553, %v552
      %v566 = vpack.c.b16 %v555, %v554
      %v567 = vpack.c.b16 %v557, %v556
      %v568 = vpack.c.b16 %v559, %v558
      %v569 = vpack.c.b16 %v561, %v560
      %578 = vmatpush.bf16.msra.mxu0 %v569
      %579 = vmatpush.bf16.msra.mxu0 %v568
      %580 = vmatpush.bf16.msra.mxu0 %v567
      %581 = vmatpush.bf16.msra.mxu0 %v566
      %582 = vmatpush.bf16.msra.mxu0 %v565
      %583 = vmatpush.bf16.msra.mxu0 %v564
      %584 = vmatpush.bf16.msra.mxu0 %v563
      %585 = vmatpush.bf16.msra.mxu0 %v562
      %586 = vmatmul.bf16.gmra.mxu0 %v526
      %v587 = vpop.f32.mrf.mxu0
      %v588 = vadd.f32 %v516, %v587
      %v589 = vpop.f32.mrf.mxu0
      %v590 = vadd.f32 %v516, %v589
      %591 = vmatmul.bf16.gmra.mxu0 %v527
      %v592 = vpop.f32.mrf.mxu0
      %v593 = vadd.f32 %v516, %v592
      %v594 = vpop.f32.mrf.mxu0
      %v595 = vadd.f32 %v516, %v594
      %596 = vdwg.mxu0
      %v601 = vunpack.c.l.b16 %v494
      %v602 = vunpack.c.l.b16 %v495
      %v603 = vunpack.c.l.b16 %v496
      %v604 = vunpack.c.l.b16 %v497
      %v605 = vpack.c.b16 %v602, %v601
      %v606 = vpack.c.b16 %v604, %v603
      %609 = vmatpush.bf16.msra.mxu0 %v569
      %610 = vmatpush.bf16.msra.mxu0 %v568
      %611 = vmatpush.bf16.msra.mxu0 %v567
      %612 = vmatpush.bf16.msra.mxu0 %v566
      %613 = vmatpush.bf16.msra.mxu0 %v565
      %614 = vmatpush.bf16.msra.mxu0 %v564
      %615 = vmatpush.bf16.msra.mxu0 %v563
      %616 = vmatpush.bf16.msra.mxu0 %v562
      %617 = vmatmul.bf16.gmra.mxu0 %v605
      %v618 = vpop.f32.mrf.mxu0
      %v619 = vadd.f32 %v516, %v618
      %v620 = vpop.f32.mrf.mxu0
      %v621 = vadd.f32 %v516, %v620
      %622 = vmatmul.bf16.gmra.mxu0 %v606
      %v623 = vpop.f32.mrf.mxu0
      %v624 = vadd.f32 %v516, %v623
      %v625 = vpop.f32.mrf.mxu0
      %v626 = vadd.f32 %v516, %v625
      %627 = vdwg.mxu0
      %v628 = vld [vmem:[%s473] sm:$0x1]
      %vm629 = vcmask 261120
      %v631 = vsel %vm629, %v628, 0
      %633 = vmatpush.msra.mxu0 0.0
      %634 = vmatpush.msra.mxu0 0.0
      %635 = vmatpush.msra.mxu0 0.0
      %636 = vmatpush.msra.mxu0 0.0
      %637 = vmatpush.msra.mxu0 0.0
      %638 = vmatpush.msra.mxu0 0.0
      %639 = vmatpush.msra.mxu0 0.0
      %640 = vmatpush.msra.mxu0 0.0
      %641 = vmatpush.msra.mxu0 0.0
      %642 = vmatpush.msra.mxu0 0.0
      %643 = vmatpush.msra.mxu0 0.0
      %644 = vmatpush.msra.mxu0 0.0
      %645 = vmatpush.msra.mxu0 %v595
      %646 = vmatpush.msra.mxu0 %v593
      %647 = vmatpush.msra.mxu0 %v590
      %648 = vmatpush.msra.mxu0 %v588
      %649 = vmatmul.f32.gmra.mxu0 %v631
      %v650 = vpop.f32.mrf.mxu0
      %v651 = vadd.f32 0.0, %v650
      %652 = vdwg.mxu0
      %vm653 = vcmask 253952
      %v654 = vsel %vm653, %v628, 0.0
      %655 = vadd.xlane.f32.xlu0 %v654
      %v656 = vpop.xlane.xlu0 %655
      %v657 = vadd.f32 %v656, 1e-06
      %v658 = vrcp.pop %v657
      %v659 = vmul.f32 %v657, %v658
      %v660 = vsub.f32 1.0, %v659
      %v661 = vmul.f32 %v658, %v660
      %v662 = vadd.f32 %v658, %v661
      %vm663 = vweird.f32 %v657
      %vm664 = vweird.f32 %v658
      %vm665 = vmor %vm663, %vm664
      %v666 = vsel %vm665, %v658, %v662
      %v667 = vand.u32 2147483647, %v657
      %vm668 = vcmp.eq.f32.partialorder %v667, 8.507059e+37
      %v669 = vand.u32 %v657, 2147483648
      %v670 = vor.u32 1.1754944e-38, %v669
      %v671 = vsel %vm668, %v670, %v666
      %v672 = vmul.f32 %v651, %v671
      %v673 = vpack.c.bf16 %v672, %v672
      %v674 = vpack.c.bf16 %v621, %v619
      %v675 = vpack.c.bf16 %v626, %v624
      %676 = vmatpush.bf16.xpose.msra.mxu0 0
      %677 = vmatpush.bf16.xpose.msra.mxu0 0
      %678 = vmatpush.bf16.xpose.msra.mxu0 0
      %679 = vmatpush.bf16.xpose.msra.mxu0 0
      %680 = vmatpush.bf16.xpose.msra.mxu0 0
      %681 = vmatpush.bf16.xpose.msra.mxu0 0
      %682 = vmatpush.bf16.xpose.msra.mxu0 %v675
      %683 = vmatpush.bf16.xpose.msra.mxu0 %v674
      %684 = vmatmul.bf16.gmra.mxu0 %v673
      %v685 = vpop.f32.mrf.mxu0
      %v686 = vadd.f32 0.0, %v685
      %v687 = vpop.f32.mrf.mxu0
      %688 = vdwg.mxu0
      %689 = vst.msk [vmem:[%s484] sm:$0x1] %vm653, %v686
      %v690 = vld [vmem:[%s470] sm:$0xf]
      %v691 = vld [vmem:[%s470 + $0x4] sm:$0xf]
      %v692 = vld [vmem:[%s470 + $0x8] sm:$0xf]
      %v693 = vld [vmem:[%s470 + $0xc] sm:$0xf]
      %v694 = vld [vmem:[%s470 + $0x10] sm:$0xf]
      %v695 = vld [vmem:[%s470 + $0x14] sm:$0xf]
      %v696 = vld [vmem:[%s470 + $0x18] sm:$0xf]
      %v697 = vld [vmem:[%s470 + $0x1c] sm:$0xf]
      %v698 = vld [vmem:[%s470 + $0x40] sm:$0xf]
      %v699 = vld [vmem:[%s470 + $0x44] sm:$0xf]
      %v700 = vld [vmem:[%s470 + $0x48] sm:$0xf]
      %v701 = vld [vmem:[%s470 + $0x4c] sm:$0xf]
      %v702 = vld [vmem:[%s470 + $0x50] sm:$0xf]
      %v703 = vld [vmem:[%s470 + $0x54] sm:$0xf]
      %v704 = vld [vmem:[%s470 + $0x58] sm:$0xf]
      %v705 = vld [vmem:[%s470 + $0x5c] sm:$0xf]
      %v706 = vld [vmem:[%s470 + $0x60] sm:$0xf]
      %v707 = vld [vmem:[%s470 + $0x64] sm:$0xf]
      %v708 = vld [vmem:[%s470 + $0x68] sm:$0xf]
      %v709 = vld [vmem:[%s470 + $0x6c] sm:$0xf]
      %v710 = vld [vmem:[%s470 + $0x70] sm:$0xf]
      %v711 = vld [vmem:[%s470 + $0x74] sm:$0xf]
      %v712 = vld [vmem:[%s470 + $0x78] sm:$0xf]
      %v713 = vld [vmem:[%s470 + $0x7c] sm:$0xf]
      %v714 = vunpack.c.l.bf16 %v690
      %v715 = vunpack.c.l.bf16 %v691
      %v716 = vunpack.c.l.bf16 %v692
      %v717 = vunpack.c.l.bf16 %v693
      %v718 = vunpack.c.l.bf16 %v694
      %v719 = vunpack.c.l.bf16 %v695
      %v720 = vunpack.c.l.bf16 %v696
      %v721 = vunpack.c.l.bf16 %v697
      %v722 = vadd.f32 %v714, %v715
      %v723 = vadd.f32 %v722, %v716
      %v724 = vadd.f32 %v723, %v717
      %v725 = vadd.f32 %v724, %v718
      %v726 = vadd.f32 %v725, %v719
      %v727 = vadd.f32 %v726, %v720
      %v728 = vadd.f32 %v727, %v721
      %v729 = vrot.slane %v728, 4
      %v730 = vadd.f32 %v728, %v729
      %v731 = vrot.slane %v730, 2
      %v732 = vadd.f32 %v730, %v731
      %v733 = vrot.slane %v732, 1
      %v734 = vadd.f32 %v732, %v733
      %v735 = vrcp.pop 64.0
      %v736 = vmul.f32 64.0, %v735
      %v737 = vsub.f32 1.0, %v736
      %v738 = vmul.f32 %v735, %v737
      %v739 = vadd.f32 %v735, %v738
      %vm740 = vweird.f32 %v735
      %v741 = vsel %vm740, %v735, %v739
      %v742 = vmul.f32 %v734, %v741
      %v743 = vunpack.c.l.bf16 %v490
      %v744 = vunpack.c.l.bf16 %v491
      %v745 = vadd.f32 %v743, %v744
      %v746 = vrot.slane %v745, 4
      %v747 = vadd.f32 %v745, %v746
      %v748 = vrot.slane %v747, 2
      %v749 = vadd.f32 %v747, %v748
      %v750 = vrot.slane %v749, 1
      %v751 = vadd.f32 %v749, %v750
      %v752 = vrcp.pop 16.0
      %v753 = vmul.f32 16.0, %v752
      %v754 = vsub.f32 1.0, %v753
      %v755 = vmul.f32 %v752, %v754
      %v756 = vadd.f32 %v752, %v755
      %vm757 = vweird.f32 %v752
      %v758 = vsel %vm757, %v752, %v756
      %v759 = vmul.f32 %v751, %v758
      %v760 = vpack.c.bf16 %v742, %v742
      %v761 = vld [vmem:[%s7] sm:$0xff]
      %v762 = vld [vmem:[%s7 + $0x8] sm:$0xff]
      %v763 = vld [vmem:[%s7 + $0x10] sm:$0xff]
      %v764 = vld [vmem:[%s7 + $0x18] sm:$0xff]
      %v765 = vld [vmem:[%s7 + $0x20] sm:$0xff]
      %v766 = vld [vmem:[%s7 + $0x28] sm:$0xff]
      %v767 = vld [vmem:[%s7 + $0x30] sm:$0xff]
      %v768 = vld [vmem:[%s7 + $0x38] sm:$0xff]
      %v769 = vld [vmem:[%s7 + $0x40] sm:$0xff]
      %v770 = vld [vmem:[%s7 + $0x48] sm:$0xff]
      %v771 = vld [vmem:[%s7 + $0x50] sm:$0xff]
      %v772 = vld [vmem:[%s7 + $0x58] sm:$0xff]
      %v773 = vld [vmem:[%s7 + $0x60] sm:$0xff]
      %v774 = vld [vmem:[%s7 + $0x68] sm:$0xff]
      %v775 = vld [vmem:[%s7 + $0x70] sm:$0xff]
      %v776 = vld [vmem:[%s7 + $0x78] sm:$0xff]
      %v777 = vpack.c.bf16 %v759, %v759
      %v778 = vld [vmem:[%s8] sm:$0xff]
      %v779 = vld [vmem:[%s8 + $0x8] sm:$0xff]
      %v780 = vld [vmem:[%s8 + $0x10] sm:$0xff]
      %v781 = vld [vmem:[%s8 + $0x18] sm:$0xff]
      %v782 = vld [vmem:[%s8 + $0x20] sm:$0xff]
      %v783 = vld [vmem:[%s8 + $0x28] sm:$0xff]
      %v784 = vld [vmem:[%s8 + $0x30] sm:$0xff]
      %v785 = vld [vmem:[%s8 + $0x38] sm:$0xff]
      %v786 = vld [vmem:[%s8 + $0x40] sm:$0xff]
      %v787 = vld [vmem:[%s8 + $0x48] sm:$0xff]
      %v788 = vld [vmem:[%s8 + $0x50] sm:$0xff]
      %v789 = vld [vmem:[%s8 + $0x58] sm:$0xff]
      %v790 = vld [vmem:[%s8 + $0x60] sm:$0xff]
      %v791 = vld [vmem:[%s8 + $0x68] sm:$0xff]
      %v792 = vld [vmem:[%s8 + $0x70] sm:$0xff]
      %v793 = vld [vmem:[%s8 + $0x78] sm:$0xff]
      %v810 = vunpack.c.l.b16 %v778
      %v811 = vunpack.c.h.b16 %v778
      %v812 = vunpack.c.l.b16 %v779
      %v813 = vunpack.c.h.b16 %v779
      %v814 = vunpack.c.l.b16 %v780
      %v815 = vunpack.c.h.b16 %v780
      %v816 = vunpack.c.l.b16 %v781
      %v817 = vunpack.c.h.b16 %v781
      %v818 = vunpack.c.l.b16 %v782
      %v819 = vunpack.c.h.b16 %v782
      %v820 = vunpack.c.l.b16 %v783
      %v821 = vunpack.c.h.b16 %v783
      %v822 = vunpack.c.l.b16 %v784
      %v823 = vunpack.c.h.b16 %v784
      %v824 = vunpack.c.l.b16 %v785
      %v825 = vunpack.c.h.b16 %v785
      %v826 = vunpack.c.l.b16 %v786
      %v827 = vunpack.c.h.b16 %v786
      %v828 = vunpack.c.l.b16 %v787
      %v829 = vunpack.c.h.b16 %v787
      %v830 = vunpack.c.l.b16 %v788
      %v831 = vunpack.c.h.b16 %v788
      %v832 = vunpack.c.l.b16 %v789
      %v833 = vunpack.c.h.b16 %v789
      %v834 = vunpack.c.l.b16 %v790
      %v835 = vunpack.c.h.b16 %v790
      %v836 = vunpack.c.l.b16 %v791
      %v837 = vunpack.c.h.b16 %v791
      %v838 = vunpack.c.l.b16 %v792
      %v839 = vunpack.c.h.b16 %v792
      %v840 = vunpack.c.l.b16 %v793
      %v841 = vunpack.c.h.b16 %v793
      %v842 = vpack.c.b16 %v812, %v810
      %v843 = vpack.c.b16 %v813, %v811
      %v844 = vpack.c.b16 %v816, %v814
      %v845 = vpack.c.b16 %v817, %v815
      %v846 = vpack.c.b16 %v820, %v818
      %v847 = vpack.c.b16 %v821, %v819
      %v848 = vpack.c.b16 %v824, %v822
      %v849 = vpack.c.b16 %v825, %v823
      %v850 = vpack.c.b16 %v828, %v826
      %v851 = vpack.c.b16 %v829, %v827
      %v852 = vpack.c.b16 %v832, %v830
      %v853 = vpack.c.b16 %v833, %v831
      %v854 = vpack.c.b16 %v836, %v834
      %v855 = vpack.c.b16 %v837, %v835
      %v856 = vpack.c.b16 %v840, %v838
      %v857 = vpack.c.b16 %v841, %v839
      %874 = vmatpush.bf16.msra.mxu0 %v856
      %875 = vmatpush.bf16.msra.mxu0 %v854
      %876 = vmatpush.bf16.msra.mxu0 %v852
      %877 = vmatpush.bf16.msra.mxu0 %v850
      %878 = vmatpush.bf16.msra.mxu0 %v848
      %879 = vmatpush.bf16.msra.mxu0 %v846
      %880 = vmatpush.bf16.msra.mxu0 %v844
      %881 = vmatpush.bf16.msra.mxu0 %v842
      %882 = vmatmul.bf16.gmra.mxu0 %v777
      %v883 = vpop.f32.mrf.mxu0
      %v884 = vadd.f32 0.0, %v883
      %v885 = vpop.f32.mrf.mxu0
      %886 = vdwg.mxu0
      %887 = vmatpush.bf16.msra.mxu0 %v857
      %888 = vmatpush.bf16.msra.mxu0 %v855
      %889 = vmatpush.bf16.msra.mxu0 %v853
      %890 = vmatpush.bf16.msra.mxu0 %v851
      %891 = vmatpush.bf16.msra.mxu0 %v849
      %892 = vmatpush.bf16.msra.mxu0 %v847
      %893 = vmatpush.bf16.msra.mxu0 %v845
      %894 = vmatpush.bf16.msra.mxu0 %v843
      %895 = vmatmul.bf16.gmra.mxu0 %v777
      %v896 = vpop.f32.mrf.mxu0
      %v897 = vadd.f32 0.0, %v896
      %v898 = vpop.f32.mrf.mxu0
      %899 = vdwg.mxu0
      %v916 = vunpack.c.l.b16 %v761
      %v917 = vunpack.c.h.b16 %v761
      %v918 = vunpack.c.l.b16 %v762
      %v919 = vunpack.c.h.b16 %v762
      %v920 = vunpack.c.l.b16 %v763
      %v921 = vunpack.c.h.b16 %v763
      %v922 = vunpack.c.l.b16 %v764
      %v923 = vunpack.c.h.b16 %v764
      %v924 = vunpack.c.l.b16 %v765
      %v925 = vunpack.c.h.b16 %v765
      %v926 = vunpack.c.l.b16 %v766
      %v927 = vunpack.c.h.b16 %v766
      %v928 = vunpack.c.l.b16 %v767
      %v929 = vunpack.c.h.b16 %v767
      %v930 = vunpack.c.l.b16 %v768
      %v931 = vunpack.c.h.b16 %v768
      %v932 = vunpack.c.l.b16 %v769
      %v933 = vunpack.c.h.b16 %v769
      %v934 = vunpack.c.l.b16 %v770
      %v935 = vunpack.c.h.b16 %v770
      %v936 = vunpack.c.l.b16 %v771
      %v937 = vunpack.c.h.b16 %v771
      %v938 = vunpack.c.l.b16 %v772
      %v939 = vunpack.c.h.b16 %v772
      %v940 = vunpack.c.l.b16 %v773
      %v941 = vunpack.c.h.b16 %v773
      %v942 = vunpack.c.l.b16 %v774
      %v943 = vunpack.c.h.b16 %v774
      %v944 = vunpack.c.l.b16 %v775
      %v945 = vunpack.c.h.b16 %v775
      %v946 = vunpack.c.l.b16 %v776
      %v947 = vunpack.c.h.b16 %v776
      %v948 = vpack.c.b16 %v918, %v916
      %v949 = vpack.c.b16 %v919, %v917
      %v950 = vpack.c.b16 %v922, %v920
      %v951 = vpack.c.b16 %v923, %v921
      %v952 = vpack.c.b16 %v926, %v924
      %v953 = vpack.c.b16 %v927, %v925
      %v954 = vpack.c.b16 %v930, %v928
      %v955 = vpack.c.b16 %v931, %v929
      %v956 = vpack.c.b16 %v934, %v932
      %v957 = vpack.c.b16 %v935, %v933
      %v958 = vpack.c.b16 %v938, %v936
      %v959 = vpack.c.b16 %v939, %v937
      %v960 = vpack.c.b16 %v942, %v940
      %v961 = vpack.c.b16 %v943, %v941
      %v962 = vpack.c.b16 %v946, %v944
      %v963 = vpack.c.b16 %v947, %v945
      %980 = vmatpush.bf16.msra.mxu0 %v962
      %981 = vmatpush.bf16.msra.mxu0 %v960
      %982 = vmatpush.bf16.msra.mxu0 %v958
      %983 = vmatpush.bf16.msra.mxu0 %v956
      %984 = vmatpush.bf16.msra.mxu0 %v954
      %985 = vmatpush.bf16.msra.mxu0 %v952
      %986 = vmatpush.bf16.msra.mxu0 %v950
      %987 = vmatpush.bf16.msra.mxu0 %v948
      %988 = vmatmul.bf16.gmra.mxu0 %v760
      %v989 = vpop.f32.mrf.mxu0
      %v990 = vadd.f32 %v884, %v989
      %v991 = vpop.f32.mrf.mxu0
      %992 = vdwg.mxu0
      %993 = vmatpush.bf16.msra.mxu0 %v963
      %994 = vmatpush.bf16.msra.mxu0 %v961
      %995 = vmatpush.bf16.msra.mxu0 %v959
      %996 = vmatpush.bf16.msra.mxu0 %v957
      %997 = vmatpush.bf16.msra.mxu0 %v955
      %998 = vmatpush.bf16.msra.mxu0 %v953
      %999 = vmatpush.bf16.msra.mxu0 %v951
      %1000 = vmatpush.bf16.msra.mxu0 %v949
      %1001 = vmatmul.bf16.gmra.mxu0 %v760
      %v1002 = vpop.f32.mrf.mxu0
      %v1003 = vadd.f32 %v897, %v1002
      %v1004 = vpop.f32.mrf.mxu0
      %1005 = vdwg.mxu0
      %v1006 = vld [vmem:[%s477] sm:$0x3]
      %v1008 = vperm.slane %v1006, 0
      %v1009 = vperm.slane %v1006, 1
      %v1012 = vadd.f32 %v990, %v1008
      %v1013 = vadd.f32 %v1003, %v1009
      %v1014 = vmax.f32 %v1012, 0.0
      %v1015 = vmax.f32 %v1013, 0.0
      %v1016 = vunpack.c.l.bf16 %v698
      %v1017 = vunpack.c.l.bf16 %v699
      %v1018 = vunpack.c.l.bf16 %v700
      %v1019 = vunpack.c.l.bf16 %v701
      %v1020 = vunpack.c.l.bf16 %v702
      %v1021 = vunpack.c.l.bf16 %v703
      %v1022 = vunpack.c.l.bf16 %v704
      %v1023 = vunpack.c.l.bf16 %v705
      %v1024 = vadd.f32 %v1016, %v1017
      %v1025 = vadd.f32 %v1024, %v1018
      %v1026 = vadd.f32 %v1025, %v1019
      %v1027 = vadd.f32 %v1026, %v1020
      %v1028 = vadd.f32 %v1027, %v1021
      %v1029 = vadd.f32 %v1028, %v1022
      %v1030 = vadd.f32 %v1029, %v1023
      %v1031 = vrot.slane %v1030, 4
      %v1032 = vadd.f32 %v1030, %v1031
      %v1033 = vrot.slane %v1032, 2
      %v1034 = vadd.f32 %v1032, %v1033
      %v1035 = vrot.slane %v1034, 1
      %v1036 = vadd.f32 %v1034, %v1035
      %v1037 = vmul.f32 %v1036, %v741
      %v1038 = vunpack.c.l.bf16 %v494
      %v1039 = vunpack.c.l.bf16 %v495
      %v1040 = vadd.f32 %v1038, %v1039
      %v1041 = vrot.slane %v1040, 4
      %v1042 = vadd.f32 %v1040, %v1041
      %v1043 = vrot.slane %v1042, 2
      %v1044 = vadd.f32 %v1042, %v1043
      %v1045 = vrot.slane %v1044, 1
      %v1046 = vadd.f32 %v1044, %v1045
      %v1047 = vmul.f32 %v1046, %v758
      %v1048 = vunpack.c.l.bf16 %v706
      %v1049 = vunpack.c.l.bf16 %v707
      %v1050 = vunpack.c.l.bf16 %v708
      %v1051 = vunpack.c.l.bf16 %v709
      %v1052 = vunpack.c.l.bf16 %v710
      %v1053 = vunpack.c.l.bf16 %v711
      %v1054 = vunpack.c.l.bf16 %v712
      %v1055 = vunpack.c.l.bf16 %v713
      %v1056 = vadd.f32 %v1048, %v1049
      %v1057 = vadd.f32 %v1056, %v1050
      %v1058 = vadd.f32 %v1057, %v1051
      %v1059 = vadd.f32 %v1058, %v1052
      %v1060 = vadd.f32 %v1059, %v1053
      %v1061 = vadd.f32 %v1060, %v1054
      %v1062 = vadd.f32 %v1061, %v1055
      %v1063 = vrot.slane %v1062, 4
      %v1064 = vadd.f32 %v1062, %v1063
      %v1065 = vrot.slane %v1064, 2
      %v1066 = vadd.f32 %v1064, %v1065
      %v1067 = vrot.slane %v1066, 1
      %v1068 = vadd.f32 %v1066, %v1067
      %v1069 = vmul.f32 %v1068, %v741
      %v1070 = vunpack.c.l.bf16 %v496
      %v1071 = vunpack.c.l.bf16 %v497
      %v1072 = vadd.f32 %v1070, %v1071
      %v1073 = vrot.slane %v1072, 4
      %v1074 = vadd.f32 %v1072, %v1073
      %v1075 = vrot.slane %v1074, 2
      %v1076 = vadd.f32 %v1074, %v1075
      %v1077 = vrot.slane %v1076, 1
      %v1078 = vadd.f32 %v1076, %v1077
      %v1079 = vmul.f32 %v1078, %v758
      %vm1080 = vcmask 1040384
      %v1081 = vsel %vm1080, %v1037, %v1069
      %v1082 = vsel %vm1080, %v1047, %v1079
      %v1083 = vperm.slane %v1014, 0
      %v1084 = vmul.f32 %v1081, %v1083
      %v1085 = vperm.slane %v1015, 0
      %v1086 = vmul.f32 %v1082, %v1085
      %v1087 = vld [vmem:[%s9] sm:$0x1]
      %v1089 = vperm.slane %v1087, 0
      %v1091 = vmul.f32 %v1084, %v1089
      %vm1092 = vcmask 1041408
      %v1093 = vsel %vm1092, %v1091, 0.0
      %1094 = vadd.xlane.f32.xlu0 %v1093
      %v1095 = vpop.xlane.xlu0 %1094
      %v1096 = vld [vmem:[%s10] sm:$0x1]
      %v1098 = vperm.slane %v1096, 0
      %v1100 = vmul.f32 %v1086, %v1098
      %v1101 = vsel %vm1092, %v1100, 0.0
      %1102 = vadd.xlane.f32.xlu0 %v1101
      %v1103 = vpop.xlane.xlu0 %1102
      %v1104 = vadd.f32 %v1095, %v1103
      %v1105 = vld [vmem:[%s481] sm:$0x3]
      %v1106 = vadd.f32 %v1104, %v1105
      %vm1107 = vcmask 58368
      %1108 = vst.msk [vmem:[%s488] sm:$0x3] %vm1107, %v1106
      %p1109 = scmp.lt.s32.totalorder %s24, 1
      %s1110 = scalar_select %p1109, %s24, 1
      %s1111 = scalar_lea.vmem %s11, %s1110
      %p1112 = scmp.lt.s32.totalorder %s24, 1
      %s1113 = scalar_select %p1112, %s24, 1
      %s1114 = smul.addr %s1113, 2
      %s1115 = scalar_lea.vmem %s12, %s1114
      // Predicated region
      $region65: #{dimpnet_forward.7} parent=63 // pred_check
        %p1116 = pneg %p298
      $region66: #{dimpnet_forward.7} parent=63 // pred_check_branch
        %1118 = sbr.rel (%p1116) target = $region68
      $region67: #{dimpnet_forward.7} parent=63 // pred_region
        _
      $region68: #{dimpnet_forward.7} parent=63 // pred_fallthru
        _
      // Predicated region
      $region69: #{dimpnet_forward.7} parent=63 // pred_check
        %p1119 = pneg %p324
      $region70: #{dimpnet_forward.7} parent=63 // pred_check_branch
        %1121 = sbr.rel (%p1119) target = $region72
      $region71: #{dimpnet_forward.7} parent=63 // pred_region
        _
      $region72: #{dimpnet_forward.7} parent=63 // pred_fallthru
        _
    $region64: #{dimpnet_forward.7} parent=5 // pred_fallthru
      _
    %p1122 = scmp.le.s32.totalorder 2, %s19
    // Predicated region
    $region73: #{dimpnet_forward.7} parent=5 // pred_check
      %p1123 = pneg %p1122
    $region74: #{dimpnet_forward.7} parent=5 // pred_check_branch
      %1125 = sbr.rel (%p1123) target = $region76
    $region75: #{dimpnet_forward.7} parent=5 // pred_region
      %s1126 = ssub.s32 %s19, 2
      // Predicated region
      $region77: #{dimpnet_forward.7} parent=75 // pred_check
        %p1127 = pneg %p304
      $region78: #{dimpnet_forward.7} parent=75 // pred_check_branch
        %1129 = sbr.rel (%p1127) target = $region80
      $region79: #{dimpnet_forward.7} parent=75 // pred_region
        %p1130 = scmp.lt.s32.totalorder %s25, 1
        %s1131 = scalar_select %p1130, %s25, 1
        %s1132 = scalar_lea.vmem %s11, %s1131
      $region80: #{dimpnet_forward.7} parent=75 // pred_fallthru
        _
      // Predicated region
      $region81: #{dimpnet_forward.7} parent=75 // pred_check
        %p1133 = pneg %p330
      $region82: #{dimpnet_forward.7} parent=75 // pred_check_branch
        %1135 = sbr.rel (%p1133) target = $region84
      $region83: #{dimpnet_forward.7} parent=75 // pred_region
        %p1136 = scmp.lt.s32.totalorder %s25, 1
        %s1137 = scalar_select %p1136, %s25, 1
        %s1138 = smul.addr %s1137, 2
        %s1139 = scalar_lea.vmem %s12, %s1138
      $region84: #{dimpnet_forward.7} parent=75 // pred_fallthru
        _
    $region76: #{dimpnet_forward.7} parent=5 // pred_fallthru
      _
  $region6: #{dimpnet_forward.7} parent=0 // loop_footer
    %s23 = sadd.s32 1, %s19
  $region7: #{dimpnet_forward.7} parent=0 // loop_footer_branch
    %18 = sbr.rel target = $region3
  $region8: #{dimpnet_forward.7} parent=0 // loop_exit
    _

</llo_original>
